<compile_context>
chip_gen: v7x
topology: tpu7x:2x2x1
jax: 0.10.0
libtpu: 0.0.40
codegen_flags: <defaults>
</compile_context>

<pallas_src>
import functools

import jax
import jax.numpy as jnp
from jax import lax
from jax.experimental import pallas as pl
from jax.experimental.pallas import tpu as pltpu


# ----------------------------------------------------------------------------
# Fused MHA kernel: one batch element per grid step, all heads at once.
# ----------------------------------------------------------------------------
def _mha_fused_kernel(q_ref, k_ref, v_ref,
                      wq_ref, bq_ref, wk_ref, bk_ref, wv_ref, bv_ref,
                      wo_ref, bo_ref,
                      o_ref, *, scale, compute_dtype):
    nH = wq_ref.shape[0]          # weights are pre-split: (num_heads, E, Dh)
    S = q_ref.shape[1]
    E = q_ref.shape[2]
    cdt = compute_dtype

    # Broadcast the (S, E) activations over the head axis once so every
    # projection is a single head-batched dot_general (heads folded together,
    # one MXU stream, no per-head grid steps).
    def bcast(ref):
        return jnp.broadcast_to(ref[0][None], (nH, S, E)).astype(cdt)

    q = bcast(q_ref)
    k = bcast(k_ref)
    v = bcast(v_ref)

    # Batched matmul: contract the minor dim of lhs with dim 1 of rhs,
    # batch over the head axis.  f32 accumulation on the MXU.
    batched_mm = functools.partial(
        lax.dot_general,
        dimension_numbers=(((2,), (1,)), ((0,), (0,))),
        preferred_element_type=jnp.float32,
    )

    # Q/K/V projections + bias (bias add in f32):  (nH, S, Dh)
    qp = batched_mm(q, wq_ref[...].astype(cdt)) + bq_ref[...]
    kp = batched_mm(k, wk_ref[...].astype(cdt)) + bk_ref[...]
    vp = batched_mm(v, wv_ref[...].astype(cdt)) + bv_ref[...]

    # Attention scores: contract head_dim directly (no explicit K transpose).
    scores = lax.dot_general(
        qp.astype(cdt), kp.astype(cdt),
        dimension_numbers=(((2,), (2,)), ((0,), (0,))),
        preferred_element_type=jnp.float32) * scale           # (nH, S, S)

    # Numerically-stable softmax, kept in f32 (VPU/EUP path, v5e-safe).
    m = jnp.max(scores, axis=-1, keepdims=True)
    p = jnp.exp(scores - m)
    p = p * pl.reciprocal(jnp.sum(p, axis=-1, keepdims=True), approx=True)

    # Attention output: (nH, S, S) x (nH, S, Dh) -> (nH, S, Dh)
    att = batched_mm(p.astype(cdt), vp.astype(cdt))

    # Fused "concat + output projection": concat(att) @ Wo == sum_h att_h @ Wo_h
    out_h = batched_mm(att.astype(cdt), wo_ref[...].astype(cdt))   # (nH, S, E)
    o_ref[0] = (jnp.sum(out_h, axis=0) + bo_ref[...]).astype(o_ref.dtype)


# ----------------------------------------------------------------------------
# Wrapper
# ----------------------------------------------------------------------------
@functools.partial(jax.jit, static_argnames=("num_heads", "compute_dtype"))
def multi_head_attention(q, k, v, params, *, num_heads, compute_dtype=jnp.bfloat16):
    """Forward pass matching the PyTorch MultiHeadAttention (mask=None).

    Weights are stored as (in_features, out_features), i.e. already transposed
    relative to torch's nn.Linear.weight, so y = x @ W + b.
    """
    B, S, E = q.shape
    H = params["wq"].shape[1]
    assert H % num_heads == 0
    Dh = H // num_heads
    scale = 1.0 / (Dh ** 0.5)

    # One-time parameter re-layout (outside the kernel, fused/constant-folded by
    # XLA): split the hidden dim into (num_heads, head_dim) so the kernel only
    # ever runs head-batched matmuls — no in-kernel reshapes or transposes.
    wq_h = params["wq"].reshape(E, num_heads, Dh).transpose(1, 0, 2)   # (nH, E, Dh)
    wk_h = params["wk"].reshape(E, num_heads, Dh).transpose(1, 0, 2)
    wv_h = params["wv"].reshape(E, num_heads, Dh).transpose(1, 0, 2)
    bq_h = params["bq"].reshape(num_heads, 1, Dh)
    bk_h = params["bk"].reshape(num_heads, 1, Dh)
    bv_h = params["bv"].reshape(num_heads, 1, Dh)
    wo_h = params["wo"].reshape(num_heads, Dh, E)                      # (nH, Dh, E)
    bo = params["bo"].reshape(1, E)

    kernel = functools.partial(_mha_fused_kernel, scale=scale,
                               compute_dtype=compute_dtype)

    act_spec = pl.BlockSpec((1, S, E), lambda b: (b, 0, 0))

    def full_spec(arr):
        shape = arr.shape
        return pl.BlockSpec(shape, lambda b, _n=len(shape): (0,) * _n)

    return pl.pallas_call(
        kernel,
        out_shape=jax.ShapeDtypeStruct((B, S, E), q.dtype),
        grid=(B,),
        in_specs=[
            act_spec, act_spec, act_spec,
            full_spec(wq_h), full_spec(bq_h),
            full_spec(wk_h), full_spec(bk_h),
            full_spec(wv_h), full_spec(bv_h),
            full_spec(wo_h), full_spec(bo),
        ],
        out_specs=act_spec,
        compiler_params=pltpu.CompilerParams(
            # Batch axis is independent -> shards across v7x's 2 TensorCores.
            dimension_semantics=("parallel",),
        ),
    )(q, k, v, wq_h, bq_h, wk_h, bk_h, wv_h, bv_h, wo_h, bo)


# ----------------------------------------------------------------------------
# Pure-JAX reference (for correctness check)
# ----------------------------------------------------------------------------
def reference_mha(q, k, v, params, num_heads):
    B, S, E = q.shape
    H = params["wq"].shape[1]
    Dh = H // num_heads

    def lin(x, w, b):
        return x @ w + b

    def split(x):
        return x.reshape(B, S, num_heads, Dh).transpose(0, 2, 1, 3)

    qp = split(lin(q, params["wq"], params["bq"]))
    kp = split(lin(k, params["wk"], params["bk"]))
    vp = split(lin(v, params["wv"], params["bv"]))
    scores = jnp.einsum("bhqd,bhkd->bhqk", qp, kp) / (Dh ** 0.5)
    p = jax.nn.softmax(scores, axis=-1)
    out = jnp.einsum("bhqk,bhkd->bhqd", p, vp)
    out = out.transpose(0, 2, 1, 3).reshape(B, S, H)
    return lin(out, params["wo"], params["bo"])


# ----------------------------------------------------------------------------
# Main
# ----------------------------------------------------------------------------
if __name__ == "__main__":
    B, S = 2, 8
    embedding_size = 32
    hidden_size = 32
    num_heads = 8

    key = jax.random.PRNGKey(0)
    keys = jax.random.split(key, 11)

    # Deterministic parameter init (shapes follow nn.Linear in the module,
    # stored as (in, out)).
    params = {
        "wq": jax.random.normal(keys[0], (embedding_size, hidden_size), jnp.float32) * 0.1,
        "bq": jax.random.normal(keys[1], (hidden_size,), jnp.float32) * 0.1,
        "wk": jax.random.normal(keys[2], (embedding_size, hidden_size), jnp.float32) * 0.1,
        "bk": jax.random.normal(keys[3], (hidden_size,), jnp.float32) * 0.1,
        "wv": jax.random.normal(keys[4], (embedding_size, hidden_size), jnp.float32) * 0.1,
        "bv": jax.random.normal(keys[5], (hidden_size,), jnp.float32) * 0.1,
        "wo": jax.random.normal(keys[6], (hidden_size, embedding_size), jnp.float32) * 0.1,
        "bo": jax.random.normal(keys[7], (embedding_size,), jnp.float32) * 0.1,
    }

    q = jax.random.normal(keys[8], (B, S, embedding_size), jnp.float32)
    k = jax.random.normal(keys[9], (B, S, embedding_size), jnp.float32)
    v = jax.random.normal(keys[10], (B, S, embedding_size), jnp.float32)

    ref = reference_mha(q, k, v, params, num_heads)

    # f32-operand path: tight check (only the approx reciprocal deviates).
    out_f32 = multi_head_attention(q, k, v, params, num_heads=num_heads,
                                   compute_dtype=jnp.float32)
    out_f32 = jax.block_until_ready(out_f32)
    assert out_f32.shape == (B, S, embedding_size)
    assert jnp.allclose(out_f32, ref, atol=1e-3, rtol=1e-3), "f32 path mismatch"

    # bf16-MXU-operand path (the performance configuration for v6e/v7x):
    # compared at bf16-level tolerance since operands are rounded to bf16
    # (accumulation stays f32).
    out_bf16 = multi_head_attention(q, k, v, params, num_heads=num_heads,
                                    compute_dtype=jnp.bfloat16)
    out_bf16 = jax.block_until_ready(out_bf16)
    assert out_bf16.shape == (B, S, embedding_size)
    assert jnp.allclose(out_bf16, ref, atol=3e-2, rtol=3e-2), "bf16 path mismatch"

    print("KERNEL_OK")
</pallas_src>

<mosaic_0001>
module attributes {stable_mosaic.version = 11 : i64} {
  func.func @_mha_fused_kernel(%arg0: i32, %arg1: memref<1x8x32xf32, #tpu.memory_space<vmem>>, %arg2: memref<1x8x32xf32, #tpu.memory_space<vmem>>, %arg3: memref<1x8x32xf32, #tpu.memory_space<vmem>>, %arg4: memref<8x32x4xf32, #tpu.memory_space<vmem>>, %arg5: memref<8x1x4xf32, #tpu.memory_space<vmem>>, %arg6: memref<8x32x4xf32, #tpu.memory_space<vmem>>, %arg7: memref<8x1x4xf32, #tpu.memory_space<vmem>>, %arg8: memref<8x32x4xf32, #tpu.memory_space<vmem>>, %arg9: memref<8x1x4xf32, #tpu.memory_space<vmem>>, %arg10: memref<8x4x32xf32, #tpu.memory_space<vmem>>, %arg11: memref<1x32xf32, #tpu.memory_space<vmem>>, %arg12: memref<1x8x32xf32, #tpu.memory_space<vmem>>) attributes {dimension_semantics = [#tpu.dimension_semantics<parallel>], iteration_bounds = array<i64: 2>, scalar_prefetch = 0 : i64, scratch_operands = 0 : i64, tpu.core_type = #tpu.core_type<tc>, window_params = [{transform_indices = @transform_0, window_bounds = array<i64: 1, 8, 32>}, {transform_indices = @transform_1, window_bounds = array<i64: 1, 8, 32>}, {transform_indices = @transform_2, window_bounds = array<i64: 1, 8, 32>}, {pipeline_mode = #tpu.pipeline_mode<synchronous>, transform_indices = @transform_3, window_bounds = array<i64: 8, 32, 4>}, {pipeline_mode = #tpu.pipeline_mode<synchronous>, transform_indices = @transform_4, window_bounds = array<i64: 8, 1, 4>}, {pipeline_mode = #tpu.pipeline_mode<synchronous>, transform_indices = @transform_5, window_bounds = array<i64: 8, 32, 4>}, {pipeline_mode = #tpu.pipeline_mode<synchronous>, transform_indices = @transform_6, window_bounds = array<i64: 8, 1, 4>}, {pipeline_mode = #tpu.pipeline_mode<synchronous>, transform_indices = @transform_7, window_bounds = array<i64: 8, 32, 4>}, {pipeline_mode = #tpu.pipeline_mode<synchronous>, transform_indices = @transform_8, window_bounds = array<i64: 8, 1, 4>}, {pipeline_mode = #tpu.pipeline_mode<synchronous>, transform_indices = @transform_9, window_bounds = array<i64: 8, 4, 32>}, {pipeline_mode = #tpu.pipeline_mode<synchronous>, transform_indices = @transform_10, window_bounds = array<i64: 1, 32>}, {transform_indices = @transform_11, window_bounds = array<i64: 1, 8, 32>}]} {
    %c0 = arith.constant 0 : index
    %c0_0 = arith.constant 0 : index
    %c0_1 = arith.constant 0 : index
    %0 = vector.load %arg1[%c0, %c0_0, %c0_1] : memref<1x8x32xf32, #tpu.memory_space<vmem>>, vector<1x8x32xf32>
    %1 = vector.shape_cast %0 : vector<1x8x32xf32> to vector<8x32xf32>
    %2 = vector.shape_cast %1 : vector<8x32xf32> to vector<1x8x32xf32>
    %3 = vector.shape_cast %2 : vector<1x8x32xf32> to vector<1x8x32xf32>
    %4 = vector.broadcast %3 : vector<1x8x32xf32> to vector<8x8x32xf32>
    %c0_2 = arith.constant 0 : index
    %c0_3 = arith.constant 0 : index
    %c0_4 = arith.constant 0 : index
    %5 = vector.load %arg2[%c0_2, %c0_3, %c0_4] : memref<1x8x32xf32, #tpu.memory_space<vmem>>, vector<1x8x32xf32>
    %6 = vector.shape_cast %5 : vector<1x8x32xf32> to vector<8x32xf32>
    %7 = vector.shape_cast %6 : vector<8x32xf32> to vector<1x8x32xf32>
    %8 = vector.shape_cast %7 : vector<1x8x32xf32> to vector<1x8x32xf32>
    %9 = vector.broadcast %8 : vector<1x8x32xf32> to vector<8x8x32xf32>
    %c0_5 = arith.constant 0 : index
    %c0_6 = arith.constant 0 : index
    %c0_7 = arith.constant 0 : index
    %10 = vector.load %arg3[%c0_5, %c0_6, %c0_7] : memref<1x8x32xf32, #tpu.memory_space<vmem>>, vector<1x8x32xf32>
    %11 = vector.shape_cast %10 : vector<1x8x32xf32> to vector<8x32xf32>
    %12 = vector.shape_cast %11 : vector<8x32xf32> to vector<1x8x32xf32>
    %13 = vector.shape_cast %12 : vector<1x8x32xf32> to vector<1x8x32xf32>
    %14 = vector.broadcast %13 : vector<1x8x32xf32> to vector<8x8x32xf32>
    %c0_8 = arith.constant 0 : index
    %c0_9 = arith.constant 0 : index
    %c0_10 = arith.constant 0 : index
    %15 = vector.load %arg4[%c0_8, %c0_9, %c0_10] : memref<8x32x4xf32, #tpu.memory_space<vmem>>, vector<8x32x4xf32>
    %cst = arith.constant dense<0.000000e+00> : vector<8x8x4xf32>
    %16 = tpu.matmul %4, %15, %cst {dimension_numbers = #tpu.dot_dimension_numbers<[2], [1], [1], [2], [0, 0, 0, 1, 1, 2], [0], [0]>} : vector<8x8x32xf32>, vector<8x32x4xf32>, vector<8x8x4xf32> -> vector<8x8x4xf32>
    %c0_11 = arith.constant 0 : index
    %c0_12 = arith.constant 0 : index
    %c0_13 = arith.constant 0 : index
    %17 = vector.load %arg5[%c0_11, %c0_12, %c0_13] : memref<8x1x4xf32, #tpu.memory_space<vmem>>, vector<8x1x4xf32>
    %18 = vector.broadcast %17 : vector<8x1x4xf32> to vector<8x8x4xf32>
    %19 = arith.addf %16, %18 : vector<8x8x4xf32>
    %c0_14 = arith.constant 0 : index
    %c0_15 = arith.constant 0 : index
    %c0_16 = arith.constant 0 : index
    %20 = vector.load %arg6[%c0_14, %c0_15, %c0_16] : memref<8x32x4xf32, #tpu.memory_space<vmem>>, vector<8x32x4xf32>
    %cst_17 = arith.constant dense<0.000000e+00> : vector<8x8x4xf32>
    %21 = tpu.matmul %9, %20, %cst_17 {dimension_numbers = #tpu.dot_dimension_numbers<[2], [1], [1], [2], [0, 0, 0, 1, 1, 2], [0], [0]>} : vector<8x8x32xf32>, vector<8x32x4xf32>, vector<8x8x4xf32> -> vector<8x8x4xf32>
    %c0_18 = arith.constant 0 : index
    %c0_19 = arith.constant 0 : index
    %c0_20 = arith.constant 0 : index
    %22 = vector.load %arg7[%c0_18, %c0_19, %c0_20] : memref<8x1x4xf32, #tpu.memory_space<vmem>>, vector<8x1x4xf32>
    %23 = vector.broadcast %22 : vector<8x1x4xf32> to vector<8x8x4xf32>
    %24 = arith.addf %21, %23 : vector<8x8x4xf32>
    %c0_21 = arith.constant 0 : index
    %c0_22 = arith.constant 0 : index
    %c0_23 = arith.constant 0 : index
    %25 = vector.load %arg8[%c0_21, %c0_22, %c0_23] : memref<8x32x4xf32, #tpu.memory_space<vmem>>, vector<8x32x4xf32>
    %cst_24 = arith.constant dense<0.000000e+00> : vector<8x8x4xf32>
    %26 = tpu.matmul %14, %25, %cst_24 {dimension_numbers = #tpu.dot_dimension_numbers<[2], [1], [1], [2], [0, 0, 0, 1, 1, 2], [0], [0]>} : vector<8x8x32xf32>, vector<8x32x4xf32>, vector<8x8x4xf32> -> vector<8x8x4xf32>
    %c0_25 = arith.constant 0 : index
    %c0_26 = arith.constant 0 : index
    %c0_27 = arith.constant 0 : index
    %27 = vector.load %arg9[%c0_25, %c0_26, %c0_27] : memref<8x1x4xf32, #tpu.memory_space<vmem>>, vector<8x1x4xf32>
    %28 = vector.broadcast %27 : vector<8x1x4xf32> to vector<8x8x4xf32>
    %29 = arith.addf %26, %28 : vector<8x8x4xf32>
    %cst_28 = arith.constant dense<0.000000e+00> : vector<8x8x8xf32>
    %30 = tpu.matmul %19, %24, %cst_28 {dimension_numbers = #tpu.dot_dimension_numbers<[2], [2], [1], [1], [0, 0, 0, 1, 1, 1], [0], [0]>} : vector<8x8x4xf32>, vector<8x8x4xf32>, vector<8x8x8xf32> -> vector<8x8x8xf32>
    %cst_29 = arith.constant 5.000000e-01 : f32
    %31 = vector.broadcast %cst_29 : f32 to vector<8x8x8xf32>
    %32 = arith.mulf %30, %31 : vector<8x8x8xf32>
    %cst_30 = arith.constant dense<0xFF800000> : vector<8x8xf32>
    %33 = vector.multi_reduction <maximumf>, %32, %cst_30 [2] : vector<8x8x8xf32> to vector<8x8xf32>
    %34 = vector.shape_cast %33 : vector<8x8xf32> to vector<8x8x1xf32>
    %35 = vector.broadcast %34 : vector<8x8x1xf32> to vector<8x8x8xf32>
    %36 = arith.subf %32, %35 : vector<8x8x8xf32>
    %37 = math.exp %36 : vector<8x8x8xf32>
    %cst_31 = arith.constant dense<0.000000e+00> : vector<8x8xf32>
    %38 = vector.multi_reduction <add>, %37, %cst_31 [2] : vector<8x8x8xf32> to vector<8x8xf32>
    %39 = vector.shape_cast %38 : vector<8x8xf32> to vector<8x8x1xf32>
    %40 = tpu.reciprocal %39 {approx = true} : vector<8x8x1xf32> -> vector<8x8x1xf32>
    %41 = vector.broadcast %40 : vector<8x8x1xf32> to vector<8x8x8xf32>
    %42 = arith.mulf %37, %41 : vector<8x8x8xf32>
    %cst_32 = arith.constant dense<0.000000e+00> : vector<8x8x4xf32>
    %43 = tpu.matmul %42, %29, %cst_32 {dimension_numbers = #tpu.dot_dimension_numbers<[2], [1], [1], [2], [0, 0, 0, 1, 1, 2], [0], [0]>} : vector<8x8x8xf32>, vector<8x8x4xf32>, vector<8x8x4xf32> -> vector<8x8x4xf32>
    %c0_33 = arith.constant 0 : index
    %c0_34 = arith.constant 0 : index
    %c0_35 = arith.constant 0 : index
    %44 = vector.load %arg10[%c0_33, %c0_34, %c0_35] : memref<8x4x32xf32, #tpu.memory_space<vmem>>, vector<8x4x32xf32>
    %cst_36 = arith.constant dense<0.000000e+00> : vector<8x8x32xf32>
    %45 = tpu.matmul %43, %44, %cst_36 {dimension_numbers = #tpu.dot_dimension_numbers<[2], [1], [1], [2], [0, 0, 0, 1, 1, 2], [0], [0]>} : vector<8x8x4xf32>, vector<8x4x32xf32>, vector<8x8x32xf32> -> vector<8x8x32xf32>
    %cst_37 = arith.constant dense<0.000000e+00> : vector<8x32xf32>
    %46 = vector.multi_reduction <add>, %45, %cst_37 [0] : vector<8x8x32xf32> to vector<8x32xf32>
    %c0_38 = arith.constant 0 : index
    %c0_39 = arith.constant 0 : index
    %47 = vector.load %arg11[%c0_38, %c0_39] : memref<1x32xf32, #tpu.memory_space<vmem>>, vector<1x32xf32>
    %48 = vector.broadcast %47 : vector<1x32xf32> to vector<8x32xf32>
    %49 = arith.addf %46, %48 : vector<8x32xf32>
    %c0_40 = arith.constant 0 : index
    %c0_41 = arith.constant 0 : index
    %c0_42 = arith.constant 0 : index
    %50 = vector.load %arg12[%c0_40, %c0_41, %c0_42] : memref<1x8x32xf32, #tpu.memory_space<vmem>>, vector<1x8x32xf32>
    %51 = vector.shape_cast %50 : vector<1x8x32xf32> to vector<8x32xf32>
    %52 = vector.shape_cast %49 : vector<8x32xf32> to vector<1x8x32xf32>
    tpu.vector_store %arg12[%c0_40, %c0_41, %c0_42], %52 {strides = array<i32>} : memref<1x8x32xf32, #tpu.memory_space<vmem>>, vector<1x8x32xf32>,
    return
  }
  func.func @transform_0(%arg0: i32) -> (i32, i32, i32) {
    %c0_i32 = arith.constant 0 : i32
    %c0_i32_0 = arith.constant 0 : i32
    %c0_i32_1 = arith.constant 0 : i32
    return %arg0, %c0_i32, %c0_i32_0 : i32, i32, i32
  }
  func.func @transform_1(%arg0: i32) -> (i32, i32, i32) {
    %c0_i32 = arith.constant 0 : i32
    %c0_i32_0 = arith.constant 0 : i32
    %c0_i32_1 = arith.constant 0 : i32
    return %arg0, %c0_i32, %c0_i32_0 : i32, i32, i32
  }
  func.func @transform_2(%arg0: i32) -> (i32, i32, i32) {
    %c0_i32 = arith.constant 0 : i32
    %c0_i32_0 = arith.constant 0 : i32
    %c0_i32_1 = arith.constant 0 : i32
    return %arg0, %c0_i32, %c0_i32_0 : i32, i32, i32
  }
  func.func @transform_3(%arg0: i32) -> (i32, i32, i32) {
    %c0_i32 = arith.constant 0 : i32
    %c0_i32_0 = arith.constant 0 : i32
    %c0_i32_1 = arith.constant 0 : i32
    %c0_i32_2 = arith.constant 0 : i32
    return %c0_i32, %c0_i32_0, %c0_i32_1 : i32, i32, i32
  }
  func.func @transform_4(%arg0: i32) -> (i32, i32, i32) {
    %c0_i32 = arith.constant 0 : i32
    %c0_i32_0 = arith.constant 0 : i32
    %c0_i32_1 = arith.constant 0 : i32
    %c0_i32_2 = arith.constant 0 : i32
    return %c0_i32, %c0_i32_0, %c0_i32_1 : i32, i32, i32
  }
  func.func @transform_5(%arg0: i32) -> (i32, i32, i32) {
    %c0_i32 = arith.constant 0 : i32
    %c0_i32_0 = arith.constant 0 : i32
    %c0_i32_1 = arith.constant 0 : i32
    %c0_i32_2 = arith.constant 0 : i32
    return %c0_i32, %c0_i32_0, %c0_i32_1 : i32, i32, i32
  }
  func.func @transform_6(%arg0: i32) -> (i32, i32, i32) {
    %c0_i32 = arith.constant 0 : i32
    %c0_i32_0 = arith.constant 0 : i32
    %c0_i32_1 = arith.constant 0 : i32
    %c0_i32_2 = arith.constant 0 : i32
    return %c0_i32, %c0_i32_0, %c0_i32_1 : i32, i32, i32
  }
  func.func @transform_7(%arg0: i32) -> (i32, i32, i32) {
    %c0_i32 = arith.constant 0 : i32
    %c0_i32_0 = arith.constant 0 : i32
    %c0_i32_1 = arith.constant 0 : i32
    %c0_i32_2 = arith.constant 0 : i32
    return %c0_i32, %c0_i32_0, %c0_i32_1 : i32, i32, i32
  }
  func.func @transform_8(%arg0: i32) -> (i32, i32, i32) {
    %c0_i32 = arith.constant 0 : i32
    %c0_i32_0 = arith.constant 0 : i32
    %c0_i32_1 = arith.constant 0 : i32
    %c0_i32_2 = arith.constant 0 : i32
    return %c0_i32, %c0_i32_0, %c0_i32_1 : i32, i32, i32
  }
  func.func @transform_9(%arg0: i32) -> (i32, i32, i32) {
    %c0_i32 = arith.constant 0 : i32
    %c0_i32_0 = arith.constant 0 : i32
    %c0_i32_1 = arith.constant 0 : i32
    %c0_i32_2 = arith.constant 0 : i32
    return %c0_i32, %c0_i32_0, %c0_i32_1 : i32, i32, i32
  }
  func.func @transform_10(%arg0: i32) -> (i32, i32) {
    %c0_i32 = arith.constant 0 : i32
    %c0_i32_0 = arith.constant 0 : i32
    %c0_i32_1 = arith.constant 0 : i32
    return %c0_i32, %c0_i32_0 : i32, i32
  }
  func.func @transform_11(%arg0: i32) -> (i32, i32, i32) {
    %c0_i32 = arith.constant 0 : i32
    %c0_i32_0 = arith.constant 0 : i32
    %c0_i32_1 = arith.constant 0 : i32
    return %arg0, %c0_i32, %c0_i32_0 : i32, i32, i32
  }
}

</mosaic_0001>

<llo_original>
// kernel: multi_head_attention.1
$region0: #{multi_head_attention.1}
  #allocation0 [shape = 'u32[]', space=smem, size = 0x4, offset = 0x4, fixed_abs, tag = 'smem constant byte address 0x4 - core index']
  #allocation1 [shape = 'u32[144,128]{1,0:T(1,128)}', space=vmem, size = 0x12000, scoped, tag = 'internal scratch']
  %s0 = inlined_call_operand.vmem [shape: f32[2,8,32], index: 0, kind: input, shape index: {}]
  %s1 = inlined_call_operand.vmem [shape: f32[2,8,32], index: 1, kind: input, shape index: {}]
  %s2 = inlined_call_operand.vmem [shape: f32[2,8,32], index: 2, kind: input, shape index: {}]
  %s3 = inlined_call_operand.vmem [shape: f32[8,32,4], index: 3, kind: input, shape index: {}]
  %s4 = inlined_call_operand.vmem [shape: f32[8,1,4], index: 4, kind: input, shape index: {}]
  %s5 = inlined_call_operand.vmem [shape: f32[8,32,4], index: 5, kind: input, shape index: {}]
  %s6 = inlined_call_operand.vmem [shape: f32[8,1,4], index: 6, kind: input, shape index: {}]
  %s7 = inlined_call_operand.vmem [shape: f32[8,32,4], index: 7, kind: input, shape index: {}]
  %s8 = inlined_call_operand.vmem [shape: f32[8,1,4], index: 8, kind: input, shape index: {}]
  %s9 = inlined_call_operand.vmem [shape: f32[8,4,32], index: 9, kind: input, shape index: {}]
  %s10 = inlined_call_operand.vmem [shape: f32[1,32], index: 10, kind: input, shape index: {}]
  %s11 = inlined_call_operand.hbm [shape: f32[2,8,32], index: 11, kind: output, shape index: {}]
  %s12 = sld [smem:[#allocation0]]
  $region77: #{multi_head_attention.1} parent=0
    _
  %s14 = ssub.s32 1, %s12
  %s15 = scalar_select 0, %s14, %s12
  $region1: #{multi_head_attention.1} parent=0
    #allocation2 [shape = 'u8[8192]{0}', space=vmem, size = 0x2000, scoped, tag = 'output window, operand 0']
    #allocation3 [shape = 's32[2]{0}', space=sflag, size = 0x8, scoped, tag = 'scoped memory for multi_head_attention.1']
    %16 = vsyncpa [#allocation3], 0
    %s17 = scalar_lea.sflag [#allocation3], 1
    %18 = vsyncpa %s17, 0
    loop: start=0, step=1, limit=4
    $region2: #{multi_head_attention.1} parent=1 // loop_pre_header
      _
    $region3: #{multi_head_attention.1} parent=1 // loop_header
      %s20 = sphi 0, %s24
      %p21 = scmp.ge.s32.totalorder %s20, 4
      %s30 = sphi 0, %s32
      %s33 = sphi 0, %s30
      %s34 = sphi 0, %s33
      %s50 = sphi 0, %s34
      %s56 = sphi 0, %s58
      %s59 = sphi 0, %s56
      %s60 = sphi 0, %s59
      %s76 = sphi 0, %s60
      %s82 = sphi 0, %s84
      %s85 = sphi 0, %s82
      %s86 = sphi 0, %s85
      %s102 = sphi 0, %s86
      %s106 = sphi 0, %s106
      %s108 = sphi 0, %s106
      %s109 = sphi 0, %s108
      %s123 = sphi 0, %s109
      %s127 = sphi 0, %s127
      %s129 = sphi 0, %s127
      %s130 = sphi 0, %s129
      %s144 = sphi 0, %s130
      %s148 = sphi 0, %s148
      %s150 = sphi 0, %s148
      %s151 = sphi 0, %s150
      %s165 = sphi 0, %s151
      %s169 = sphi 0, %s169
      %s171 = sphi 0, %s169
      %s172 = sphi 0, %s171
      %s186 = sphi 0, %s172
      %s190 = sphi 0, %s190
      %s192 = sphi 0, %s190
      %s193 = sphi 0, %s192
      %s207 = sphi 0, %s193
      %s211 = sphi 0, %s211
      %s213 = sphi 0, %s211
      %s214 = sphi 0, %s213
      %s228 = sphi 0, %s214
      %s232 = sphi 0, %s232
      %s234 = sphi 0, %s232
      %s235 = sphi 0, %s234
      %s249 = sphi 0, %s235
      %s253 = sphi 0, %s253
      %s255 = sphi 0, %s253
      %s256 = sphi 0, %s255
      %s270 = sphi 0, %s256
      %s276 = sphi 0, %s278
      %s279 = sphi 0, %s276
      %s280 = sphi 0, %s279
      %s296 = sphi 0, %s280
    $region4: #{multi_head_attention.1} parent=1 // loop_header_branch
      %23 = sbr.rel (%p21) target = $region8
    $region5: #{multi_head_attention.1} parent=1 // loop_body
      %s25 = ssub.s32 %s20, 1
      %s26 = ssub.s32 %s20, 2
      %s27 = sadd.s32 %s20, 1
      %s28 = ssub.s32 %s20, %s27
      %p29 = scmp.eq.s32.totalorder %s28, 0
      %s31 = sadd.s32 %s30, 1
      %s32 = scalar_select %p29, %s30, %s31
      %p35 = pneg %p29
      %p36 = scmp.eq.s32.totalorder %s20, 1
      %p37 = por %p35, %p36
      %p38 = scmp.ne.s32.totalorder %s30, %s33
      %p39 = scmp.eq.s32.totalorder %s20, 0
      %p40 = por %p38, %p39
      %p41 = scmp.ne.s32.totalorder %s30, %s33
      %p42 = scmp.eq.s32.totalorder %s25, 1
      %p43 = por %p41, %p42
      %p44 = scmp.ne.s32.totalorder %s33, %s34
      %p45 = scmp.eq.s32.totalorder %s25, 0
      %p46 = por %p44, %p45
      %p47 = scmp.ne.s32.totalorder %s33, %s34
      %p48 = scmp.eq.s32.totalorder %s26, 1
      %p49 = por %p47, %p48
      %p51 = scmp.ne.s32.totalorder %s34, %s50
      %p52 = scmp.eq.s32.totalorder %s26, 0
      %p53 = por %p51, %p52
      %s54 = ssub.s32 %s20, %s27
      %p55 = scmp.eq.s32.totalorder %s54, 0
      %s57 = sadd.s32 %s56, 1
      %s58 = scalar_select %p55, %s56, %s57
      %p61 = pneg %p55
      %p62 = scmp.eq.s32.totalorder %s20, 1
      %p63 = por %p61, %p62
      %p64 = scmp.ne.s32.totalorder %s56, %s59
      %p65 = scmp.eq.s32.totalorder %s20, 0
      %p66 = por %p64, %p65
      %p67 = scmp.ne.s32.totalorder %s56, %s59
      %p68 = scmp.eq.s32.totalorder %s25, 1
      %p69 = por %p67, %p68
      %p70 = scmp.ne.s32.totalorder %s59, %s60
      %p71 = scmp.eq.s32.totalorder %s25, 0
      %p72 = por %p70, %p71
      %p73 = scmp.ne.s32.totalorder %s59, %s60
      %p74 = scmp.eq.s32.totalorder %s26, 1
      %p75 = por %p73, %p74
      %p77 = scmp.ne.s32.totalorder %s60, %s76
      %p78 = scmp.eq.s32.totalorder %s26, 0
      %p79 = por %p77, %p78
      %s80 = ssub.s32 %s20, %s27
      %p81 = scmp.eq.s32.totalorder %s80, 0
      %s83 = sadd.s32 %s82, 1
      %s84 = scalar_select %p81, %s82, %s83
      %p87 = pneg %p81
      %p88 = scmp.eq.s32.totalorder %s20, 1
      %p89 = por %p87, %p88
      %p90 = scmp.ne.s32.totalorder %s82, %s85
      %p91 = scmp.eq.s32.totalorder %s20, 0
      %p92 = por %p90, %p91
      %p93 = scmp.ne.s32.totalorder %s82, %s85
      %p94 = scmp.eq.s32.totalorder %s25, 1
      %p95 = por %p93, %p94
      %p96 = scmp.ne.s32.totalorder %s85, %s86
      %p97 = scmp.eq.s32.totalorder %s25, 0
      %p98 = por %p96, %p97
      %p99 = scmp.ne.s32.totalorder %s85, %s86
      %p100 = scmp.eq.s32.totalorder %s26, 1
      %p101 = por %p99, %p100
      %p103 = scmp.ne.s32.totalorder %s86, %s102
      %p104 = scmp.eq.s32.totalorder %s26, 0
      %p105 = por %p103, %p104
      %s107 = sadd.s32 %s106, 1
      %p110 = scmp.eq.s32.totalorder %s20, 1
      %p111 = scmp.ne.s32.totalorder %s106, %s108
      %p112 = scmp.eq.s32.totalorder %s20, 0
      %p113 = por %p111, %p112
      %p114 = scmp.ne.s32.totalorder %s106, %s108
      %p115 = scmp.eq.s32.totalorder %s25, 1
      %p116 = por %p114, %p115
      %p117 = scmp.ne.s32.totalorder %s108, %s109
      %p118 = scmp.eq.s32.totalorder %s25, 0
      %p119 = por %p117, %p118
      %p120 = scmp.ne.s32.totalorder %s108, %s109
      %p121 = scmp.eq.s32.totalorder %s26, 1
      %p122 = por %p120, %p121
      %p124 = scmp.ne.s32.totalorder %s109, %s123
      %p125 = scmp.eq.s32.totalorder %s26, 0
      %p126 = por %p124, %p125
      %s128 = sadd.s32 %s127, 1
      %p131 = scmp.eq.s32.totalorder %s20, 1
      %p132 = scmp.ne.s32.totalorder %s127, %s129
      %p133 = scmp.eq.s32.totalorder %s20, 0
      %p134 = por %p132, %p133
      %p135 = scmp.ne.s32.totalorder %s127, %s129
      %p136 = scmp.eq.s32.totalorder %s25, 1
      %p137 = por %p135, %p136
      %p138 = scmp.ne.s32.totalorder %s129, %s130
      %p139 = scmp.eq.s32.totalorder %s25, 0
      %p140 = por %p138, %p139
      %p141 = scmp.ne.s32.totalorder %s129, %s130
      %p142 = scmp.eq.s32.totalorder %s26, 1
      %p143 = por %p141, %p142
      %p145 = scmp.ne.s32.totalorder %s130, %s144
      %p146 = scmp.eq.s32.totalorder %s26, 0
      %p147 = por %p145, %p146
      %s149 = sadd.s32 %s148, 1
      %p152 = scmp.eq.s32.totalorder %s20, 1
      %p153 = scmp.ne.s32.totalorder %s148, %s150
      %p154 = scmp.eq.s32.totalorder %s20, 0
      %p155 = por %p153, %p154
      %p156 = scmp.ne.s32.totalorder %s148, %s150
      %p157 = scmp.eq.s32.totalorder %s25, 1
      %p158 = por %p156, %p157
      %p159 = scmp.ne.s32.totalorder %s150, %s151
      %p160 = scmp.eq.s32.totalorder %s25, 0
      %p161 = por %p159, %p160
      %p162 = scmp.ne.s32.totalorder %s150, %s151
      %p163 = scmp.eq.s32.totalorder %s26, 1
      %p164 = por %p162, %p163
      %p166 = scmp.ne.s32.totalorder %s151, %s165
      %p167 = scmp.eq.s32.totalorder %s26, 0
      %p168 = por %p166, %p167
      %s170 = sadd.s32 %s169, 1
      %p173 = scmp.eq.s32.totalorder %s20, 1
      %p174 = scmp.ne.s32.totalorder %s169, %s171
      %p175 = scmp.eq.s32.totalorder %s20, 0
      %p176 = por %p174, %p175
      %p177 = scmp.ne.s32.totalorder %s169, %s171
      %p178 = scmp.eq.s32.totalorder %s25, 1
      %p179 = por %p177, %p178
      %p180 = scmp.ne.s32.totalorder %s171, %s172
      %p181 = scmp.eq.s32.totalorder %s25, 0
      %p182 = por %p180, %p181
      %p183 = scmp.ne.s32.totalorder %s171, %s172
      %p184 = scmp.eq.s32.totalorder %s26, 1
      %p185 = por %p183, %p184
      %p187 = scmp.ne.s32.totalorder %s172, %s186
      %p188 = scmp.eq.s32.totalorder %s26, 0
      %p189 = por %p187, %p188
      %s191 = sadd.s32 %s190, 1
      %p194 = scmp.eq.s32.totalorder %s20, 1
      %p195 = scmp.ne.s32.totalorder %s190, %s192
      %p196 = scmp.eq.s32.totalorder %s20, 0
      %p197 = por %p195, %p196
      %p198 = scmp.ne.s32.totalorder %s190, %s192
      %p199 = scmp.eq.s32.totalorder %s25, 1
      %p200 = por %p198, %p199
      %p201 = scmp.ne.s32.totalorder %s192, %s193
      %p202 = scmp.eq.s32.totalorder %s25, 0
      %p203 = por %p201, %p202
      %p204 = scmp.ne.s32.totalorder %s192, %s193
      %p205 = scmp.eq.s32.totalorder %s26, 1
      %p206 = por %p204, %p205
      %p208 = scmp.ne.s32.totalorder %s193, %s207
      %p209 = scmp.eq.s32.totalorder %s26, 0
      %p210 = por %p208, %p209
      %s212 = sadd.s32 %s211, 1
      %p215 = scmp.eq.s32.totalorder %s20, 1
      %p216 = scmp.ne.s32.totalorder %s211, %s213
      %p217 = scmp.eq.s32.totalorder %s20, 0
      %p218 = por %p216, %p217
      %p219 = scmp.ne.s32.totalorder %s211, %s213
      %p220 = scmp.eq.s32.totalorder %s25, 1
      %p221 = por %p219, %p220
      %p222 = scmp.ne.s32.totalorder %s213, %s214
      %p223 = scmp.eq.s32.totalorder %s25, 0
      %p224 = por %p222, %p223
      %p225 = scmp.ne.s32.totalorder %s213, %s214
      %p226 = scmp.eq.s32.totalorder %s26, 1
      %p227 = por %p225, %p226
      %p229 = scmp.ne.s32.totalorder %s214, %s228
      %p230 = scmp.eq.s32.totalorder %s26, 0
      %p231 = por %p229, %p230
      %s233 = sadd.s32 %s232, 1
      %p236 = scmp.eq.s32.totalorder %s20, 1
      %p237 = scmp.ne.s32.totalorder %s232, %s234
      %p238 = scmp.eq.s32.totalorder %s20, 0
      %p239 = por %p237, %p238
      %p240 = scmp.ne.s32.totalorder %s232, %s234
      %p241 = scmp.eq.s32.totalorder %s25, 1
      %p242 = por %p240, %p241
      %p243 = scmp.ne.s32.totalorder %s234, %s235
      %p244 = scmp.eq.s32.totalorder %s25, 0
      %p245 = por %p243, %p244
      %p246 = scmp.ne.s32.totalorder %s234, %s235
      %p247 = scmp.eq.s32.totalorder %s26, 1
      %p248 = por %p246, %p247
      %p250 = scmp.ne.s32.totalorder %s235, %s249
      %p251 = scmp.eq.s32.totalorder %s26, 0
      %p252 = por %p250, %p251
      %s254 = sadd.s32 %s253, 1
      %p257 = scmp.eq.s32.totalorder %s20, 1
      %p258 = scmp.ne.s32.totalorder %s253, %s255
      %p259 = scmp.eq.s32.totalorder %s20, 0
      %p260 = por %p258, %p259
      %p261 = scmp.ne.s32.totalorder %s253, %s255
      %p262 = scmp.eq.s32.totalorder %s25, 1
      %p263 = por %p261, %p262
      %p264 = scmp.ne.s32.totalorder %s255, %s256
      %p265 = scmp.eq.s32.totalorder %s25, 0
      %p266 = por %p264, %p265
      %p267 = scmp.ne.s32.totalorder %s255, %s256
      %p268 = scmp.eq.s32.totalorder %s26, 1
      %p269 = por %p267, %p268
      %p271 = scmp.ne.s32.totalorder %s256, %s270
      %p272 = scmp.eq.s32.totalorder %s26, 0
      %p273 = por %p271, %p272
      %s274 = ssub.s32 %s20, %s27
      %p275 = scmp.eq.s32.totalorder %s274, 0
      %s277 = sadd.s32 %s276, 1
      %s278 = scalar_select %p275, %s276, %s277
      %p281 = pneg %p275
      %p282 = scmp.eq.s32.totalorder %s20, 1
      %p283 = por %p281, %p282
      %p284 = scmp.ne.s32.totalorder %s276, %s279
      %p285 = scmp.eq.s32.totalorder %s20, 0
      %p286 = por %p284, %p285
      %p287 = scmp.ne.s32.totalorder %s276, %s279
      %p288 = scmp.eq.s32.totalorder %s25, 1
      %p289 = por %p287, %p288
      %p290 = scmp.ne.s32.totalorder %s279, %s280
      %p291 = scmp.eq.s32.totalorder %s25, 0
      %p292 = por %p290, %p291
      %p293 = scmp.ne.s32.totalorder %s279, %s280
      %p294 = scmp.eq.s32.totalorder %s26, 1
      %p295 = por %p293, %p294
      %p297 = scmp.ne.s32.totalorder %s280, %s296
      %p298 = scmp.eq.s32.totalorder %s26, 0
      %p299 = por %p297, %p298
      %p300 = scmp.le.s32.totalorder 1, %s20
      %p301 = scmp.lt.s32.totalorder %s20, 3
      %p302 = pnand %p300, %p301
      %p303 = pneg %p302
      // Predicated region
      $region9: #{multi_head_attention.1} parent=5 // pred_check
        _
      $region10: #{multi_head_attention.1} parent=5 // pred_check_branch
        %305 = sbr.rel (%p302) target = $region12
      $region11: #{multi_head_attention.1} parent=5 // pred_region
        %s306 = ssub.s32 %s20, 1
        // Predicated region
        $region13: #{multi_head_attention.1} parent=11 // pred_check
          %p307 = pneg %p119
        $region14: #{multi_head_attention.1} parent=11 // pred_check_branch
          %309 = sbr.rel (%p307) target = $region16
        $region15: #{multi_head_attention.1} parent=11 // pred_region
          _
        $region16: #{multi_head_attention.1} parent=11 // pred_fallthru
          _
        // Predicated region
        $region17: #{multi_head_attention.1} parent=11 // pred_check
          %p310 = pneg %p140
        $region18: #{multi_head_attention.1} parent=11 // pred_check_branch
          %312 = sbr.rel (%p310) target = $region20
        $region19: #{multi_head_attention.1} parent=11 // pred_region
          _
        $region20: #{multi_head_attention.1} parent=11 // pred_fallthru
          _
        // Predicated region
        $region21: #{multi_head_attention.1} parent=11 // pred_check
          %p313 = pneg %p161
        $region22: #{multi_head_attention.1} parent=11 // pred_check_branch
          %315 = sbr.rel (%p313) target = $region24
        $region23: #{multi_head_attention.1} parent=11 // pred_region
          _
        $region24: #{multi_head_attention.1} parent=11 // pred_fallthru
          _
        // Predicated region
        $region25: #{multi_head_attention.1} parent=11 // pred_check
          %p316 = pneg %p182
        $region26: #{multi_head_attention.1} parent=11 // pred_check_branch
          %318 = sbr.rel (%p316) target = $region28
        $region27: #{multi_head_attention.1} parent=11 // pred_region
          _
        $region28: #{multi_head_attention.1} parent=11 // pred_fallthru
          _
        // Predicated region
        $region29: #{multi_head_attention.1} parent=11 // pred_check
          %p319 = pneg %p203
        $region30: #{multi_head_attention.1} parent=11 // pred_check_branch
          %321 = sbr.rel (%p319) target = $region32
        $region31: #{multi_head_attention.1} parent=11 // pred_region
          _
        $region32: #{multi_head_attention.1} parent=11 // pred_fallthru
          _
        // Predicated region
        $region33: #{multi_head_attention.1} parent=11 // pred_check
          %p322 = pneg %p224
        $region34: #{multi_head_attention.1} parent=11 // pred_check_branch
          %324 = sbr.rel (%p322) target = $region36
        $region35: #{multi_head_attention.1} parent=11 // pred_region
          _
        $region36: #{multi_head_attention.1} parent=11 // pred_fallthru
          _
        // Predicated region
        $region37: #{multi_head_attention.1} parent=11 // pred_check
          %p325 = pneg %p245
        $region38: #{multi_head_attention.1} parent=11 // pred_check_branch
          %327 = sbr.rel (%p325) target = $region40
        $region39: #{multi_head_attention.1} parent=11 // pred_region
          _
        $region40: #{multi_head_attention.1} parent=11 // pred_fallthru
          _
        // Predicated region
        $region41: #{multi_head_attention.1} parent=11 // pred_check
          %p328 = pneg %p266
        $region42: #{multi_head_attention.1} parent=11 // pred_check_branch
          %330 = sbr.rel (%p328) target = $region44
        $region43: #{multi_head_attention.1} parent=11 // pred_region
          _
        $region44: #{multi_head_attention.1} parent=11 // pred_fallthru
          _
      $region12: #{multi_head_attention.1} parent=5 // pred_fallthru
        _
      %p331 = scmp.lt.s32.totalorder %s20, 2
      // Predicated region
      $region45: #{multi_head_attention.1} parent=5 // pred_check
        %p332 = pneg %p331
      $region46: #{multi_head_attention.1} parent=5 // pred_check_branch
        %334 = sbr.rel (%p332) target = $region48
      $region47: #{multi_head_attention.1} parent=5 // pred_region
        // Predicated region
        $region49: #{multi_head_attention.1} parent=47 // pred_check
          %p335 = pneg %p40
        $region50: #{multi_head_attention.1} parent=47 // pred_check_branch
          %337 = sbr.rel (%p335) target = $region52
        $region51: #{multi_head_attention.1} parent=47 // pred_region
          %p338 = scmp.lt.s32.totalorder %s20, 1
          %s339 = scalar_select %p338, %s20, 1
          %s340 = smul.addr %s339, 8
          %s341 = scalar_lea.vmem %s0, %s340
        $region52: #{multi_head_attention.1} parent=47 // pred_fallthru
          _
        // Predicated region
        $region53: #{multi_head_attention.1} parent=47 // pred_check
          %p342 = pneg %p66
        $region54: #{multi_head_attention.1} parent=47 // pred_check_branch
          %344 = sbr.rel (%p342) target = $region56
        $region55: #{multi_head_attention.1} parent=47 // pred_region
          %p345 = scmp.lt.s32.totalorder %s20, 1
          %s346 = scalar_select %p345, %s20, 1
          %s347 = smul.addr %s346, 8
          %s348 = scalar_lea.vmem %s1, %s347
        $region56: #{multi_head_attention.1} parent=47 // pred_fallthru
          _
        // Predicated region
        $region57: #{multi_head_attention.1} parent=47 // pred_check
          %p349 = pneg %p92
        $region58: #{multi_head_attention.1} parent=47 // pred_check_branch
          %351 = sbr.rel (%p349) target = $region60
        $region59: #{multi_head_attention.1} parent=47 // pred_region
          %p352 = scmp.lt.s32.totalorder %s20, 1
          %s353 = scalar_select %p352, %s20, 1
          %s354 = smul.addr %s353, 8
          %s355 = scalar_lea.vmem %s2, %s354
        $region60: #{multi_head_attention.1} parent=47 // pred_fallthru
          _
      $region48: #{multi_head_attention.1} parent=5 // pred_fallthru
        _
      %p356 = scmp.le.s32.totalorder 1, %s20
      %p357 = scmp.lt.s32.totalorder %s20, 3
      %p358 = pnand %p356, %p357
      %p359 = pneg %p358
      // Predicated region
      $region61: #{multi_head_attention.1} parent=5 // pred_check
        _
      $region62: #{multi_head_attention.1} parent=5 // pred_check_branch
        %361 = sbr.rel (%p358) target = $region64
      $region63: #{multi_head_attention.1} parent=5 // pred_region
        %s362 = ssub.s32 %s20, 1
        %p363 = scmp.lt.s32.totalorder %s25, 1
        %s364 = scalar_select %p363, %s25, 1
        %s365 = smul.addr %s364, 8
        %s366 = scalar_lea.vmem %s0, %s365
        %p367 = pneg %p46
        %p368 = pneg %p43
        %p369 = scmp.lt.s32.totalorder %s25, 1
        %s370 = scalar_select %p369, %s25, 1
        %s371 = smul.addr %s370, 8
        %s372 = scalar_lea.vmem %s1, %s371
        %p373 = pneg %p72
        %p374 = pneg %p69
        %p375 = scmp.lt.s32.totalorder %s25, 1
        %s376 = scalar_select %p375, %s25, 1
        %s377 = smul.addr %s376, 8
        %s378 = scalar_lea.vmem %s2, %s377
        %p379 = pneg %p98
        %p380 = pneg %p95
        %p381 = pneg %p119
        %p382 = pneg %p116
        %p383 = pneg %p140
        %p384 = pneg %p137
        %p385 = pneg %p161
        %p386 = pneg %p158
        %p387 = pneg %p182
        %p388 = pneg %p179
        %p389 = pneg %p203
        %p390 = pneg %p200
        %p391 = pneg %p224
        %p392 = pneg %p221
        %p393 = pneg %p245
        %p394 = pneg %p242
        %p395 = pneg %p266
        %p396 = pneg %p263
        %p397 = pneg %p292
        %p398 = pneg %p289
        %s399 = sand.u32 %s279, 1
        %s400 = scalar_lea.sflag [#allocation3], %s399
        %s401 = sand.u32 %s279, 1
        %s402 = smul.addr %s401, 8
        %s403 = scalar_lea.vmem [#allocation2], %s402
        %p404 = scmp.lt.s32.totalorder %s25, 1
        %s405 = scalar_select %p404, %s25, 1
        %s406 = smul.addr %s405, 8
        %s407 = scalar_lea.vmem %s0, %s406
        %p408 = scmp.lt.s32.totalorder %s25, 1
        %s409 = scalar_select %p408, %s25, 1
        %s410 = smul.addr %s409, 8
        %s411 = scalar_lea.vmem %s1, %s410
        %p412 = scmp.lt.s32.totalorder %s25, 1
        %s413 = scalar_select %p412, %s25, 1
        %s414 = smul.addr %s413, 8
        %s415 = scalar_lea.vmem %s2, %s414
        %v416 = vld [vmem:[%s407] sm:$0xff]
        %v417 = vld [vmem:[%s411] sm:$0xff]
        %v418 = vld [vmem:[%s415] sm:$0xff]
        %v419 = vld [vmem:[%s3] sm:$0xff]
        %v420 = vld [vmem:[%s3 + $0x8] sm:$0xff]
        %v421 = vld [vmem:[%s3 + $0x10] sm:$0xff]
        %v422 = vld [vmem:[%s3 + $0x18] sm:$0xff]
        %v423 = vld [vmem:[%s3 + $0x20] sm:$0xff]
        %v424 = vld [vmem:[%s3 + $0x28] sm:$0xff]
        %v425 = vld [vmem:[%s3 + $0x30] sm:$0xff]
        %v426 = vld [vmem:[%s3 + $0x38] sm:$0xff]
        %v427 = vld [vmem:[%s3 + $0x40] sm:$0xff]
        %v428 = vld [vmem:[%s3 + $0x48] sm:$0xff]
        %v429 = vld [vmem:[%s3 + $0x50] sm:$0xff]
        %v430 = vld [vmem:[%s3 + $0x58] sm:$0xff]
        %v431 = vld [vmem:[%s3 + $0x60] sm:$0xff]
        %v432 = vld [vmem:[%s3 + $0x68] sm:$0xff]
        %v433 = vld [vmem:[%s3 + $0x70] sm:$0xff]
        %v434 = vld [vmem:[%s3 + $0x78] sm:$0xff]
        %v435 = vld [vmem:[%s3 + $0x80] sm:$0xff]
        %v436 = vld [vmem:[%s3 + $0x88] sm:$0xff]
        %v437 = vld [vmem:[%s3 + $0x90] sm:$0xff]
        %v438 = vld [vmem:[%s3 + $0x98] sm:$0xff]
        %v439 = vld [vmem:[%s3 + $0xa0] sm:$0xff]
        %v440 = vld [vmem:[%s3 + $0xa8] sm:$0xff]
        %v441 = vld [vmem:[%s3 + $0xb0] sm:$0xff]
        %v442 = vld [vmem:[%s3 + $0xb8] sm:$0xff]
        %v443 = vld [vmem:[%s3 + $0xc0] sm:$0xff]
        %v444 = vld [vmem:[%s3 + $0xc8] sm:$0xff]
        %v445 = vld [vmem:[%s3 + $0xd0] sm:$0xff]
        %v446 = vld [vmem:[%s3 + $0xd8] sm:$0xff]
        %v447 = vld [vmem:[%s3 + $0xe0] sm:$0xff]
        %v448 = vld [vmem:[%s3 + $0xe8] sm:$0xff]
        %v449 = vld [vmem:[%s3 + $0xf0] sm:$0xff]
        %v450 = vld [vmem:[%s3 + $0xf8] sm:$0xff]
        %v451 = vld [vmem:[%s4] sm:$0x1]
        %v452 = vld [vmem:[%s4 + $0x1] sm:$0x1]
        %v453 = vld [vmem:[%s4 + $0x2] sm:$0x1]
        %v454 = vld [vmem:[%s4 + $0x3] sm:$0x1]
        %v455 = vld [vmem:[%s4 + $0x4] sm:$0x1]
        %v456 = vld [vmem:[%s4 + $0x5] sm:$0x1]
        %v457 = vld [vmem:[%s4 + $0x6] sm:$0x1]
        %v458 = vld [vmem:[%s4 + $0x7] sm:$0x1]
        %v467 = vlaneseq
        %v468 = vshrl.u32 %v467, 7
        %v469 = vsub.s32 0, %v468
        %v470 = vrot.slane %v451, %v469
        %v471 = vlaneseq
        %v472 = vshrl.u32 %v471, 7
        %v473 = vsub.s32 0, %v472
        %v474 = vrot.slane %v452, %v473
        %v475 = vlaneseq
        %v476 = vshrl.u32 %v475, 7
        %v477 = vsub.s32 0, %v476
        %v478 = vrot.slane %v453, %v477
        %v479 = vlaneseq
        %v480 = vshrl.u32 %v479, 7
        %v481 = vsub.s32 0, %v480
        %v482 = vrot.slane %v454, %v481
        %v483 = vlaneseq
        %v484 = vshrl.u32 %v483, 7
        %v485 = vsub.s32 0, %v484
        %v486 = vrot.slane %v455, %v485
        %v487 = vlaneseq
        %v488 = vshrl.u32 %v487, 7
        %v489 = vsub.s32 0, %v488
        %v490 = vrot.slane %v456, %v489
        %v491 = vlaneseq
        %v492 = vshrl.u32 %v491, 7
        %v493 = vsub.s32 0, %v492
        %v494 = vrot.slane %v457, %v493
        %v495 = vlaneseq
        %v496 = vshrl.u32 %v495, 7
        %v497 = vsub.s32 0, %v496
        %v498 = vrot.slane %v458, %v497
        %vm507 = vcmask 261120
        %v509 = vsel %vm507, %v416, 0
        %511 = vmatprep.subr.mxu0 0.0
        %512 = vmatpush1.msra.mxu0 %v419
        %513 = vmatprep.subr.mxu0 0.0
        %514 = vmatpush1.msra.mxu0 %v420
        %515 = vmatprep.subr.mxu0 0.0
        %516 = vmatpush1.msra.mxu0 %v421
        %517 = vmatprep.subr.mxu0 0.0
        %518 = vmatpush1.msra.mxu0 %v422
        %519 = vmatprep.subr.mxu0 0.0
        %520 = vmatpush1.msra.mxu0 0.0
        %521 = vmatprep.subr.mxu0 0.0
        %522 = vmatpush1.msra.mxu0 0.0
        %523 = vmatprep.subr.mxu0 0.0
        %524 = vmatpush1.msra.mxu0 0.0
        %525 = vmatprep.subr.mxu0 0.0
        %526 = vmatpush1.msra.mxu0 0.0
        %527 = vmatprep.subr.mxu0 0.0
        %528 = vmatpush1.msra.mxu0 0.0
        %529 = vmatprep.subr.mxu0 0.0
        %530 = vmatpush1.msra.mxu0 0.0
        %531 = vmatprep.subr.mxu0 0.0
        %532 = vmatpush1.msra.mxu0 0.0
        %533 = vmatprep.subr.mxu0 0.0
        %534 = vmatpush1.msra.mxu0 0.0
        %535 = vmatprep.subr.mxu0 0.0
        %536 = vmatpush1.msra.mxu0 0.0
        %537 = vmatprep.subr.mxu0 0.0
        %538 = vmatpush1.msra.mxu0 0.0
        %539 = vmatprep.subr.mxu0 0.0
        %540 = vmatpush1.msra.mxu0 0.0
        %541 = vmatprep.subr.mxu0 0.0
        %542 = vmatpush1.msra.mxu0 0.0
        %543 = vmatprep.subr.mxu0 0.0
        %544 = vmatpush1.msra.mxu0 0.0
        %545 = vmatprep.subr.mxu0 0.0
        %546 = vmatpush1.msra.mxu0 0.0
        %547 = vmatprep.subr.mxu0 0.0
        %548 = vmatpush1.msra.mxu0 0.0
        %549 = vmatprep.subr.mxu0 0.0
        %550 = vmatpush1.msra.mxu0 0.0
        %551 = vmatprep.subr.mxu0 0.0
        %552 = vmatpush1.msra.mxu0 0.0
        %553 = vmatprep.subr.mxu0 0.0
        %554 = vmatpush1.msra.mxu0 0.0
        %555 = vmatprep.subr.mxu0 0.0
        %556 = vmatpush1.msra.mxu0 0.0
        %557 = vmatprep.subr.mxu0 0.0
        %558 = vmatpush1.msra.mxu0 0.0
        %559 = vmatprep.subr.mxu0 0.0
        %560 = vmatpush1.msra.mxu0 0.0
        %561 = vmatprep.subr.mxu0 0.0
        %562 = vmatpush1.msra.mxu0 0.0
        %563 = vmatprep.subr.mxu0 0.0
        %564 = vmatpush1.msra.mxu0 0.0
        %565 = vmatprep.subr.mxu0 0.0
        %566 = vmatpush1.msra.mxu0 0.0
        %567 = vmatprep.subr.mxu0 0.0
        %568 = vmatpush1.msra.mxu0 0.0
        %569 = vmatprep.subr.mxu0 0.0
        %570 = vmatpush1.msra.mxu0 0.0
        %571 = vmatprep.subr.mxu0 0.0
        %572 = vmatpush1.msra.mxu0 0.0
        %573 = vmatprep.subr.mxu0 0.0
        %574 = vmatpush1.msra.mxu0 0.0
        %575 = vmatprep.mubr.f32.mxu0 0.0
        %576 = vmatmul.mubr.f32.gmra.mrb[0].mxu0 %v509
        %v577 = vpop.f32.mrb[0].mxu0
        %v578 = vadd.f32 %v470, %v577
        %v579 = vpop.f32.mrb[0].mxu0
        %580 = vdwg.mxu0
        %581 = vmatprep.subr.mxu0 0.0
        %582 = vmatpush1.msra.mxu0 %v423
        %583 = vmatprep.subr.mxu0 0.0
        %584 = vmatpush1.msra.mxu0 %v424
        %585 = vmatprep.subr.mxu0 0.0
        %586 = vmatpush1.msra.mxu0 %v425
        %587 = vmatprep.subr.mxu0 0.0
        %588 = vmatpush1.msra.mxu0 %v426
        %589 = vmatprep.subr.mxu0 0.0
        %590 = vmatpush1.msra.mxu0 0.0
        %591 = vmatprep.subr.mxu0 0.0
        %592 = vmatpush1.msra.mxu0 0.0
        %593 = vmatprep.subr.mxu0 0.0
        %594 = vmatpush1.msra.mxu0 0.0
        %595 = vmatprep.subr.mxu0 0.0
        %596 = vmatpush1.msra.mxu0 0.0
        %597 = vmatprep.subr.mxu0 0.0
        %598 = vmatpush1.msra.mxu0 0.0
        %599 = vmatprep.subr.mxu0 0.0
        %600 = vmatpush1.msra.mxu0 0.0
        %601 = vmatprep.subr.mxu0 0.0
        %602 = vmatpush1.msra.mxu0 0.0
        %603 = vmatprep.subr.mxu0 0.0
        %604 = vmatpush1.msra.mxu0 0.0
        %605 = vmatprep.subr.mxu0 0.0
        %606 = vmatpush1.msra.mxu0 0.0
        %607 = vmatprep.subr.mxu0 0.0
        %608 = vmatpush1.msra.mxu0 0.0
        %609 = vmatprep.subr.mxu0 0.0
        %610 = vmatpush1.msra.mxu0 0.0
        %611 = vmatprep.subr.mxu0 0.0
        %612 = vmatpush1.msra.mxu0 0.0
        %613 = vmatprep.subr.mxu0 0.0
        %614 = vmatpush1.msra.mxu0 0.0
        %615 = vmatprep.subr.mxu0 0.0
        %616 = vmatpush1.msra.mxu0 0.0
        %617 = vmatprep.subr.mxu0 0.0
        %618 = vmatpush1.msra.mxu0 0.0
        %619 = vmatprep.subr.mxu0 0.0
        %620 = vmatpush1.msra.mxu0 0.0
        %621 = vmatprep.subr.mxu0 0.0
        %622 = vmatpush1.msra.mxu0 0.0
        %623 = vmatprep.subr.mxu0 0.0
        %624 = vmatpush1.msra.mxu0 0.0
        %625 = vmatprep.subr.mxu0 0.0
        %626 = vmatpush1.msra.mxu0 0.0
        %627 = vmatprep.subr.mxu0 0.0
        %628 = vmatpush1.msra.mxu0 0.0
        %629 = vmatprep.subr.mxu0 0.0
        %630 = vmatpush1.msra.mxu0 0.0
        %631 = vmatprep.subr.mxu0 0.0
        %632 = vmatpush1.msra.mxu0 0.0
        %633 = vmatprep.subr.mxu0 0.0
        %634 = vmatpush1.msra.mxu0 0.0
        %635 = vmatprep.subr.mxu0 0.0
        %636 = vmatpush1.msra.mxu0 0.0
        %637 = vmatprep.subr.mxu0 0.0
        %638 = vmatpush1.msra.mxu0 0.0
        %639 = vmatprep.subr.mxu0 0.0
        %640 = vmatpush1.msra.mxu0 0.0
        %641 = vmatprep.subr.mxu0 0.0
        %642 = vmatpush1.msra.mxu0 0.0
        %643 = vmatprep.subr.mxu0 0.0
        %644 = vmatpush1.msra.mxu0 0.0
        %645 = vmatprep.mubr.f32.mxu0 0.0
        %646 = vmatmul.mubr.f32.gmra.mrb[0].mxu0 %v509
        %v647 = vpop.f32.mrb[0].mxu0
        %v648 = vadd.f32 %v474, %v647
        %v649 = vpop.f32.mrb[0].mxu0
        %650 = vdwg.mxu0
        %651 = vmatprep.subr.mxu0 0.0
        %652 = vmatpush1.msra.mxu0 %v427
        %653 = vmatprep.subr.mxu0 0.0
        %654 = vmatpush1.msra.mxu0 %v428
        %655 = vmatprep.subr.mxu0 0.0
        %656 = vmatpush1.msra.mxu0 %v429
        %657 = vmatprep.subr.mxu0 0.0
        %658 = vmatpush1.msra.mxu0 %v430
        %659 = vmatprep.subr.mxu0 0.0
        %660 = vmatpush1.msra.mxu0 0.0
        %661 = vmatprep.subr.mxu0 0.0
        %662 = vmatpush1.msra.mxu0 0.0
        %663 = vmatprep.subr.mxu0 0.0
        %664 = vmatpush1.msra.mxu0 0.0
        %665 = vmatprep.subr.mxu0 0.0
        %666 = vmatpush1.msra.mxu0 0.0
        %667 = vmatprep.subr.mxu0 0.0
        %668 = vmatpush1.msra.mxu0 0.0
        %669 = vmatprep.subr.mxu0 0.0
        %670 = vmatpush1.msra.mxu0 0.0
        %671 = vmatprep.subr.mxu0 0.0
        %672 = vmatpush1.msra.mxu0 0.0
        %673 = vmatprep.subr.mxu0 0.0
        %674 = vmatpush1.msra.mxu0 0.0
        %675 = vmatprep.subr.mxu0 0.0
        %676 = vmatpush1.msra.mxu0 0.0
        %677 = vmatprep.subr.mxu0 0.0
        %678 = vmatpush1.msra.mxu0 0.0
        %679 = vmatprep.subr.mxu0 0.0
        %680 = vmatpush1.msra.mxu0 0.0
        %681 = vmatprep.subr.mxu0 0.0
        %682 = vmatpush1.msra.mxu0 0.0
        %683 = vmatprep.subr.mxu0 0.0
        %684 = vmatpush1.msra.mxu0 0.0
        %685 = vmatprep.subr.mxu0 0.0
        %686 = vmatpush1.msra.mxu0 0.0
        %687 = vmatprep.subr.mxu0 0.0
        %688 = vmatpush1.msra.mxu0 0.0
        %689 = vmatprep.subr.mxu0 0.0
        %690 = vmatpush1.msra.mxu0 0.0
        %691 = vmatprep.subr.mxu0 0.0
        %692 = vmatpush1.msra.mxu0 0.0
        %693 = vmatprep.subr.mxu0 0.0
        %694 = vmatpush1.msra.mxu0 0.0
        %695 = vmatprep.subr.mxu0 0.0
        %696 = vmatpush1.msra.mxu0 0.0
        %697 = vmatprep.subr.mxu0 0.0
        %698 = vmatpush1.msra.mxu0 0.0
        %699 = vmatprep.subr.mxu0 0.0
        %700 = vmatpush1.msra.mxu0 0.0
        %701 = vmatprep.subr.mxu0 0.0
        %702 = vmatpush1.msra.mxu0 0.0
        %703 = vmatprep.subr.mxu0 0.0
        %704 = vmatpush1.msra.mxu0 0.0
        %705 = vmatprep.subr.mxu0 0.0
        %706 = vmatpush1.msra.mxu0 0.0
        %707 = vmatprep.subr.mxu0 0.0
        %708 = vmatpush1.msra.mxu0 0.0
        %709 = vmatprep.subr.mxu0 0.0
        %710 = vmatpush1.msra.mxu0 0.0
        %711 = vmatprep.subr.mxu0 0.0
        %712 = vmatpush1.msra.mxu0 0.0
        %713 = vmatprep.subr.mxu0 0.0
        %714 = vmatpush1.msra.mxu0 0.0
        %715 = vmatprep.mubr.f32.mxu0 0.0
        %716 = vmatmul.mubr.f32.gmra.mrb[0].mxu0 %v509
        %v717 = vpop.f32.mrb[0].mxu0
        %v718 = vadd.f32 %v478, %v717
        %v719 = vpop.f32.mrb[0].mxu0
        %720 = vdwg.mxu0
        %721 = vmatprep.subr.mxu0 0.0
        %722 = vmatpush1.msra.mxu0 %v431
        %723 = vmatprep.subr.mxu0 0.0
        %724 = vmatpush1.msra.mxu0 %v432
        %725 = vmatprep.subr.mxu0 0.0
        %726 = vmatpush1.msra.mxu0 %v433
        %727 = vmatprep.subr.mxu0 0.0
        %728 = vmatpush1.msra.mxu0 %v434
        %729 = vmatprep.subr.mxu0 0.0
        %730 = vmatpush1.msra.mxu0 0.0
        %731 = vmatprep.subr.mxu0 0.0
        %732 = vmatpush1.msra.mxu0 0.0
        %733 = vmatprep.subr.mxu0 0.0
        %734 = vmatpush1.msra.mxu0 0.0
        %735 = vmatprep.subr.mxu0 0.0
        %736 = vmatpush1.msra.mxu0 0.0
        %737 = vmatprep.subr.mxu0 0.0
        %738 = vmatpush1.msra.mxu0 0.0
        %739 = vmatprep.subr.mxu0 0.0
        %740 = vmatpush1.msra.mxu0 0.0
        %741 = vmatprep.subr.mxu0 0.0
        %742 = vmatpush1.msra.mxu0 0.0
        %743 = vmatprep.subr.mxu0 0.0
        %744 = vmatpush1.msra.mxu0 0.0
        %745 = vmatprep.subr.mxu0 0.0
        %746 = vmatpush1.msra.mxu0 0.0
        %747 = vmatprep.subr.mxu0 0.0
        %748 = vmatpush1.msra.mxu0 0.0
        %749 = vmatprep.subr.mxu0 0.0
        %750 = vmatpush1.msra.mxu0 0.0
        %751 = vmatprep.subr.mxu0 0.0
        %752 = vmatpush1.msra.mxu0 0.0
        %753 = vmatprep.subr.mxu0 0.0
        %754 = vmatpush1.msra.mxu0 0.0
        %755 = vmatprep.subr.mxu0 0.0
        %756 = vmatpush1.msra.mxu0 0.0
        %757 = vmatprep.subr.mxu0 0.0
        %758 = vmatpush1.msra.mxu0 0.0
        %759 = vmatprep.subr.mxu0 0.0
        %760 = vmatpush1.msra.mxu0 0.0
        %761 = vmatprep.subr.mxu0 0.0
        %762 = vmatpush1.msra.mxu0 0.0
        %763 = vmatprep.subr.mxu0 0.0
        %764 = vmatpush1.msra.mxu0 0.0
        %765 = vmatprep.subr.mxu0 0.0
        %766 = vmatpush1.msra.mxu0 0.0
        %767 = vmatprep.subr.mxu0 0.0
        %768 = vmatpush1.msra.mxu0 0.0
        %769 = vmatprep.subr.mxu0 0.0
        %770 = vmatpush1.msra.mxu0 0.0
        %771 = vmatprep.subr.mxu0 0.0
        %772 = vmatpush1.msra.mxu0 0.0
        %773 = vmatprep.subr.mxu0 0.0
        %774 = vmatpush1.msra.mxu0 0.0
        %775 = vmatprep.subr.mxu0 0.0
        %776 = vmatpush1.msra.mxu0 0.0
        %777 = vmatprep.subr.mxu0 0.0
        %778 = vmatpush1.msra.mxu0 0.0
        %779 = vmatprep.subr.mxu0 0.0
        %780 = vmatpush1.msra.mxu0 0.0
        %781 = vmatprep.subr.mxu0 0.0
        %782 = vmatpush1.msra.mxu0 0.0
        %783 = vmatprep.subr.mxu0 0.0
        %784 = vmatpush1.msra.mxu0 0.0
        %785 = vmatprep.mubr.f32.mxu0 0.0
        %786 = vmatmul.mubr.f32.gmra.mrb[0].mxu0 %v509
        %v787 = vpop.f32.mrb[0].mxu0
        %v788 = vadd.f32 %v482, %v787
        %v789 = vpop.f32.mrb[0].mxu0
        %790 = vdwg.mxu0
        %791 = vmatprep.subr.mxu0 0.0
        %792 = vmatpush1.msra.mxu0 %v435
        %793 = vmatprep.subr.mxu0 0.0
        %794 = vmatpush1.msra.mxu0 %v436
        %795 = vmatprep.subr.mxu0 0.0
        %796 = vmatpush1.msra.mxu0 %v437
        %797 = vmatprep.subr.mxu0 0.0
        %798 = vmatpush1.msra.mxu0 %v438
        %799 = vmatprep.subr.mxu0 0.0
        %800 = vmatpush1.msra.mxu0 0.0
        %801 = vmatprep.subr.mxu0 0.0
        %802 = vmatpush1.msra.mxu0 0.0
        %803 = vmatprep.subr.mxu0 0.0
        %804 = vmatpush1.msra.mxu0 0.0
        %805 = vmatprep.subr.mxu0 0.0
        %806 = vmatpush1.msra.mxu0 0.0
        %807 = vmatprep.subr.mxu0 0.0
        %808 = vmatpush1.msra.mxu0 0.0
        %809 = vmatprep.subr.mxu0 0.0
        %810 = vmatpush1.msra.mxu0 0.0
        %811 = vmatprep.subr.mxu0 0.0
        %812 = vmatpush1.msra.mxu0 0.0
        %813 = vmatprep.subr.mxu0 0.0
        %814 = vmatpush1.msra.mxu0 0.0
        %815 = vmatprep.subr.mxu0 0.0
        %816 = vmatpush1.msra.mxu0 0.0
        %817 = vmatprep.subr.mxu0 0.0
        %818 = vmatpush1.msra.mxu0 0.0
        %819 = vmatprep.subr.mxu0 0.0
        %820 = vmatpush1.msra.mxu0 0.0
        %821 = vmatprep.subr.mxu0 0.0
        %822 = vmatpush1.msra.mxu0 0.0
        %823 = vmatprep.subr.mxu0 0.0
        %824 = vmatpush1.msra.mxu0 0.0
        %825 = vmatprep.subr.mxu0 0.0
        %826 = vmatpush1.msra.mxu0 0.0
        %827 = vmatprep.subr.mxu0 0.0
        %828 = vmatpush1.msra.mxu0 0.0
        %829 = vmatprep.subr.mxu0 0.0
        %830 = vmatpush1.msra.mxu0 0.0
        %831 = vmatprep.subr.mxu0 0.0
        %832 = vmatpush1.msra.mxu0 0.0
        %833 = vmatprep.subr.mxu0 0.0
        %834 = vmatpush1.msra.mxu0 0.0
        %835 = vmatprep.subr.mxu0 0.0
        %836 = vmatpush1.msra.mxu0 0.0
        %837 = vmatprep.subr.mxu0 0.0
        %838 = vmatpush1.msra.mxu0 0.0
        %839 = vmatprep.subr.mxu0 0.0
        %840 = vmatpush1.msra.mxu0 0.0
        %841 = vmatprep.subr.mxu0 0.0
        %842 = vmatpush1.msra.mxu0 0.0
        %843 = vmatprep.subr.mxu0 0.0
        %844 = vmatpush1.msra.mxu0 0.0
        %845 = vmatprep.subr.mxu0 0.0
        %846 = vmatpush1.msra.mxu0 0.0
        %847 = vmatprep.subr.mxu0 0.0
        %848 = vmatpush1.msra.mxu0 0.0
        %849 = vmatprep.subr.mxu0 0.0
        %850 = vmatpush1.msra.mxu0 0.0
        %851 = vmatprep.subr.mxu0 0.0
        %852 = vmatpush1.msra.mxu0 0.0
        %853 = vmatprep.subr.mxu0 0.0
        %854 = vmatpush1.msra.mxu0 0.0
        %855 = vmatprep.mubr.f32.mxu0 0.0
        %856 = vmatmul.mubr.f32.gmra.mrb[0].mxu0 %v509
        %v857 = vpop.f32.mrb[0].mxu0
        %v858 = vadd.f32 %v486, %v857
        %v859 = vpop.f32.mrb[0].mxu0
        %860 = vdwg.mxu0
        %861 = vmatprep.subr.mxu0 0.0
        %862 = vmatpush1.msra.mxu0 %v439
        %863 = vmatprep.subr.mxu0 0.0
        %864 = vmatpush1.msra.mxu0 %v440
        %865 = vmatprep.subr.mxu0 0.0
        %866 = vmatpush1.msra.mxu0 %v441
        %867 = vmatprep.subr.mxu0 0.0
        %868 = vmatpush1.msra.mxu0 %v442
        %869 = vmatprep.subr.mxu0 0.0
        %870 = vmatpush1.msra.mxu0 0.0
        %871 = vmatprep.subr.mxu0 0.0
        %872 = vmatpush1.msra.mxu0 0.0
        %873 = vmatprep.subr.mxu0 0.0
        %874 = vmatpush1.msra.mxu0 0.0
        %875 = vmatprep.subr.mxu0 0.0
        %876 = vmatpush1.msra.mxu0 0.0
        %877 = vmatprep.subr.mxu0 0.0
        %878 = vmatpush1.msra.mxu0 0.0
        %879 = vmatprep.subr.mxu0 0.0
        %880 = vmatpush1.msra.mxu0 0.0
        %881 = vmatprep.subr.mxu0 0.0
        %882 = vmatpush1.msra.mxu0 0.0
        %883 = vmatprep.subr.mxu0 0.0
        %884 = vmatpush1.msra.mxu0 0.0
        %885 = vmatprep.subr.mxu0 0.0
        %886 = vmatpush1.msra.mxu0 0.0
        %887 = vmatprep.subr.mxu0 0.0
        %888 = vmatpush1.msra.mxu0 0.0
        %889 = vmatprep.subr.mxu0 0.0
        %890 = vmatpush1.msra.mxu0 0.0
        %891 = vmatprep.subr.mxu0 0.0
        %892 = vmatpush1.msra.mxu0 0.0
        %893 = vmatprep.subr.mxu0 0.0
        %894 = vmatpush1.msra.mxu0 0.0
        %895 = vmatprep.subr.mxu0 0.0
        %896 = vmatpush1.msra.mxu0 0.0
        %897 = vmatprep.subr.mxu0 0.0
        %898 = vmatpush1.msra.mxu0 0.0
        %899 = vmatprep.subr.mxu0 0.0
        %900 = vmatpush1.msra.mxu0 0.0
        %901 = vmatprep.subr.mxu0 0.0
        %902 = vmatpush1.msra.mxu0 0.0
        %903 = vmatprep.subr.mxu0 0.0
        %904 = vmatpush1.msra.mxu0 0.0
        %905 = vmatprep.subr.mxu0 0.0
        %906 = vmatpush1.msra.mxu0 0.0
        %907 = vmatprep.subr.mxu0 0.0
        %908 = vmatpush1.msra.mxu0 0.0
        %909 = vmatprep.subr.mxu0 0.0
        %910 = vmatpush1.msra.mxu0 0.0
        %911 = vmatprep.subr.mxu0 0.0
        %912 = vmatpush1.msra.mxu0 0.0
        %913 = vmatprep.subr.mxu0 0.0
        %914 = vmatpush1.msra.mxu0 0.0
        %915 = vmatprep.subr.mxu0 0.0
        %916 = vmatpush1.msra.mxu0 0.0
        %917 = vmatprep.subr.mxu0 0.0
        %918 = vmatpush1.msra.mxu0 0.0
        %919 = vmatprep.subr.mxu0 0.0
        %920 = vmatpush1.msra.mxu0 0.0
        %921 = vmatprep.subr.mxu0 0.0
        %922 = vmatpush1.msra.mxu0 0.0
        %923 = vmatprep.subr.mxu0 0.0
        %924 = vmatpush1.msra.mxu0 0.0
        %925 = vmatprep.mubr.f32.mxu0 0.0
        %926 = vmatmul.mubr.f32.gmra.mrb[0].mxu0 %v509
        %v927 = vpop.f32.mrb[0].mxu0
        %v928 = vadd.f32 %v490, %v927
        %v929 = vpop.f32.mrb[0].mxu0
        %930 = vdwg.mxu0
        %931 = vmatprep.subr.mxu0 0.0
        %932 = vmatpush1.msra.mxu0 %v443
        %933 = vmatprep.subr.mxu0 0.0
        %934 = vmatpush1.msra.mxu0 %v444
        %935 = vmatprep.subr.mxu0 0.0
        %936 = vmatpush1.msra.mxu0 %v445
        %937 = vmatprep.subr.mxu0 0.0
        %938 = vmatpush1.msra.mxu0 %v446
        %939 = vmatprep.subr.mxu0 0.0
        %940 = vmatpush1.msra.mxu0 0.0
        %941 = vmatprep.subr.mxu0 0.0
        %942 = vmatpush1.msra.mxu0 0.0
        %943 = vmatprep.subr.mxu0 0.0
        %944 = vmatpush1.msra.mxu0 0.0
        %945 = vmatprep.subr.mxu0 0.0
        %946 = vmatpush1.msra.mxu0 0.0
        %947 = vmatprep.subr.mxu0 0.0
        %948 = vmatpush1.msra.mxu0 0.0
        %949 = vmatprep.subr.mxu0 0.0
        %950 = vmatpush1.msra.mxu0 0.0
        %951 = vmatprep.subr.mxu0 0.0
        %952 = vmatpush1.msra.mxu0 0.0
        %953 = vmatprep.subr.mxu0 0.0
        %954 = vmatpush1.msra.mxu0 0.0
        %955 = vmatprep.subr.mxu0 0.0
        %956 = vmatpush1.msra.mxu0 0.0
        %957 = vmatprep.subr.mxu0 0.0
        %958 = vmatpush1.msra.mxu0 0.0
        %959 = vmatprep.subr.mxu0 0.0
        %960 = vmatpush1.msra.mxu0 0.0
        %961 = vmatprep.subr.mxu0 0.0
        %962 = vmatpush1.msra.mxu0 0.0
        %963 = vmatprep.subr.mxu0 0.0
        %964 = vmatpush1.msra.mxu0 0.0
        %965 = vmatprep.subr.mxu0 0.0
        %966 = vmatpush1.msra.mxu0 0.0
        %967 = vmatprep.subr.mxu0 0.0
        %968 = vmatpush1.msra.mxu0 0.0
        %969 = vmatprep.subr.mxu0 0.0
        %970 = vmatpush1.msra.mxu0 0.0
        %971 = vmatprep.subr.mxu0 0.0
        %972 = vmatpush1.msra.mxu0 0.0
        %973 = vmatprep.subr.mxu0 0.0
        %974 = vmatpush1.msra.mxu0 0.0
        %975 = vmatprep.subr.mxu0 0.0
        %976 = vmatpush1.msra.mxu0 0.0
        %977 = vmatprep.subr.mxu0 0.0
        %978 = vmatpush1.msra.mxu0 0.0
        %979 = vmatprep.subr.mxu0 0.0
        %980 = vmatpush1.msra.mxu0 0.0
        %981 = vmatprep.subr.mxu0 0.0
        %982 = vmatpush1.msra.mxu0 0.0
        %983 = vmatprep.subr.mxu0 0.0
        %984 = vmatpush1.msra.mxu0 0.0
        %985 = vmatprep.subr.mxu0 0.0
        %986 = vmatpush1.msra.mxu0 0.0
        %987 = vmatprep.subr.mxu0 0.0
        %988 = vmatpush1.msra.mxu0 0.0
        %989 = vmatprep.subr.mxu0 0.0
        %990 = vmatpush1.msra.mxu0 0.0
        %991 = vmatprep.subr.mxu0 0.0
        %992 = vmatpush1.msra.mxu0 0.0
        %993 = vmatprep.subr.mxu0 0.0
        %994 = vmatpush1.msra.mxu0 0.0
        %995 = vmatprep.mubr.f32.mxu0 0.0
        %996 = vmatmul.mubr.f32.gmra.mrb[0].mxu0 %v509
        %v997 = vpop.f32.mrb[0].mxu0
        %v998 = vadd.f32 %v494, %v997
        %v999 = vpop.f32.mrb[0].mxu0
        %1000 = vdwg.mxu0
        %1001 = vmatprep.subr.mxu0 0.0
        %1002 = vmatpush1.msra.mxu0 %v447
        %1003 = vmatprep.subr.mxu0 0.0
        %1004 = vmatpush1.msra.mxu0 %v448
        %1005 = vmatprep.subr.mxu0 0.0
        %1006 = vmatpush1.msra.mxu0 %v449
        %1007 = vmatprep.subr.mxu0 0.0
        %1008 = vmatpush1.msra.mxu0 %v450
        %1009 = vmatprep.subr.mxu0 0.0
        %1010 = vmatpush1.msra.mxu0 0.0
        %1011 = vmatprep.subr.mxu0 0.0
        %1012 = vmatpush1.msra.mxu0 0.0
        %1013 = vmatprep.subr.mxu0 0.0
        %1014 = vmatpush1.msra.mxu0 0.0
        %1015 = vmatprep.subr.mxu0 0.0
        %1016 = vmatpush1.msra.mxu0 0.0
        %1017 = vmatprep.subr.mxu0 0.0
        %1018 = vmatpush1.msra.mxu0 0.0
        %1019 = vmatprep.subr.mxu0 0.0
        %1020 = vmatpush1.msra.mxu0 0.0
        %1021 = vmatprep.subr.mxu0 0.0
        %1022 = vmatpush1.msra.mxu0 0.0
        %1023 = vmatprep.subr.mxu0 0.0
        %1024 = vmatpush1.msra.mxu0 0.0
        %1025 = vmatprep.subr.mxu0 0.0
        %1026 = vmatpush1.msra.mxu0 0.0
        %1027 = vmatprep.subr.mxu0 0.0
        %1028 = vmatpush1.msra.mxu0 0.0
        %1029 = vmatprep.subr.mxu0 0.0
        %1030 = vmatpush1.msra.mxu0 0.0
        %1031 = vmatprep.subr.mxu0 0.0
        %1032 = vmatpush1.msra.mxu0 0.0
        %1033 = vmatprep.subr.mxu0 0.0
        %1034 = vmatpush1.msra.mxu0 0.0
        %1035 = vmatprep.subr.mxu0 0.0
        %1036 = vmatpush1.msra.mxu0 0.0
        %1037 = vmatprep.subr.mxu0 0.0
        %1038 = vmatpush1.msra.mxu0 0.0
        %1039 = vmatprep.subr.mxu0 0.0
        %1040 = vmatpush1.msra.mxu0 0.0
        %1041 = vmatprep.subr.mxu0 0.0
        %1042 = vmatpush1.msra.mxu0 0.0
        %1043 = vmatprep.subr.mxu0 0.0
        %1044 = vmatpush1.msra.mxu0 0.0
        %1045 = vmatprep.subr.mxu0 0.0
        %1046 = vmatpush1.msra.mxu0 0.0
        %1047 = vmatprep.subr.mxu0 0.0
        %1048 = vmatpush1.msra.mxu0 0.0
        %1049 = vmatprep.subr.mxu0 0.0
        %1050 = vmatpush1.msra.mxu0 0.0
        %1051 = vmatprep.subr.mxu0 0.0
        %1052 = vmatpush1.msra.mxu0 0.0
        %1053 = vmatprep.subr.mxu0 0.0
        %1054 = vmatpush1.msra.mxu0 0.0
        %1055 = vmatprep.subr.mxu0 0.0
        %1056 = vmatpush1.msra.mxu0 0.0
        %1057 = vmatprep.subr.mxu0 0.0
        %1058 = vmatpush1.msra.mxu0 0.0
        %1059 = vmatprep.subr.mxu0 0.0
        %1060 = vmatpush1.msra.mxu0 0.0
        %1061 = vmatprep.subr.mxu0 0.0
        %1062 = vmatpush1.msra.mxu0 0.0
        %1063 = vmatprep.subr.mxu0 0.0
        %1064 = vmatpush1.msra.mxu0 0.0
        %1065 = vmatprep.mubr.f32.mxu0 0.0
        %1066 = vmatmul.mubr.f32.gmra.mrb[0].mxu0 %v509
        %v1067 = vpop.f32.mrb[0].mxu0
        %v1068 = vadd.f32 %v498, %v1067
        %v1069 = vpop.f32.mrb[0].mxu0
        %1070 = vdwg.mxu0
        %v1071 = vld [vmem:[%s5] sm:$0xff]
        %v1072 = vld [vmem:[%s5 + $0x8] sm:$0xff]
        %v1073 = vld [vmem:[%s5 + $0x10] sm:$0xff]
        %v1074 = vld [vmem:[%s5 + $0x18] sm:$0xff]
        %v1075 = vld [vmem:[%s5 + $0x20] sm:$0xff]
        %v1076 = vld [vmem:[%s5 + $0x28] sm:$0xff]
        %v1077 = vld [vmem:[%s5 + $0x30] sm:$0xff]
        %v1078 = vld [vmem:[%s5 + $0x38] sm:$0xff]
        %v1079 = vld [vmem:[%s5 + $0x40] sm:$0xff]
        %v1080 = vld [vmem:[%s5 + $0x48] sm:$0xff]
        %v1081 = vld [vmem:[%s5 + $0x50] sm:$0xff]
        %v1082 = vld [vmem:[%s5 + $0x58] sm:$0xff]
        %v1083 = vld [vmem:[%s5 + $0x60] sm:$0xff]
        %v1084 = vld [vmem:[%s5 + $0x68] sm:$0xff]
        %v1085 = vld [vmem:[%s5 + $0x70] sm:$0xff]
        %v1086 = vld [vmem:[%s5 + $0x78] sm:$0xff]
        %v1087 = vld [vmem:[%s5 + $0x80] sm:$0xff]
        %v1088 = vld [vmem:[%s5 + $0x88] sm:$0xff]
        %v1089 = vld [vmem:[%s5 + $0x90] sm:$0xff]
        %v1090 = vld [vmem:[%s5 + $0x98] sm:$0xff]
        %v1091 = vld [vmem:[%s5 + $0xa0] sm:$0xff]
        %v1092 = vld [vmem:[%s5 + $0xa8] sm:$0xff]
        %v1093 = vld [vmem:[%s5 + $0xb0] sm:$0xff]
        %v1094 = vld [vmem:[%s5 + $0xb8] sm:$0xff]
        %v1095 = vld [vmem:[%s5 + $0xc0] sm:$0xff]
        %v1096 = vld [vmem:[%s5 + $0xc8] sm:$0xff]
        %v1097 = vld [vmem:[%s5 + $0xd0] sm:$0xff]
        %v1098 = vld [vmem:[%s5 + $0xd8] sm:$0xff]
        %v1099 = vld [vmem:[%s5 + $0xe0] sm:$0xff]
        %v1100 = vld [vmem:[%s5 + $0xe8] sm:$0xff]
        %v1101 = vld [vmem:[%s5 + $0xf0] sm:$0xff]
        %v1102 = vld [vmem:[%s5 + $0xf8] sm:$0xff]
        %v1103 = vld [vmem:[%s6] sm:$0x1]
        %v1104 = vld [vmem:[%s6 + $0x1] sm:$0x1]
        %v1105 = vld [vmem:[%s6 + $0x2] sm:$0x1]
        %v1106 = vld [vmem:[%s6 + $0x3] sm:$0x1]
        %v1107 = vld [vmem:[%s6 + $0x4] sm:$0x1]
        %v1108 = vld [vmem:[%s6 + $0x5] sm:$0x1]
        %v1109 = vld [vmem:[%s6 + $0x6] sm:$0x1]
        %v1110 = vld [vmem:[%s6 + $0x7] sm:$0x1]
        %v1119 = vlaneseq
        %v1120 = vshrl.u32 %v1119, 7
        %v1121 = vsub.s32 0, %v1120
        %v1122 = vrot.slane %v1103, %v1121
        %v1123 = vlaneseq
        %v1124 = vshrl.u32 %v1123, 7
        %v1125 = vsub.s32 0, %v1124
        %v1126 = vrot.slane %v1104, %v1125
        %v1127 = vlaneseq
        %v1128 = vshrl.u32 %v1127, 7
        %v1129 = vsub.s32 0, %v1128
        %v1130 = vrot.slane %v1105, %v1129
        %v1131 = vlaneseq
        %v1132 = vshrl.u32 %v1131, 7
        %v1133 = vsub.s32 0, %v1132
        %v1134 = vrot.slane %v1106, %v1133
        %v1135 = vlaneseq
        %v1136 = vshrl.u32 %v1135, 7
        %v1137 = vsub.s32 0, %v1136
        %v1138 = vrot.slane %v1107, %v1137
        %v1139 = vlaneseq
        %v1140 = vshrl.u32 %v1139, 7
        %v1141 = vsub.s32 0, %v1140
        %v1142 = vrot.slane %v1108, %v1141
        %v1143 = vlaneseq
        %v1144 = vshrl.u32 %v1143, 7
        %v1145 = vsub.s32 0, %v1144
        %v1146 = vrot.slane %v1109, %v1145
        %v1147 = vlaneseq
        %v1148 = vshrl.u32 %v1147, 7
        %v1149 = vsub.s32 0, %v1148
        %v1150 = vrot.slane %v1110, %v1149
        %v1160 = vsel %vm507, %v417, 0
        %1162 = vmatprep.subr.mxu0 0.0
        %1163 = vmatpush1.msra.mxu0 %v1071
        %1164 = vmatprep.subr.mxu0 0.0
        %1165 = vmatpush1.msra.mxu0 %v1072
        %1166 = vmatprep.subr.mxu0 0.0
        %1167 = vmatpush1.msra.mxu0 %v1073
        %1168 = vmatprep.subr.mxu0 0.0
        %1169 = vmatpush1.msra.mxu0 %v1074
        %1170 = vmatprep.subr.mxu0 0.0
        %1171 = vmatpush1.msra.mxu0 0.0
        %1172 = vmatprep.subr.mxu0 0.0
        %1173 = vmatpush1.msra.mxu0 0.0
        %1174 = vmatprep.subr.mxu0 0.0
        %1175 = vmatpush1.msra.mxu0 0.0
        %1176 = vmatprep.subr.mxu0 0.0
        %1177 = vmatpush1.msra.mxu0 0.0
        %1178 = vmatprep.subr.mxu0 0.0
        %1179 = vmatpush1.msra.mxu0 0.0
        %1180 = vmatprep.subr.mxu0 0.0
        %1181 = vmatpush1.msra.mxu0 0.0
        %1182 = vmatprep.subr.mxu0 0.0
        %1183 = vmatpush1.msra.mxu0 0.0
        %1184 = vmatprep.subr.mxu0 0.0
        %1185 = vmatpush1.msra.mxu0 0.0
        %1186 = vmatprep.subr.mxu0 0.0
        %1187 = vmatpush1.msra.mxu0 0.0
        %1188 = vmatprep.subr.mxu0 0.0
        %1189 = vmatpush1.msra.mxu0 0.0
        %1190 = vmatprep.subr.mxu0 0.0
        %1191 = vmatpush1.msra.mxu0 0.0
        %1192 = vmatprep.subr.mxu0 0.0
        %1193 = vmatpush1.msra.mxu0 0.0
        %1194 = vmatprep.subr.mxu0 0.0
        %1195 = vmatpush1.msra.mxu0 0.0
        %1196 = vmatprep.subr.mxu0 0.0
        %1197 = vmatpush1.msra.mxu0 0.0
        %1198 = vmatprep.subr.mxu0 0.0
        %1199 = vmatpush1.msra.mxu0 0.0
        %1200 = vmatprep.subr.mxu0 0.0
        %1201 = vmatpush1.msra.mxu0 0.0
        %1202 = vmatprep.subr.mxu0 0.0
        %1203 = vmatpush1.msra.mxu0 0.0
        %1204 = vmatprep.subr.mxu0 0.0
        %1205 = vmatpush1.msra.mxu0 0.0
        %1206 = vmatprep.subr.mxu0 0.0
        %1207 = vmatpush1.msra.mxu0 0.0
        %1208 = vmatprep.subr.mxu0 0.0
        %1209 = vmatpush1.msra.mxu0 0.0
        %1210 = vmatprep.subr.mxu0 0.0
        %1211 = vmatpush1.msra.mxu0 0.0
        %1212 = vmatprep.subr.mxu0 0.0
        %1213 = vmatpush1.msra.mxu0 0.0
        %1214 = vmatprep.subr.mxu0 0.0
        %1215 = vmatpush1.msra.mxu0 0.0
        %1216 = vmatprep.subr.mxu0 0.0
        %1217 = vmatpush1.msra.mxu0 0.0
        %1218 = vmatprep.subr.mxu0 0.0
        %1219 = vmatpush1.msra.mxu0 0.0
        %1220 = vmatprep.subr.mxu0 0.0
        %1221 = vmatpush1.msra.mxu0 0.0
        %1222 = vmatprep.subr.mxu0 0.0
        %1223 = vmatpush1.msra.mxu0 0.0
        %1224 = vmatprep.subr.mxu0 0.0
        %1225 = vmatpush1.msra.mxu0 0.0
        %1226 = vmatprep.mubr.f32.mxu0 0.0
        %1227 = vmatmul.mubr.f32.gmra.mrb[0].mxu0 %v1160
        %v1228 = vpop.f32.mrb[0].mxu0
        %v1229 = vadd.f32 %v1122, %v1228
        %v1230 = vpop.f32.mrb[0].mxu0
        %1231 = vdwg.mxu0
        %1232 = vmatprep.subr.mxu0 0.0
        %1233 = vmatpush1.msra.mxu0 %v1075
        %1234 = vmatprep.subr.mxu0 0.0
        %1235 = vmatpush1.msra.mxu0 %v1076
        %1236 = vmatprep.subr.mxu0 0.0
        %1237 = vmatpush1.msra.mxu0 %v1077
        %1238 = vmatprep.subr.mxu0 0.0
        %1239 = vmatpush1.msra.mxu0 %v1078
        %1240 = vmatprep.subr.mxu0 0.0
        %1241 = vmatpush1.msra.mxu0 0.0
        %1242 = vmatprep.subr.mxu0 0.0
        %1243 = vmatpush1.msra.mxu0 0.0
        %1244 = vmatprep.subr.mxu0 0.0
        %1245 = vmatpush1.msra.mxu0 0.0
        %1246 = vmatprep.subr.mxu0 0.0
        %1247 = vmatpush1.msra.mxu0 0.0
        %1248 = vmatprep.subr.mxu0 0.0
        %1249 = vmatpush1.msra.mxu0 0.0
        %1250 = vmatprep.subr.mxu0 0.0
        %1251 = vmatpush1.msra.mxu0 0.0
        %1252 = vmatprep.subr.mxu0 0.0
        %1253 = vmatpush1.msra.mxu0 0.0
        %1254 = vmatprep.subr.mxu0 0.0
        %1255 = vmatpush1.msra.mxu0 0.0
        %1256 = vmatprep.subr.mxu0 0.0
        %1257 = vmatpush1.msra.mxu0 0.0
        %1258 = vmatprep.subr.mxu0 0.0
        %1259 = vmatpush1.msra.mxu0 0.0
        %1260 = vmatprep.subr.mxu0 0.0
        %1261 = vmatpush1.msra.mxu0 0.0
        %1262 = vmatprep.subr.mxu0 0.0
        %1263 = vmatpush1.msra.mxu0 0.0
        %1264 = vmatprep.subr.mxu0 0.0
        %1265 = vmatpush1.msra.mxu0 0.0
        %1266 = vmatprep.subr.mxu0 0.0
        %1267 = vmatpush1.msra.mxu0 0.0
        %1268 = vmatprep.subr.mxu0 0.0
        %1269 = vmatpush1.msra.mxu0 0.0
        %1270 = vmatprep.subr.mxu0 0.0
        %1271 = vmatpush1.msra.mxu0 0.0
        %1272 = vmatprep.subr.mxu0 0.0
        %1273 = vmatpush1.msra.mxu0 0.0
        %1274 = vmatprep.subr.mxu0 0.0
        %1275 = vmatpush1.msra.mxu0 0.0
        %1276 = vmatprep.subr.mxu0 0.0
        %1277 = vmatpush1.msra.mxu0 0.0
        %1278 = vmatprep.subr.mxu0 0.0
        %1279 = vmatpush1.msra.mxu0 0.0
        %1280 = vmatprep.subr.mxu0 0.0
        %1281 = vmatpush1.msra.mxu0 0.0
        %1282 = vmatprep.subr.mxu0 0.0
        %1283 = vmatpush1.msra.mxu0 0.0
        %1284 = vmatprep.subr.mxu0 0.0
        %1285 = vmatpush1.msra.mxu0 0.0
        %1286 = vmatprep.subr.mxu0 0.0
        %1287 = vmatpush1.msra.mxu0 0.0
        %1288 = vmatprep.subr.mxu0 0.0
        %1289 = vmatpush1.msra.mxu0 0.0
        %1290 = vmatprep.subr.mxu0 0.0
        %1291 = vmatpush1.msra.mxu0 0.0
        %1292 = vmatprep.subr.mxu0 0.0
        %1293 = vmatpush1.msra.mxu0 0.0
        %1294 = vmatprep.subr.mxu0 0.0
        %1295 = vmatpush1.msra.mxu0 0.0
        %1296 = vmatprep.mubr.f32.mxu0 0.0
        %1297 = vmatmul.mubr.f32.gmra.mrb[0].mxu0 %v1160
        %v1298 = vpop.f32.mrb[0].mxu0
        %v1299 = vadd.f32 %v1126, %v1298
        %v1300 = vpop.f32.mrb[0].mxu0
        %1301 = vdwg.mxu0
        %1302 = vmatprep.subr.mxu0 0.0
        %1303 = vmatpush1.msra.mxu0 %v1079
        %1304 = vmatprep.subr.mxu0 0.0
        %1305 = vmatpush1.msra.mxu0 %v1080
        %1306 = vmatprep.subr.mxu0 0.0
        %1307 = vmatpush1.msra.mxu0 %v1081
        %1308 = vmatprep.subr.mxu0 0.0
        %1309 = vmatpush1.msra.mxu0 %v1082
        %1310 = vmatprep.subr.mxu0 0.0
        %1311 = vmatpush1.msra.mxu0 0.0
        %1312 = vmatprep.subr.mxu0 0.0
        %1313 = vmatpush1.msra.mxu0 0.0
        %1314 = vmatprep.subr.mxu0 0.0
        %1315 = vmatpush1.msra.mxu0 0.0
        %1316 = vmatprep.subr.mxu0 0.0
        %1317 = vmatpush1.msra.mxu0 0.0
        %1318 = vmatprep.subr.mxu0 0.0
        %1319 = vmatpush1.msra.mxu0 0.0
        %1320 = vmatprep.subr.mxu0 0.0
        %1321 = vmatpush1.msra.mxu0 0.0
        %1322 = vmatprep.subr.mxu0 0.0
        %1323 = vmatpush1.msra.mxu0 0.0
        %1324 = vmatprep.subr.mxu0 0.0
        %1325 = vmatpush1.msra.mxu0 0.0
        %1326 = vmatprep.subr.mxu0 0.0
        %1327 = vmatpush1.msra.mxu0 0.0
        %1328 = vmatprep.subr.mxu0 0.0
        %1329 = vmatpush1.msra.mxu0 0.0
        %1330 = vmatprep.subr.mxu0 0.0
        %1331 = vmatpush1.msra.mxu0 0.0
        %1332 = vmatprep.subr.mxu0 0.0
        %1333 = vmatpush1.msra.mxu0 0.0
        %1334 = vmatprep.subr.mxu0 0.0
        %1335 = vmatpush1.msra.mxu0 0.0
        %1336 = vmatprep.subr.mxu0 0.0
        %1337 = vmatpush1.msra.mxu0 0.0
        %1338 = vmatprep.subr.mxu0 0.0
        %1339 = vmatpush1.msra.mxu0 0.0
        %1340 = vmatprep.subr.mxu0 0.0
        %1341 = vmatpush1.msra.mxu0 0.0
        %1342 = vmatprep.subr.mxu0 0.0
        %1343 = vmatpush1.msra.mxu0 0.0
        %1344 = vmatprep.subr.mxu0 0.0
        %1345 = vmatpush1.msra.mxu0 0.0
        %1346 = vmatprep.subr.mxu0 0.0
        %1347 = vmatpush1.msra.mxu0 0.0
        %1348 = vmatprep.subr.mxu0 0.0
        %1349 = vmatpush1.msra.mxu0 0.0
        %1350 = vmatprep.subr.mxu0 0.0
        %1351 = vmatpush1.msra.mxu0 0.0
        %1352 = vmatprep.subr.mxu0 0.0
        %1353 = vmatpush1.msra.mxu0 0.0
        %1354 = vmatprep.subr.mxu0 0.0
        %1355 = vmatpush1.msra.mxu0 0.0
        %1356 = vmatprep.subr.mxu0 0.0
        %1357 = vmatpush1.msra.mxu0 0.0
        %1358 = vmatprep.subr.mxu0 0.0
        %1359 = vmatpush1.msra.mxu0 0.0
        %1360 = vmatprep.subr.mxu0 0.0
        %1361 = vmatpush1.msra.mxu0 0.0
        %1362 = vmatprep.subr.mxu0 0.0
        %1363 = vmatpush1.msra.mxu0 0.0
        %1364 = vmatprep.subr.mxu0 0.0
        %1365 = vmatpush1.msra.mxu0 0.0
        %1366 = vmatprep.mubr.f32.mxu0 0.0
        %1367 = vmatmul.mubr.f32.gmra.mrb[0].mxu0 %v1160
        %v1368 = vpop.f32.mrb[0].mxu0
        %v1369 = vadd.f32 %v1130, %v1368
        %v1370 = vpop.f32.mrb[0].mxu0
        %1371 = vdwg.mxu0
        %1372 = vmatprep.subr.mxu0 0.0
        %1373 = vmatpush1.msra.mxu0 %v1083
        %1374 = vmatprep.subr.mxu0 0.0
        %1375 = vmatpush1.msra.mxu0 %v1084
        %1376 = vmatprep.subr.mxu0 0.0
        %1377 = vmatpush1.msra.mxu0 %v1085
        %1378 = vmatprep.subr.mxu0 0.0
        %1379 = vmatpush1.msra.mxu0 %v1086
        %1380 = vmatprep.subr.mxu0 0.0
        %1381 = vmatpush1.msra.mxu0 0.0
        %1382 = vmatprep.subr.mxu0 0.0
        %1383 = vmatpush1.msra.mxu0 0.0
        %1384 = vmatprep.subr.mxu0 0.0
        %1385 = vmatpush1.msra.mxu0 0.0
        %1386 = vmatprep.subr.mxu0 0.0
        %1387 = vmatpush1.msra.mxu0 0.0
        %1388 = vmatprep.subr.mxu0 0.0
        %1389 = vmatpush1.msra.mxu0 0.0
        %1390 = vmatprep.subr.mxu0 0.0
        %1391 = vmatpush1.msra.mxu0 0.0
        %1392 = vmatprep.subr.mxu0 0.0
        %1393 = vmatpush1.msra.mxu0 0.0
        %1394 = vmatprep.subr.mxu0 0.0
        %1395 = vmatpush1.msra.mxu0 0.0
        %1396 = vmatprep.subr.mxu0 0.0
        %1397 = vmatpush1.msra.mxu0 0.0
        %1398 = vmatprep.subr.mxu0 0.0
        %1399 = vmatpush1.msra.mxu0 0.0
        %1400 = vmatprep.subr.mxu0 0.0
        %1401 = vmatpush1.msra.mxu0 0.0
        %1402 = vmatprep.subr.mxu0 0.0
        %1403 = vmatpush1.msra.mxu0 0.0
        %1404 = vmatprep.subr.mxu0 0.0
        %1405 = vmatpush1.msra.mxu0 0.0
        %1406 = vmatprep.subr.mxu0 0.0
        %1407 = vmatpush1.msra.mxu0 0.0
        %1408 = vmatprep.subr.mxu0 0.0
        %1409 = vmatpush1.msra.mxu0 0.0
        %1410 = vmatprep.subr.mxu0 0.0
        %1411 = vmatpush1.msra.mxu0 0.0
        %1412 = vmatprep.subr.mxu0 0.0
        %1413 = vmatpush1.msra.mxu0 0.0
        %1414 = vmatprep.subr.mxu0 0.0
        %1415 = vmatpush1.msra.mxu0 0.0
        %1416 = vmatprep.subr.mxu0 0.0
        %1417 = vmatpush1.msra.mxu0 0.0
        %1418 = vmatprep.subr.mxu0 0.0
        %1419 = vmatpush1.msra.mxu0 0.0
        %1420 = vmatprep.subr.mxu0 0.0
        %1421 = vmatpush1.msra.mxu0 0.0
        %1422 = vmatprep.subr.mxu0 0.0
        %1423 = vmatpush1.msra.mxu0 0.0
        %1424 = vmatprep.subr.mxu0 0.0
        %1425 = vmatpush1.msra.mxu0 0.0
        %1426 = vmatprep.subr.mxu0 0.0
        %1427 = vmatpush1.msra.mxu0 0.0
        %1428 = vmatprep.subr.mxu0 0.0
        %1429 = vmatpush1.msra.mxu0 0.0
        %1430 = vmatprep.subr.mxu0 0.0
        %1431 = vmatpush1.msra.mxu0 0.0
        %1432 = vmatprep.subr.mxu0 0.0
        %1433 = vmatpush1.msra.mxu0 0.0
        %1434 = vmatprep.subr.mxu0 0.0
        %1435 = vmatpush1.msra.mxu0 0.0
        %1436 = vmatprep.mubr.f32.mxu0 0.0
        %1437 = vmatmul.mubr.f32.gmra.mrb[0].mxu0 %v1160
        %v1438 = vpop.f32.mrb[0].mxu0
        %v1439 = vadd.f32 %v1134, %v1438
        %v1440 = vpop.f32.mrb[0].mxu0
        %1441 = vdwg.mxu0
        %1442 = vmatprep.subr.mxu0 0.0
        %1443 = vmatpush1.msra.mxu0 %v1087
        %1444 = vmatprep.subr.mxu0 0.0
        %1445 = vmatpush1.msra.mxu0 %v1088
        %1446 = vmatprep.subr.mxu0 0.0
        %1447 = vmatpush1.msra.mxu0 %v1089
        %1448 = vmatprep.subr.mxu0 0.0
        %1449 = vmatpush1.msra.mxu0 %v1090
        %1450 = vmatprep.subr.mxu0 0.0
        %1451 = vmatpush1.msra.mxu0 0.0
        %1452 = vmatprep.subr.mxu0 0.0
        %1453 = vmatpush1.msra.mxu0 0.0
        %1454 = vmatprep.subr.mxu0 0.0
        %1455 = vmatpush1.msra.mxu0 0.0
        %1456 = vmatprep.subr.mxu0 0.0
        %1457 = vmatpush1.msra.mxu0 0.0
        %1458 = vmatprep.subr.mxu0 0.0
        %1459 = vmatpush1.msra.mxu0 0.0
        %1460 = vmatprep.subr.mxu0 0.0
        %1461 = vmatpush1.msra.mxu0 0.0
        %1462 = vmatprep.subr.mxu0 0.0
        %1463 = vmatpush1.msra.mxu0 0.0
        %1464 = vmatprep.subr.mxu0 0.0
        %1465 = vmatpush1.msra.mxu0 0.0
        %1466 = vmatprep.subr.mxu0 0.0
        %1467 = vmatpush1.msra.mxu0 0.0
        %1468 = vmatprep.subr.mxu0 0.0
        %1469 = vmatpush1.msra.mxu0 0.0
        %1470 = vmatprep.subr.mxu0 0.0
        %1471 = vmatpush1.msra.mxu0 0.0
        %1472 = vmatprep.subr.mxu0 0.0
        %1473 = vmatpush1.msra.mxu0 0.0
        %1474 = vmatprep.subr.mxu0 0.0
        %1475 = vmatpush1.msra.mxu0 0.0
        %1476 = vmatprep.subr.mxu0 0.0
        %1477 = vmatpush1.msra.mxu0 0.0
        %1478 = vmatprep.subr.mxu0 0.0
        %1479 = vmatpush1.msra.mxu0 0.0
        %1480 = vmatprep.subr.mxu0 0.0
        %1481 = vmatpush1.msra.mxu0 0.0
        %1482 = vmatprep.subr.mxu0 0.0
        %1483 = vmatpush1.msra.mxu0 0.0
        %1484 = vmatprep.subr.mxu0 0.0
        %1485 = vmatpush1.msra.mxu0 0.0
        %1486 = vmatprep.subr.mxu0 0.0
        %1487 = vmatpush1.msra.mxu0 0.0
        %1488 = vmatprep.subr.mxu0 0.0
        %1489 = vmatpush1.msra.mxu0 0.0
        %1490 = vmatprep.subr.mxu0 0.0
        %1491 = vmatpush1.msra.mxu0 0.0
        %1492 = vmatprep.subr.mxu0 0.0
        %1493 = vmatpush1.msra.mxu0 0.0
        %1494 = vmatprep.subr.mxu0 0.0
        %1495 = vmatpush1.msra.mxu0 0.0
        %1496 = vmatprep.subr.mxu0 0.0
        %1497 = vmatpush1.msra.mxu0 0.0
        %1498 = vmatprep.subr.mxu0 0.0
        %1499 = vmatpush1.msra.mxu0 0.0
        %1500 = vmatprep.subr.mxu0 0.0
        %1501 = vmatpush1.msra.mxu0 0.0
        %1502 = vmatprep.subr.mxu0 0.0
        %1503 = vmatpush1.msra.mxu0 0.0
        %1504 = vmatprep.subr.mxu0 0.0
        %1505 = vmatpush1.msra.mxu0 0.0
        %1506 = vmatprep.mubr.f32.mxu0 0.0
        %1507 = vmatmul.mubr.f32.gmra.mrb[0].mxu0 %v1160
        %v1508 = vpop.f32.mrb[0].mxu0
        %v1509 = vadd.f32 %v1138, %v1508
        %v1510 = vpop.f32.mrb[0].mxu0
        %1511 = vdwg.mxu0
        %1512 = vmatprep.subr.mxu0 0.0
        %1513 = vmatpush1.msra.mxu0 %v1091
        %1514 = vmatprep.subr.mxu0 0.0
        %1515 = vmatpush1.msra.mxu0 %v1092
        %1516 = vmatprep.subr.mxu0 0.0
        %1517 = vmatpush1.msra.mxu0 %v1093
        %1518 = vmatprep.subr.mxu0 0.0
        %1519 = vmatpush1.msra.mxu0 %v1094
        %1520 = vmatprep.subr.mxu0 0.0
        %1521 = vmatpush1.msra.mxu0 0.0
        %1522 = vmatprep.subr.mxu0 0.0
        %1523 = vmatpush1.msra.mxu0 0.0
        %1524 = vmatprep.subr.mxu0 0.0
        %1525 = vmatpush1.msra.mxu0 0.0
        %1526 = vmatprep.subr.mxu0 0.0
        %1527 = vmatpush1.msra.mxu0 0.0
        %1528 = vmatprep.subr.mxu0 0.0
        %1529 = vmatpush1.msra.mxu0 0.0
        %1530 = vmatprep.subr.mxu0 0.0
        %1531 = vmatpush1.msra.mxu0 0.0
        %1532 = vmatprep.subr.mxu0 0.0
        %1533 = vmatpush1.msra.mxu0 0.0
        %1534 = vmatprep.subr.mxu0 0.0
        %1535 = vmatpush1.msra.mxu0 0.0
        %1536 = vmatprep.subr.mxu0 0.0
        %1537 = vmatpush1.msra.mxu0 0.0
        %1538 = vmatprep.subr.mxu0 0.0
        %1539 = vmatpush1.msra.mxu0 0.0
        %1540 = vmatprep.subr.mxu0 0.0
        %1541 = vmatpush1.msra.mxu0 0.0
        %1542 = vmatprep.subr.mxu0 0.0
        %1543 = vmatpush1.msra.mxu0 0.0
        %1544 = vmatprep.subr.mxu0 0.0
        %1545 = vmatpush1.msra.mxu0 0.0
        %1546 = vmatprep.subr.mxu0 0.0
        %1547 = vmatpush1.msra.mxu0 0.0
        %1548 = vmatprep.subr.mxu0 0.0
        %1549 = vmatpush1.msra.mxu0 0.0
        %1550 = vmatprep.subr.mxu0 0.0
        %1551 = vmatpush1.msra.mxu0 0.0
        %1552 = vmatprep.subr.mxu0 0.0
        %1553 = vmatpush1.msra.mxu0 0.0
        %1554 = vmatprep.subr.mxu0 0.0
        %1555 = vmatpush1.msra.mxu0 0.0
        %1556 = vmatprep.subr.mxu0 0.0
        %1557 = vmatpush1.msra.mxu0 0.0
        %1558 = vmatprep.subr.mxu0 0.0
        %1559 = vmatpush1.msra.mxu0 0.0
        %1560 = vmatprep.subr.mxu0 0.0
        %1561 = vmatpush1.msra.mxu0 0.0
        %1562 = vmatprep.subr.mxu0 0.0
        %1563 = vmatpush1.msra.mxu0 0.0
        %1564 = vmatprep.subr.mxu0 0.0
        %1565 = vmatpush1.msra.mxu0 0.0
        %1566 = vmatprep.subr.mxu0 0.0
        %1567 = vmatpush1.msra.mxu0 0.0
        %1568 = vmatprep.subr.mxu0 0.0
        %1569 = vmatpush1.msra.mxu0 0.0
        %1570 = vmatprep.subr.mxu0 0.0
        %1571 = vmatpush1.msra.mxu0 0.0
        %1572 = vmatprep.subr.mxu0 0.0
        %1573 = vmatpush1.msra.mxu0 0.0
        %1574 = vmatprep.subr.mxu0 0.0
        %1575 = vmatpush1.msra.mxu0 0.0
        %1576 = vmatprep.mubr.f32.mxu0 0.0
        %1577 = vmatmul.mubr.f32.gmra.mrb[0].mxu0 %v1160
        %v1578 = vpop.f32.mrb[0].mxu0
        %v1579 = vadd.f32 %v1142, %v1578
        %v1580 = vpop.f32.mrb[0].mxu0
        %1581 = vdwg.mxu0
        %1582 = vmatprep.subr.mxu0 0.0
        %1583 = vmatpush1.msra.mxu0 %v1095
        %1584 = vmatprep.subr.mxu0 0.0
        %1585 = vmatpush1.msra.mxu0 %v1096
        %1586 = vmatprep.subr.mxu0 0.0
        %1587 = vmatpush1.msra.mxu0 %v1097
        %1588 = vmatprep.subr.mxu0 0.0
        %1589 = vmatpush1.msra.mxu0 %v1098
        %1590 = vmatprep.subr.mxu0 0.0
        %1591 = vmatpush1.msra.mxu0 0.0
        %1592 = vmatprep.subr.mxu0 0.0
        %1593 = vmatpush1.msra.mxu0 0.0
        %1594 = vmatprep.subr.mxu0 0.0
        %1595 = vmatpush1.msra.mxu0 0.0
        %1596 = vmatprep.subr.mxu0 0.0
        %1597 = vmatpush1.msra.mxu0 0.0
        %1598 = vmatprep.subr.mxu0 0.0
        %1599 = vmatpush1.msra.mxu0 0.0
        %1600 = vmatprep.subr.mxu0 0.0
        %1601 = vmatpush1.msra.mxu0 0.0
        %1602 = vmatprep.subr.mxu0 0.0
        %1603 = vmatpush1.msra.mxu0 0.0
        %1604 = vmatprep.subr.mxu0 0.0
        %1605 = vmatpush1.msra.mxu0 0.0
        %1606 = vmatprep.subr.mxu0 0.0
        %1607 = vmatpush1.msra.mxu0 0.0
        %1608 = vmatprep.subr.mxu0 0.0
        %1609 = vmatpush1.msra.mxu0 0.0
        %1610 = vmatprep.subr.mxu0 0.0
        %1611 = vmatpush1.msra.mxu0 0.0
        %1612 = vmatprep.subr.mxu0 0.0
        %1613 = vmatpush1.msra.mxu0 0.0
        %1614 = vmatprep.subr.mxu0 0.0
        %1615 = vmatpush1.msra.mxu0 0.0
        %1616 = vmatprep.subr.mxu0 0.0
        %1617 = vmatpush1.msra.mxu0 0.0
        %1618 = vmatprep.subr.mxu0 0.0
        %1619 = vmatpush1.msra.mxu0 0.0
        %1620 = vmatprep.subr.mxu0 0.0
        %1621 = vmatpush1.msra.mxu0 0.0
        %1622 = vmatprep.subr.mxu0 0.0
        %1623 = vmatpush1.msra.mxu0 0.0
        %1624 = vmatprep.subr.mxu0 0.0
        %1625 = vmatpush1.msra.mxu0 0.0
        %1626 = vmatprep.subr.mxu0 0.0
        %1627 = vmatpush1.msra.mxu0 0.0
        %1628 = vmatprep.subr.mxu0 0.0
        %1629 = vmatpush1.msra.mxu0 0.0
        %1630 = vmatprep.subr.mxu0 0.0
        %1631 = vmatpush1.msra.mxu0 0.0
        %1632 = vmatprep.subr.mxu0 0.0
        %1633 = vmatpush1.msra.mxu0 0.0
        %1634 = vmatprep.subr.mxu0 0.0
        %1635 = vmatpush1.msra.mxu0 0.0
        %1636 = vmatprep.subr.mxu0 0.0
        %1637 = vmatpush1.msra.mxu0 0.0
        %1638 = vmatprep.subr.mxu0 0.0
        %1639 = vmatpush1.msra.mxu0 0.0
        %1640 = vmatprep.subr.mxu0 0.0
        %1641 = vmatpush1.msra.mxu0 0.0
        %1642 = vmatprep.subr.mxu0 0.0
        %1643 = vmatpush1.msra.mxu0 0.0
        %1644 = vmatprep.subr.mxu0 0.0
        %1645 = vmatpush1.msra.mxu0 0.0
        %1646 = vmatprep.mubr.f32.mxu0 0.0
        %1647 = vmatmul.mubr.f32.gmra.mrb[0].mxu0 %v1160
        %v1648 = vpop.f32.mrb[0].mxu0
        %v1649 = vadd.f32 %v1146, %v1648
        %v1650 = vpop.f32.mrb[0].mxu0
        %1651 = vdwg.mxu0
        %1652 = vmatprep.subr.mxu0 0.0
        %1653 = vmatpush1.msra.mxu0 %v1099
        %1654 = vmatprep.subr.mxu0 0.0
        %1655 = vmatpush1.msra.mxu0 %v1100
        %1656 = vmatprep.subr.mxu0 0.0
        %1657 = vmatpush1.msra.mxu0 %v1101
        %1658 = vmatprep.subr.mxu0 0.0
        %1659 = vmatpush1.msra.mxu0 %v1102
        %1660 = vmatprep.subr.mxu0 0.0
        %1661 = vmatpush1.msra.mxu0 0.0
        %1662 = vmatprep.subr.mxu0 0.0
        %1663 = vmatpush1.msra.mxu0 0.0
        %1664 = vmatprep.subr.mxu0 0.0
        %1665 = vmatpush1.msra.mxu0 0.0
        %1666 = vmatprep.subr.mxu0 0.0
        %1667 = vmatpush1.msra.mxu0 0.0
        %1668 = vmatprep.subr.mxu0 0.0
        %1669 = vmatpush1.msra.mxu0 0.0
        %1670 = vmatprep.subr.mxu0 0.0
        %1671 = vmatpush1.msra.mxu0 0.0
        %1672 = vmatprep.subr.mxu0 0.0
        %1673 = vmatpush1.msra.mxu0 0.0
        %1674 = vmatprep.subr.mxu0 0.0
        %1675 = vmatpush1.msra.mxu0 0.0
        %1676 = vmatprep.subr.mxu0 0.0
        %1677 = vmatpush1.msra.mxu0 0.0
        %1678 = vmatprep.subr.mxu0 0.0
        %1679 = vmatpush1.msra.mxu0 0.0
        %1680 = vmatprep.subr.mxu0 0.0
        %1681 = vmatpush1.msra.mxu0 0.0
        %1682 = vmatprep.subr.mxu0 0.0
        %1683 = vmatpush1.msra.mxu0 0.0
        %1684 = vmatprep.subr.mxu0 0.0
        %1685 = vmatpush1.msra.mxu0 0.0
        %1686 = vmatprep.subr.mxu0 0.0
        %1687 = vmatpush1.msra.mxu0 0.0
        %1688 = vmatprep.subr.mxu0 0.0
        %1689 = vmatpush1.msra.mxu0 0.0
        %1690 = vmatprep.subr.mxu0 0.0
        %1691 = vmatpush1.msra.mxu0 0.0
        %1692 = vmatprep.subr.mxu0 0.0
        %1693 = vmatpush1.msra.mxu0 0.0
        %1694 = vmatprep.subr.mxu0 0.0
        %1695 = vmatpush1.msra.mxu0 0.0
        %1696 = vmatprep.subr.mxu0 0.0
        %1697 = vmatpush1.msra.mxu0 0.0
        %1698 = vmatprep.subr.mxu0 0.0
        %1699 = vmatpush1.msra.mxu0 0.0
        %1700 = vmatprep.subr.mxu0 0.0
        %1701 = vmatpush1.msra.mxu0 0.0
        %1702 = vmatprep.subr.mxu0 0.0
        %1703 = vmatpush1.msra.mxu0 0.0
        %1704 = vmatprep.subr.mxu0 0.0
        %1705 = vmatpush1.msra.mxu0 0.0
        %1706 = vmatprep.subr.mxu0 0.0
        %1707 = vmatpush1.msra.mxu0 0.0
        %1708 = vmatprep.subr.mxu0 0.0
        %1709 = vmatpush1.msra.mxu0 0.0
        %1710 = vmatprep.subr.mxu0 0.0
        %1711 = vmatpush1.msra.mxu0 0.0
        %1712 = vmatprep.subr.mxu0 0.0
        %1713 = vmatpush1.msra.mxu0 0.0
        %1714 = vmatprep.subr.mxu0 0.0
        %1715 = vmatpush1.msra.mxu0 0.0
        %1716 = vmatprep.mubr.f32.mxu0 0.0
        %1717 = vmatmul.mubr.f32.gmra.mrb[0].mxu0 %v1160
        %v1718 = vpop.f32.mrb[0].mxu0
        %v1719 = vadd.f32 %v1150, %v1718
        %v1720 = vpop.f32.mrb[0].mxu0
        %1721 = vdwg.mxu0
        %v1722 = vld [vmem:[%s7] sm:$0xff]
        %v1723 = vld [vmem:[%s7 + $0x8] sm:$0xff]
        %v1724 = vld [vmem:[%s7 + $0x10] sm:$0xff]
        %v1725 = vld [vmem:[%s7 + $0x18] sm:$0xff]
        %v1726 = vld [vmem:[%s7 + $0x20] sm:$0xff]
        %v1727 = vld [vmem:[%s7 + $0x28] sm:$0xff]
        %v1728 = vld [vmem:[%s7 + $0x30] sm:$0xff]
        %v1729 = vld [vmem:[%s7 + $0x38] sm:$0xff]
        %v1730 = vld [vmem:[%s7 + $0x40] sm:$0xff]
        %v1731 = vld [vmem:[%s7 + $0x48] sm:$0xff]
        %v1732 = vld [vmem:[%s7 + $0x50] sm:$0xff]
        %v1733 = vld [vmem:[%s7 + $0x58] sm:$0xff]
        %v1734 = vld [vmem:[%s7 + $0x60] sm:$0xff]
        %v1735 = vld [vmem:[%s7 + $0x68] sm:$0xff]
        %v1736 = vld [vmem:[%s7 + $0x70] sm:$0xff]
        %v1737 = vld [vmem:[%s7 + $0x78] sm:$0xff]
        %v1738 = vld [vmem:[%s7 + $0x80] sm:$0xff]
        %v1739 = vld [vmem:[%s7 + $0x88] sm:$0xff]
        %v1740 = vld [vmem:[%s7 + $0x90] sm:$0xff]
        %v1741 = vld [vmem:[%s7 + $0x98] sm:$0xff]
        %v1742 = vld [vmem:[%s7 + $0xa0] sm:$0xff]
        %v1743 = vld [vmem:[%s7 + $0xa8] sm:$0xff]
        %v1744 = vld [vmem:[%s7 + $0xb0] sm:$0xff]
        %v1745 = vld [vmem:[%s7 + $0xb8] sm:$0xff]
        %v1746 = vld [vmem:[%s7 + $0xc0] sm:$0xff]
        %v1747 = vld [vmem:[%s7 + $0xc8] sm:$0xff]
        %v1748 = vld [vmem:[%s7 + $0xd0] sm:$0xff]
        %v1749 = vld [vmem:[%s7 + $0xd8] sm:$0xff]
        %v1750 = vld [vmem:[%s7 + $0xe0] sm:$0xff]
        %v1751 = vld [vmem:[%s7 + $0xe8] sm:$0xff]
        %v1752 = vld [vmem:[%s7 + $0xf0] sm:$0xff]
        %v1753 = vld [vmem:[%s7 + $0xf8] sm:$0xff]
        %v1754 = vld [vmem:[%s8] sm:$0x1]
        %v1755 = vld [vmem:[%s8 + $0x1] sm:$0x1]
        %v1756 = vld [vmem:[%s8 + $0x2] sm:$0x1]
        %v1757 = vld [vmem:[%s8 + $0x3] sm:$0x1]
        %v1758 = vld [vmem:[%s8 + $0x4] sm:$0x1]
        %v1759 = vld [vmem:[%s8 + $0x5] sm:$0x1]
        %v1760 = vld [vmem:[%s8 + $0x6] sm:$0x1]
        %v1761 = vld [vmem:[%s8 + $0x7] sm:$0x1]
        %v1770 = vlaneseq
        %v1771 = vshrl.u32 %v1770, 7
        %v1772 = vsub.s32 0, %v1771
        %v1773 = vrot.slane %v1754, %v1772
        %v1774 = vlaneseq
        %v1775 = vshrl.u32 %v1774, 7
        %v1776 = vsub.s32 0, %v1775
        %v1777 = vrot.slane %v1755, %v1776
        %v1778 = vlaneseq
        %v1779 = vshrl.u32 %v1778, 7
        %v1780 = vsub.s32 0, %v1779
        %v1781 = vrot.slane %v1756, %v1780
        %v1782 = vlaneseq
        %v1783 = vshrl.u32 %v1782, 7
        %v1784 = vsub.s32 0, %v1783
        %v1785 = vrot.slane %v1757, %v1784
        %v1786 = vlaneseq
        %v1787 = vshrl.u32 %v1786, 7
        %v1788 = vsub.s32 0, %v1787
        %v1789 = vrot.slane %v1758, %v1788
        %v1790 = vlaneseq
        %v1791 = vshrl.u32 %v1790, 7
        %v1792 = vsub.s32 0, %v1791
        %v1793 = vrot.slane %v1759, %v1792
        %v1794 = vlaneseq
        %v1795 = vshrl.u32 %v1794, 7
        %v1796 = vsub.s32 0, %v1795
        %v1797 = vrot.slane %v1760, %v1796
        %v1798 = vlaneseq
        %v1799 = vshrl.u32 %v1798, 7
        %v1800 = vsub.s32 0, %v1799
        %v1801 = vrot.slane %v1761, %v1800
        %v1811 = vsel %vm507, %v418, 0
        %1813 = vmatprep.subr.mxu0 0.0
        %1814 = vmatpush1.msra.mxu0 %v1722
        %1815 = vmatprep.subr.mxu0 0.0
        %1816 = vmatpush1.msra.mxu0 %v1723
        %1817 = vmatprep.subr.mxu0 0.0
        %1818 = vmatpush1.msra.mxu0 %v1724
        %1819 = vmatprep.subr.mxu0 0.0
        %1820 = vmatpush1.msra.mxu0 %v1725
        %1821 = vmatprep.subr.mxu0 0.0
        %1822 = vmatpush1.msra.mxu0 0.0
        %1823 = vmatprep.subr.mxu0 0.0
        %1824 = vmatpush1.msra.mxu0 0.0
        %1825 = vmatprep.subr.mxu0 0.0
        %1826 = vmatpush1.msra.mxu0 0.0
        %1827 = vmatprep.subr.mxu0 0.0
        %1828 = vmatpush1.msra.mxu0 0.0
        %1829 = vmatprep.subr.mxu0 0.0
        %1830 = vmatpush1.msra.mxu0 0.0
        %1831 = vmatprep.subr.mxu0 0.0
        %1832 = vmatpush1.msra.mxu0 0.0
        %1833 = vmatprep.subr.mxu0 0.0
        %1834 = vmatpush1.msra.mxu0 0.0
        %1835 = vmatprep.subr.mxu0 0.0
        %1836 = vmatpush1.msra.mxu0 0.0
        %1837 = vmatprep.subr.mxu0 0.0
        %1838 = vmatpush1.msra.mxu0 0.0
        %1839 = vmatprep.subr.mxu0 0.0
        %1840 = vmatpush1.msra.mxu0 0.0
        %1841 = vmatprep.subr.mxu0 0.0
        %1842 = vmatpush1.msra.mxu0 0.0
        %1843 = vmatprep.subr.mxu0 0.0
        %1844 = vmatpush1.msra.mxu0 0.0
        %1845 = vmatprep.subr.mxu0 0.0
        %1846 = vmatpush1.msra.mxu0 0.0
        %1847 = vmatprep.subr.mxu0 0.0
        %1848 = vmatpush1.msra.mxu0 0.0
        %1849 = vmatprep.subr.mxu0 0.0
        %1850 = vmatpush1.msra.mxu0 0.0
        %1851 = vmatprep.subr.mxu0 0.0
        %1852 = vmatpush1.msra.mxu0 0.0
        %1853 = vmatprep.subr.mxu0 0.0
        %1854 = vmatpush1.msra.mxu0 0.0
        %1855 = vmatprep.subr.mxu0 0.0
        %1856 = vmatpush1.msra.mxu0 0.0
        %1857 = vmatprep.subr.mxu0 0.0
        %1858 = vmatpush1.msra.mxu0 0.0
        %1859 = vmatprep.subr.mxu0 0.0
        %1860 = vmatpush1.msra.mxu0 0.0
        %1861 = vmatprep.subr.mxu0 0.0
        %1862 = vmatpush1.msra.mxu0 0.0
        %1863 = vmatprep.subr.mxu0 0.0
        %1864 = vmatpush1.msra.mxu0 0.0
        %1865 = vmatprep.subr.mxu0 0.0
        %1866 = vmatpush1.msra.mxu0 0.0
        %1867 = vmatprep.subr.mxu0 0.0
        %1868 = vmatpush1.msra.mxu0 0.0
        %1869 = vmatprep.subr.mxu0 0.0
        %1870 = vmatpush1.msra.mxu0 0.0
        %1871 = vmatprep.subr.mxu0 0.0
        %1872 = vmatpush1.msra.mxu0 0.0
        %1873 = vmatprep.subr.mxu0 0.0
        %1874 = vmatpush1.msra.mxu0 0.0
        %1875 = vmatprep.subr.mxu0 0.0
        %1876 = vmatpush1.msra.mxu0 0.0
        %1877 = vmatprep.mubr.f32.mxu0 0.0
        %1878 = vmatmul.mubr.f32.gmra.mrb[0].mxu0 %v1811
        %v1879 = vpop.f32.mrb[0].mxu0
        %v1880 = vadd.f32 %v1773, %v1879
        %v1881 = vpop.f32.mrb[0].mxu0
        %1882 = vdwg.mxu0
        %1883 = vmatprep.subr.mxu0 0.0
        %1884 = vmatpush1.msra.mxu0 %v1726
        %1885 = vmatprep.subr.mxu0 0.0
        %1886 = vmatpush1.msra.mxu0 %v1727
        %1887 = vmatprep.subr.mxu0 0.0
        %1888 = vmatpush1.msra.mxu0 %v1728
        %1889 = vmatprep.subr.mxu0 0.0
        %1890 = vmatpush1.msra.mxu0 %v1729
        %1891 = vmatprep.subr.mxu0 0.0
        %1892 = vmatpush1.msra.mxu0 0.0
        %1893 = vmatprep.subr.mxu0 0.0
        %1894 = vmatpush1.msra.mxu0 0.0
        %1895 = vmatprep.subr.mxu0 0.0
        %1896 = vmatpush1.msra.mxu0 0.0
        %1897 = vmatprep.subr.mxu0 0.0
        %1898 = vmatpush1.msra.mxu0 0.0
        %1899 = vmatprep.subr.mxu0 0.0
        %1900 = vmatpush1.msra.mxu0 0.0
        %1901 = vmatprep.subr.mxu0 0.0
        %1902 = vmatpush1.msra.mxu0 0.0
        %1903 = vmatprep.subr.mxu0 0.0
        %1904 = vmatpush1.msra.mxu0 0.0
        %1905 = vmatprep.subr.mxu0 0.0
        %1906 = vmatpush1.msra.mxu0 0.0
        %1907 = vmatprep.subr.mxu0 0.0
        %1908 = vmatpush1.msra.mxu0 0.0
        %1909 = vmatprep.subr.mxu0 0.0
        %1910 = vmatpush1.msra.mxu0 0.0
        %1911 = vmatprep.subr.mxu0 0.0
        %1912 = vmatpush1.msra.mxu0 0.0
        %1913 = vmatprep.subr.mxu0 0.0
        %1914 = vmatpush1.msra.mxu0 0.0
        %1915 = vmatprep.subr.mxu0 0.0
        %1916 = vmatpush1.msra.mxu0 0.0
        %1917 = vmatprep.subr.mxu0 0.0
        %1918 = vmatpush1.msra.mxu0 0.0
        %1919 = vmatprep.subr.mxu0 0.0
        %1920 = vmatpush1.msra.mxu0 0.0
        %1921 = vmatprep.subr.mxu0 0.0
        %1922 = vmatpush1.msra.mxu0 0.0
        %1923 = vmatprep.subr.mxu0 0.0
        %1924 = vmatpush1.msra.mxu0 0.0
        %1925 = vmatprep.subr.mxu0 0.0
        %1926 = vmatpush1.msra.mxu0 0.0
        %1927 = vmatprep.subr.mxu0 0.0
        %1928 = vmatpush1.msra.mxu0 0.0
        %1929 = vmatprep.subr.mxu0 0.0
        %1930 = vmatpush1.msra.mxu0 0.0
        %1931 = vmatprep.subr.mxu0 0.0
        %1932 = vmatpush1.msra.mxu0 0.0
        %1933 = vmatprep.subr.mxu0 0.0
        %1934 = vmatpush1.msra.mxu0 0.0
        %1935 = vmatprep.subr.mxu0 0.0
        %1936 = vmatpush1.msra.mxu0 0.0
        %1937 = vmatprep.subr.mxu0 0.0
        %1938 = vmatpush1.msra.mxu0 0.0
        %1939 = vmatprep.subr.mxu0 0.0
        %1940 = vmatpush1.msra.mxu0 0.0
        %1941 = vmatprep.subr.mxu0 0.0
        %1942 = vmatpush1.msra.mxu0 0.0
        %1943 = vmatprep.subr.mxu0 0.0
        %1944 = vmatpush1.msra.mxu0 0.0
        %1945 = vmatprep.subr.mxu0 0.0
        %1946 = vmatpush1.msra.mxu0 0.0
        %1947 = vmatprep.mubr.f32.mxu0 0.0
        %1948 = vmatmul.mubr.f32.gmra.mrb[0].mxu0 %v1811
        %v1949 = vpop.f32.mrb[0].mxu0
        %v1950 = vadd.f32 %v1777, %v1949
        %v1951 = vpop.f32.mrb[0].mxu0
        %1952 = vdwg.mxu0
        %1953 = vmatprep.subr.mxu0 0.0
        %1954 = vmatpush1.msra.mxu0 %v1730
        %1955 = vmatprep.subr.mxu0 0.0
        %1956 = vmatpush1.msra.mxu0 %v1731
        %1957 = vmatprep.subr.mxu0 0.0
        %1958 = vmatpush1.msra.mxu0 %v1732
        %1959 = vmatprep.subr.mxu0 0.0
        %1960 = vmatpush1.msra.mxu0 %v1733
        %1961 = vmatprep.subr.mxu0 0.0
        %1962 = vmatpush1.msra.mxu0 0.0
        %1963 = vmatprep.subr.mxu0 0.0
        %1964 = vmatpush1.msra.mxu0 0.0
        %1965 = vmatprep.subr.mxu0 0.0
        %1966 = vmatpush1.msra.mxu0 0.0
        %1967 = vmatprep.subr.mxu0 0.0
        %1968 = vmatpush1.msra.mxu0 0.0
        %1969 = vmatprep.subr.mxu0 0.0
        %1970 = vmatpush1.msra.mxu0 0.0
        %1971 = vmatprep.subr.mxu0 0.0
        %1972 = vmatpush1.msra.mxu0 0.0
        %1973 = vmatprep.subr.mxu0 0.0
        %1974 = vmatpush1.msra.mxu0 0.0
        %1975 = vmatprep.subr.mxu0 0.0
        %1976 = vmatpush1.msra.mxu0 0.0
        %1977 = vmatprep.subr.mxu0 0.0
        %1978 = vmatpush1.msra.mxu0 0.0
        %1979 = vmatprep.subr.mxu0 0.0
        %1980 = vmatpush1.msra.mxu0 0.0
        %1981 = vmatprep.subr.mxu0 0.0
        %1982 = vmatpush1.msra.mxu0 0.0
        %1983 = vmatprep.subr.mxu0 0.0
        %1984 = vmatpush1.msra.mxu0 0.0
        %1985 = vmatprep.subr.mxu0 0.0
        %1986 = vmatpush1.msra.mxu0 0.0
        %1987 = vmatprep.subr.mxu0 0.0
        %1988 = vmatpush1.msra.mxu0 0.0
        %1989 = vmatprep.subr.mxu0 0.0
        %1990 = vmatpush1.msra.mxu0 0.0
        %1991 = vmatprep.subr.mxu0 0.0
        %1992 = vmatpush1.msra.mxu0 0.0
        %1993 = vmatprep.subr.mxu0 0.0
        %1994 = vmatpush1.msra.mxu0 0.0
        %1995 = vmatprep.subr.mxu0 0.0
        %1996 = vmatpush1.msra.mxu0 0.0
        %1997 = vmatprep.subr.mxu0 0.0
        %1998 = vmatpush1.msra.mxu0 0.0
        %1999 = vmatprep.subr.mxu0 0.0
        %2000 = vmatpush1.msra.mxu0 0.0
        %2001 = vmatprep.subr.mxu0 0.0
        %2002 = vmatpush1.msra.mxu0 0.0
        %2003 = vmatprep.subr.mxu0 0.0
        %2004 = vmatpush1.msra.mxu0 0.0
        %2005 = vmatprep.subr.mxu0 0.0
        %2006 = vmatpush1.msra.mxu0 0.0
        %2007 = vmatprep.subr.mxu0 0.0
        %2008 = vmatpush1.msra.mxu0 0.0
        %2009 = vmatprep.subr.mxu0 0.0
        %2010 = vmatpush1.msra.mxu0 0.0
        %2011 = vmatprep.subr.mxu0 0.0
        %2012 = vmatpush1.msra.mxu0 0.0
        %2013 = vmatprep.subr.mxu0 0.0
        %2014 = vmatpush1.msra.mxu0 0.0
        %2015 = vmatprep.subr.mxu0 0.0
        %2016 = vmatpush1.msra.mxu0 0.0
        %2017 = vmatprep.mubr.f32.mxu0 0.0
        %2018 = vmatmul.mubr.f32.gmra.mrb[0].mxu0 %v1811
        %v2019 = vpop.f32.mrb[0].mxu0
        %v2020 = vadd.f32 %v1781, %v2019
        %v2021 = vpop.f32.mrb[0].mxu0
        %2022 = vdwg.mxu0
        %2023 = vmatprep.subr.mxu0 0.0
        %2024 = vmatpush1.msra.mxu0 %v1734
        %2025 = vmatprep.subr.mxu0 0.0
        %2026 = vmatpush1.msra.mxu0 %v1735
        %2027 = vmatprep.subr.mxu0 0.0
        %2028 = vmatpush1.msra.mxu0 %v1736
        %2029 = vmatprep.subr.mxu0 0.0
        %2030 = vmatpush1.msra.mxu0 %v1737
        %2031 = vmatprep.subr.mxu0 0.0
        %2032 = vmatpush1.msra.mxu0 0.0
        %2033 = vmatprep.subr.mxu0 0.0
        %2034 = vmatpush1.msra.mxu0 0.0
        %2035 = vmatprep.subr.mxu0 0.0
        %2036 = vmatpush1.msra.mxu0 0.0
        %2037 = vmatprep.subr.mxu0 0.0
        %2038 = vmatpush1.msra.mxu0 0.0
        %2039 = vmatprep.subr.mxu0 0.0
        %2040 = vmatpush1.msra.mxu0 0.0
        %2041 = vmatprep.subr.mxu0 0.0
        %2042 = vmatpush1.msra.mxu0 0.0
        %2043 = vmatprep.subr.mxu0 0.0
        %2044 = vmatpush1.msra.mxu0 0.0
        %2045 = vmatprep.subr.mxu0 0.0
        %2046 = vmatpush1.msra.mxu0 0.0
        %2047 = vmatprep.subr.mxu0 0.0
        %2048 = vmatpush1.msra.mxu0 0.0
        %2049 = vmatprep.subr.mxu0 0.0
        %2050 = vmatpush1.msra.mxu0 0.0
        %2051 = vmatprep.subr.mxu0 0.0
        %2052 = vmatpush1.msra.mxu0 0.0
        %2053 = vmatprep.subr.mxu0 0.0
        %2054 = vmatpush1.msra.mxu0 0.0
        %2055 = vmatprep.subr.mxu0 0.0
        %2056 = vmatpush1.msra.mxu0 0.0
        %2057 = vmatprep.subr.mxu0 0.0
        %2058 = vmatpush1.msra.mxu0 0.0
        %2059 = vmatprep.subr.mxu0 0.0
        %2060 = vmatpush1.msra.mxu0 0.0
        %2061 = vmatprep.subr.mxu0 0.0
        %2062 = vmatpush1.msra.mxu0 0.0
        %2063 = vmatprep.subr.mxu0 0.0
        %2064 = vmatpush1.msra.mxu0 0.0
        %2065 = vmatprep.subr.mxu0 0.0
        %2066 = vmatpush1.msra.mxu0 0.0
        %2067 = vmatprep.subr.mxu0 0.0
        %2068 = vmatpush1.msra.mxu0 0.0
        %2069 = vmatprep.subr.mxu0 0.0
        %2070 = vmatpush1.msra.mxu0 0.0
        %2071 = vmatprep.subr.mxu0 0.0
        %2072 = vmatpush1.msra.mxu0 0.0
        %2073 = vmatprep.subr.mxu0 0.0
        %2074 = vmatpush1.msra.mxu0 0.0
        %2075 = vmatprep.subr.mxu0 0.0
        %2076 = vmatpush1.msra.mxu0 0.0
        %2077 = vmatprep.subr.mxu0 0.0
        %2078 = vmatpush1.msra.mxu0 0.0
        %2079 = vmatprep.subr.mxu0 0.0
        %2080 = vmatpush1.msra.mxu0 0.0
        %2081 = vmatprep.subr.mxu0 0.0
        %2082 = vmatpush1.msra.mxu0 0.0
        %2083 = vmatprep.subr.mxu0 0.0
        %2084 = vmatpush1.msra.mxu0 0.0
        %2085 = vmatprep.subr.mxu0 0.0
        %2086 = vmatpush1.msra.mxu0 0.0
        %2087 = vmatprep.mubr.f32.mxu0 0.0
        %2088 = vmatmul.mubr.f32.gmra.mrb[0].mxu0 %v1811
        %v2089 = vpop.f32.mrb[0].mxu0
        %v2090 = vadd.f32 %v1785, %v2089
        %v2091 = vpop.f32.mrb[0].mxu0
        %2092 = vdwg.mxu0
        %2093 = vmatprep.subr.mxu0 0.0
        %2094 = vmatpush1.msra.mxu0 %v1738
        %2095 = vmatprep.subr.mxu0 0.0
        %2096 = vmatpush1.msra.mxu0 %v1739
        %2097 = vmatprep.subr.mxu0 0.0
        %2098 = vmatpush1.msra.mxu0 %v1740
        %2099 = vmatprep.subr.mxu0 0.0
        %2100 = vmatpush1.msra.mxu0 %v1741
        %2101 = vmatprep.subr.mxu0 0.0
        %2102 = vmatpush1.msra.mxu0 0.0
        %2103 = vmatprep.subr.mxu0 0.0
        %2104 = vmatpush1.msra.mxu0 0.0
        %2105 = vmatprep.subr.mxu0 0.0
        %2106 = vmatpush1.msra.mxu0 0.0
        %2107 = vmatprep.subr.mxu0 0.0
        %2108 = vmatpush1.msra.mxu0 0.0
        %2109 = vmatprep.subr.mxu0 0.0
        %2110 = vmatpush1.msra.mxu0 0.0
        %2111 = vmatprep.subr.mxu0 0.0
        %2112 = vmatpush1.msra.mxu0 0.0
        %2113 = vmatprep.subr.mxu0 0.0
        %2114 = vmatpush1.msra.mxu0 0.0
        %2115 = vmatprep.subr.mxu0 0.0
        %2116 = vmatpush1.msra.mxu0 0.0
        %2117 = vmatprep.subr.mxu0 0.0
        %2118 = vmatpush1.msra.mxu0 0.0
        %2119 = vmatprep.subr.mxu0 0.0
        %2120 = vmatpush1.msra.mxu0 0.0
        %2121 = vmatprep.subr.mxu0 0.0
        %2122 = vmatpush1.msra.mxu0 0.0
        %2123 = vmatprep.subr.mxu0 0.0
        %2124 = vmatpush1.msra.mxu0 0.0
        %2125 = vmatprep.subr.mxu0 0.0
        %2126 = vmatpush1.msra.mxu0 0.0
        %2127 = vmatprep.subr.mxu0 0.0
        %2128 = vmatpush1.msra.mxu0 0.0
        %2129 = vmatprep.subr.mxu0 0.0
        %2130 = vmatpush1.msra.mxu0 0.0
        %2131 = vmatprep.subr.mxu0 0.0
        %2132 = vmatpush1.msra.mxu0 0.0
        %2133 = vmatprep.subr.mxu0 0.0
        %2134 = vmatpush1.msra.mxu0 0.0
        %2135 = vmatprep.subr.mxu0 0.0
        %2136 = vmatpush1.msra.mxu0 0.0
        %2137 = vmatprep.subr.mxu0 0.0
        %2138 = vmatpush1.msra.mxu0 0.0
        %2139 = vmatprep.subr.mxu0 0.0
        %2140 = vmatpush1.msra.mxu0 0.0
        %2141 = vmatprep.subr.mxu0 0.0
        %2142 = vmatpush1.msra.mxu0 0.0
        %2143 = vmatprep.subr.mxu0 0.0
        %2144 = vmatpush1.msra.mxu0 0.0
        %2145 = vmatprep.subr.mxu0 0.0
        %2146 = vmatpush1.msra.mxu0 0.0
        %2147 = vmatprep.subr.mxu0 0.0
        %2148 = vmatpush1.msra.mxu0 0.0
        %2149 = vmatprep.subr.mxu0 0.0
        %2150 = vmatpush1.msra.mxu0 0.0
        %2151 = vmatprep.subr.mxu0 0.0
        %2152 = vmatpush1.msra.mxu0 0.0
        %2153 = vmatprep.subr.mxu0 0.0
        %2154 = vmatpush1.msra.mxu0 0.0
        %2155 = vmatprep.subr.mxu0 0.0
        %2156 = vmatpush1.msra.mxu0 0.0
        %2157 = vmatprep.mubr.f32.mxu0 0.0
        %2158 = vmatmul.mubr.f32.gmra.mrb[0].mxu0 %v1811
        %v2159 = vpop.f32.mrb[0].mxu0
        %v2160 = vadd.f32 %v1789, %v2159
        %v2161 = vpop.f32.mrb[0].mxu0
        %2162 = vdwg.mxu0
        %2163 = vmatprep.subr.mxu0 0.0
        %2164 = vmatpush1.msra.mxu0 %v1742
        %2165 = vmatprep.subr.mxu0 0.0
        %2166 = vmatpush1.msra.mxu0 %v1743
        %2167 = vmatprep.subr.mxu0 0.0
        %2168 = vmatpush1.msra.mxu0 %v1744
        %2169 = vmatprep.subr.mxu0 0.0
        %2170 = vmatpush1.msra.mxu0 %v1745
        %2171 = vmatprep.subr.mxu0 0.0
        %2172 = vmatpush1.msra.mxu0 0.0
        %2173 = vmatprep.subr.mxu0 0.0
        %2174 = vmatpush1.msra.mxu0 0.0
        %2175 = vmatprep.subr.mxu0 0.0
        %2176 = vmatpush1.msra.mxu0 0.0
        %2177 = vmatprep.subr.mxu0 0.0
        %2178 = vmatpush1.msra.mxu0 0.0
        %2179 = vmatprep.subr.mxu0 0.0
        %2180 = vmatpush1.msra.mxu0 0.0
        %2181 = vmatprep.subr.mxu0 0.0
        %2182 = vmatpush1.msra.mxu0 0.0
        %2183 = vmatprep.subr.mxu0 0.0
        %2184 = vmatpush1.msra.mxu0 0.0
        %2185 = vmatprep.subr.mxu0 0.0
        %2186 = vmatpush1.msra.mxu0 0.0
        %2187 = vmatprep.subr.mxu0 0.0
        %2188 = vmatpush1.msra.mxu0 0.0
        %2189 = vmatprep.subr.mxu0 0.0
        %2190 = vmatpush1.msra.mxu0 0.0
        %2191 = vmatprep.subr.mxu0 0.0
        %2192 = vmatpush1.msra.mxu0 0.0
        %2193 = vmatprep.subr.mxu0 0.0
        %2194 = vmatpush1.msra.mxu0 0.0
        %2195 = vmatprep.subr.mxu0 0.0
        %2196 = vmatpush1.msra.mxu0 0.0
        %2197 = vmatprep.subr.mxu0 0.0
        %2198 = vmatpush1.msra.mxu0 0.0
        %2199 = vmatprep.subr.mxu0 0.0
        %2200 = vmatpush1.msra.mxu0 0.0
        %2201 = vmatprep.subr.mxu0 0.0
        %2202 = vmatpush1.msra.mxu0 0.0
        %2203 = vmatprep.subr.mxu0 0.0
        %2204 = vmatpush1.msra.mxu0 0.0
        %2205 = vmatprep.subr.mxu0 0.0
        %2206 = vmatpush1.msra.mxu0 0.0
        %2207 = vmatprep.subr.mxu0 0.0
        %2208 = vmatpush1.msra.mxu0 0.0
        %2209 = vmatprep.subr.mxu0 0.0
        %2210 = vmatpush1.msra.mxu0 0.0
        %2211 = vmatprep.subr.mxu0 0.0
        %2212 = vmatpush1.msra.mxu0 0.0
        %2213 = vmatprep.subr.mxu0 0.0
        %2214 = vmatpush1.msra.mxu0 0.0
        %2215 = vmatprep.subr.mxu0 0.0
        %2216 = vmatpush1.msra.mxu0 0.0
        %2217 = vmatprep.subr.mxu0 0.0
        %2218 = vmatpush1.msra.mxu0 0.0
        %2219 = vmatprep.subr.mxu0 0.0
        %2220 = vmatpush1.msra.mxu0 0.0
        %2221 = vmatprep.subr.mxu0 0.0
        %2222 = vmatpush1.msra.mxu0 0.0
        %2223 = vmatprep.subr.mxu0 0.0
        %2224 = vmatpush1.msra.mxu0 0.0
        %2225 = vmatprep.subr.mxu0 0.0
        %2226 = vmatpush1.msra.mxu0 0.0
        %2227 = vmatprep.mubr.f32.mxu0 0.0
        %2228 = vmatmul.mubr.f32.gmra.mrb[0].mxu0 %v1811
        %v2229 = vpop.f32.mrb[0].mxu0
        %v2230 = vadd.f32 %v1793, %v2229
        %v2231 = vpop.f32.mrb[0].mxu0
        %2232 = vdwg.mxu0
        %2233 = vmatprep.subr.mxu0 0.0
        %2234 = vmatpush1.msra.mxu0 %v1746
        %2235 = vmatprep.subr.mxu0 0.0
        %2236 = vmatpush1.msra.mxu0 %v1747
        %2237 = vmatprep.subr.mxu0 0.0
        %2238 = vmatpush1.msra.mxu0 %v1748
        %2239 = vmatprep.subr.mxu0 0.0
        %2240 = vmatpush1.msra.mxu0 %v1749
        %2241 = vmatprep.subr.mxu0 0.0
        %2242 = vmatpush1.msra.mxu0 0.0
        %2243 = vmatprep.subr.mxu0 0.0
        %2244 = vmatpush1.msra.mxu0 0.0
        %2245 = vmatprep.subr.mxu0 0.0
        %2246 = vmatpush1.msra.mxu0 0.0
        %2247 = vmatprep.subr.mxu0 0.0
        %2248 = vmatpush1.msra.mxu0 0.0
        %2249 = vmatprep.subr.mxu0 0.0
        %2250 = vmatpush1.msra.mxu0 0.0
        %2251 = vmatprep.subr.mxu0 0.0
        %2252 = vmatpush1.msra.mxu0 0.0
        %2253 = vmatprep.subr.mxu0 0.0
        %2254 = vmatpush1.msra.mxu0 0.0
        %2255 = vmatprep.subr.mxu0 0.0
        %2256 = vmatpush1.msra.mxu0 0.0
        %2257 = vmatprep.subr.mxu0 0.0
        %2258 = vmatpush1.msra.mxu0 0.0
        %2259 = vmatprep.subr.mxu0 0.0
        %2260 = vmatpush1.msra.mxu0 0.0
        %2261 = vmatprep.subr.mxu0 0.0
        %2262 = vmatpush1.msra.mxu0 0.0
        %2263 = vmatprep.subr.mxu0 0.0
        %2264 = vmatpush1.msra.mxu0 0.0
        %2265 = vmatprep.subr.mxu0 0.0
        %2266 = vmatpush1.msra.mxu0 0.0
        %2267 = vmatprep.subr.mxu0 0.0
        %2268 = vmatpush1.msra.mxu0 0.0
        %2269 = vmatprep.subr.mxu0 0.0
        %2270 = vmatpush1.msra.mxu0 0.0
        %2271 = vmatprep.subr.mxu0 0.0
        %2272 = vmatpush1.msra.mxu0 0.0
        %2273 = vmatprep.subr.mxu0 0.0
        %2274 = vmatpush1.msra.mxu0 0.0
        %2275 = vmatprep.subr.mxu0 0.0
        %2276 = vmatpush1.msra.mxu0 0.0
        %2277 = vmatprep.subr.mxu0 0.0
        %2278 = vmatpush1.msra.mxu0 0.0
        %2279 = vmatprep.subr.mxu0 0.0
        %2280 = vmatpush1.msra.mxu0 0.0
        %2281 = vmatprep.subr.mxu0 0.0
        %2282 = vmatpush1.msra.mxu0 0.0
        %2283 = vmatprep.subr.mxu0 0.0
        %2284 = vmatpush1.msra.mxu0 0.0
        %2285 = vmatprep.subr.mxu0 0.0
        %2286 = vmatpush1.msra.mxu0 0.0
        %2287 = vmatprep.subr.mxu0 0.0
        %2288 = vmatpush1.msra.mxu0 0.0
        %2289 = vmatprep.subr.mxu0 0.0
        %2290 = vmatpush1.msra.mxu0 0.0
        %2291 = vmatprep.subr.mxu0 0.0
        %2292 = vmatpush1.msra.mxu0 0.0
        %2293 = vmatprep.subr.mxu0 0.0
        %2294 = vmatpush1.msra.mxu0 0.0
        %2295 = vmatprep.subr.mxu0 0.0
        %2296 = vmatpush1.msra.mxu0 0.0
        %2297 = vmatprep.mubr.f32.mxu0 0.0
        %2298 = vmatmul.mubr.f32.gmra.mrb[0].mxu0 %v1811
        %v2299 = vpop.f32.mrb[0].mxu0
        %v2300 = vadd.f32 %v1797, %v2299
        %v2301 = vpop.f32.mrb[0].mxu0
        %2302 = vdwg.mxu0
        %2303 = vmatprep.subr.mxu0 0.0
        %2304 = vmatpush1.msra.mxu0 %v1750
        %2305 = vmatprep.subr.mxu0 0.0
        %2306 = vmatpush1.msra.mxu0 %v1751
        %2307 = vmatprep.subr.mxu0 0.0
        %2308 = vmatpush1.msra.mxu0 %v1752
        %2309 = vmatprep.subr.mxu0 0.0
        %2310 = vmatpush1.msra.mxu0 %v1753
        %2311 = vmatprep.subr.mxu0 0.0
        %2312 = vmatpush1.msra.mxu0 0.0
        %2313 = vmatprep.subr.mxu0 0.0
        %2314 = vmatpush1.msra.mxu0 0.0
        %2315 = vmatprep.subr.mxu0 0.0
        %2316 = vmatpush1.msra.mxu0 0.0
        %2317 = vmatprep.subr.mxu0 0.0
        %2318 = vmatpush1.msra.mxu0 0.0
        %2319 = vmatprep.subr.mxu0 0.0
        %2320 = vmatpush1.msra.mxu0 0.0
        %2321 = vmatprep.subr.mxu0 0.0
        %2322 = vmatpush1.msra.mxu0 0.0
        %2323 = vmatprep.subr.mxu0 0.0
        %2324 = vmatpush1.msra.mxu0 0.0
        %2325 = vmatprep.subr.mxu0 0.0
        %2326 = vmatpush1.msra.mxu0 0.0
        %2327 = vmatprep.subr.mxu0 0.0
        %2328 = vmatpush1.msra.mxu0 0.0
        %2329 = vmatprep.subr.mxu0 0.0
        %2330 = vmatpush1.msra.mxu0 0.0
        %2331 = vmatprep.subr.mxu0 0.0
        %2332 = vmatpush1.msra.mxu0 0.0
        %2333 = vmatprep.subr.mxu0 0.0
        %2334 = vmatpush1.msra.mxu0 0.0
        %2335 = vmatprep.subr.mxu0 0.0
        %2336 = vmatpush1.msra.mxu0 0.0
        %2337 = vmatprep.subr.mxu0 0.0
        %2338 = vmatpush1.msra.mxu0 0.0
        %2339 = vmatprep.subr.mxu0 0.0
        %2340 = vmatpush1.msra.mxu0 0.0
        %2341 = vmatprep.subr.mxu0 0.0
        %2342 = vmatpush1.msra.mxu0 0.0
        %2343 = vmatprep.subr.mxu0 0.0
        %2344 = vmatpush1.msra.mxu0 0.0
        %2345 = vmatprep.subr.mxu0 0.0
        %2346 = vmatpush1.msra.mxu0 0.0
        %2347 = vmatprep.subr.mxu0 0.0
        %2348 = vmatpush1.msra.mxu0 0.0
        %2349 = vmatprep.subr.mxu0 0.0
        %2350 = vmatpush1.msra.mxu0 0.0
        %2351 = vmatprep.subr.mxu0 0.0
        %2352 = vmatpush1.msra.mxu0 0.0
        %2353 = vmatprep.subr.mxu0 0.0
        %2354 = vmatpush1.msra.mxu0 0.0
        %2355 = vmatprep.subr.mxu0 0.0
        %2356 = vmatpush1.msra.mxu0 0.0
        %2357 = vmatprep.subr.mxu0 0.0
        %2358 = vmatpush1.msra.mxu0 0.0
        %2359 = vmatprep.subr.mxu0 0.0
        %2360 = vmatpush1.msra.mxu0 0.0
        %2361 = vmatprep.subr.mxu0 0.0
        %2362 = vmatpush1.msra.mxu0 0.0
        %2363 = vmatprep.subr.mxu0 0.0
        %2364 = vmatpush1.msra.mxu0 0.0
        %2365 = vmatprep.subr.mxu0 0.0
        %2366 = vmatpush1.msra.mxu0 0.0
        %2367 = vmatprep.mubr.f32.mxu0 0.0
        %2368 = vmatmul.mubr.f32.gmra.mrb[0].mxu0 %v1811
        %v2369 = vpop.f32.mrb[0].mxu0
        %v2370 = vadd.f32 %v1801, %v2369
        %v2371 = vpop.f32.mrb[0].mxu0
        %2372 = vdwg.mxu0
        %vm2373 = vcmask 31744
        %v2375 = vsel %vm2373, %v578, 0
        %v2378 = vsel %vm2373, %v1229, 0
        %2380 = vmatprep.subr.mxu0 0.0
        %2381 = vmatpush1.xpose.msra.mxu0 %v2378
        %2382 = vmatprep.subr.mxu0 0.0
        %2383 = vmatpush1.xpose.msra.mxu0 0.0
        %2384 = vmatprep.subr.mxu0 0.0
        %2385 = vmatpush1.xpose.msra.mxu0 0.0
        %2386 = vmatprep.subr.mxu0 0.0
        %2387 = vmatpush1.xpose.msra.mxu0 0.0
        %2388 = vmatprep.subr.mxu0 0.0
        %2389 = vmatpush1.xpose.msra.mxu0 0.0
        %2390 = vmatprep.subr.mxu0 0.0
        %2391 = vmatpush1.xpose.msra.mxu0 0.0
        %2392 = vmatprep.subr.mxu0 0.0
        %2393 = vmatpush1.xpose.msra.mxu0 0.0
        %2394 = vmatprep.subr.mxu0 0.0
        %2395 = vmatpush1.xpose.msra.mxu0 0.0
        %2396 = vmatprep.subr.mxu0 0.0
        %2397 = vmatpush1.xpose.msra.mxu0 0.0
        %2398 = vmatprep.subr.mxu0 0.0
        %2399 = vmatpush1.xpose.msra.mxu0 0.0
        %2400 = vmatprep.subr.mxu0 0.0
        %2401 = vmatpush1.xpose.msra.mxu0 0.0
        %2402 = vmatprep.subr.mxu0 0.0
        %2403 = vmatpush1.xpose.msra.mxu0 0.0
        %2404 = vmatprep.subr.mxu0 0.0
        %2405 = vmatpush1.xpose.msra.mxu0 0.0
        %2406 = vmatprep.subr.mxu0 0.0
        %2407 = vmatpush1.xpose.msra.mxu0 0.0
        %2408 = vmatprep.subr.mxu0 0.0
        %2409 = vmatpush1.xpose.msra.mxu0 0.0
        %2410 = vmatprep.subr.mxu0 0.0
        %2411 = vmatpush1.xpose.msra.mxu0 0.0
        %2412 = vmatprep.subr.mxu0 0.0
        %2413 = vmatpush1.xpose.msra.mxu0 0.0
        %2414 = vmatprep.subr.mxu0 0.0
        %2415 = vmatpush1.xpose.msra.mxu0 0.0
        %2416 = vmatprep.subr.mxu0 0.0
        %2417 = vmatpush1.xpose.msra.mxu0 0.0
        %2418 = vmatprep.subr.mxu0 0.0
        %2419 = vmatpush1.xpose.msra.mxu0 0.0
        %2420 = vmatprep.subr.mxu0 0.0
        %2421 = vmatpush1.xpose.msra.mxu0 0.0
        %2422 = vmatprep.subr.mxu0 0.0
        %2423 = vmatpush1.xpose.msra.mxu0 0.0
        %2424 = vmatprep.subr.mxu0 0.0
        %2425 = vmatpush1.xpose.msra.mxu0 0.0
        %2426 = vmatprep.subr.mxu0 0.0
        %2427 = vmatpush1.xpose.msra.mxu0 0.0
        %2428 = vmatprep.subr.mxu0 0.0
        %2429 = vmatpush1.xpose.msra.mxu0 0.0
        %2430 = vmatprep.subr.mxu0 0.0
        %2431 = vmatpush1.xpose.msra.mxu0 0.0
        %2432 = vmatprep.subr.mxu0 0.0
        %2433 = vmatpush1.xpose.msra.mxu0 0.0
        %2434 = vmatprep.subr.mxu0 0.0
        %2435 = vmatpush1.xpose.msra.mxu0 0.0
        %2436 = vmatprep.subr.mxu0 0.0
        %2437 = vmatpush1.xpose.msra.mxu0 0.0
        %2438 = vmatprep.subr.mxu0 0.0
        %2439 = vmatpush1.xpose.msra.mxu0 0.0
        %2440 = vmatprep.subr.mxu0 0.0
        %2441 = vmatpush1.xpose.msra.mxu0 0.0
        %2442 = vmatprep.subr.mxu0 0.0
        %2443 = vmatpush1.xpose.msra.mxu0 0.0
        %2444 = vmatprep.mubr.f32.mxu0 0.0
        %2445 = vmatmul.mubr.f32.gmra.mrb[0].mxu0 %v2375
        %v2446 = vpop.f32.mrb[0].mxu0
        %v2447 = vadd.f32 0.0, %v2446
        %v2448 = vpop.f32.mrb[0].mxu0
        %2449 = vdwg.mxu0
        %v2451 = vsel %vm2373, %v648, 0
        %v2454 = vsel %vm2373, %v1299, 0
        %2456 = vmatprep.subr.mxu0 0.0
        %2457 = vmatpush1.xpose.msra.mxu0 %v2454
        %2458 = vmatprep.subr.mxu0 0.0
        %2459 = vmatpush1.xpose.msra.mxu0 0.0
        %2460 = vmatprep.subr.mxu0 0.0
        %2461 = vmatpush1.xpose.msra.mxu0 0.0
        %2462 = vmatprep.subr.mxu0 0.0
        %2463 = vmatpush1.xpose.msra.mxu0 0.0
        %2464 = vmatprep.subr.mxu0 0.0
        %2465 = vmatpush1.xpose.msra.mxu0 0.0
        %2466 = vmatprep.subr.mxu0 0.0
        %2467 = vmatpush1.xpose.msra.mxu0 0.0
        %2468 = vmatprep.subr.mxu0 0.0
        %2469 = vmatpush1.xpose.msra.mxu0 0.0
        %2470 = vmatprep.subr.mxu0 0.0
        %2471 = vmatpush1.xpose.msra.mxu0 0.0
        %2472 = vmatprep.subr.mxu0 0.0
        %2473 = vmatpush1.xpose.msra.mxu0 0.0
        %2474 = vmatprep.subr.mxu0 0.0
        %2475 = vmatpush1.xpose.msra.mxu0 0.0
        %2476 = vmatprep.subr.mxu0 0.0
        %2477 = vmatpush1.xpose.msra.mxu0 0.0
        %2478 = vmatprep.subr.mxu0 0.0
        %2479 = vmatpush1.xpose.msra.mxu0 0.0
        %2480 = vmatprep.subr.mxu0 0.0
        %2481 = vmatpush1.xpose.msra.mxu0 0.0
        %2482 = vmatprep.subr.mxu0 0.0
        %2483 = vmatpush1.xpose.msra.mxu0 0.0
        %2484 = vmatprep.subr.mxu0 0.0
        %2485 = vmatpush1.xpose.msra.mxu0 0.0
        %2486 = vmatprep.subr.mxu0 0.0
        %2487 = vmatpush1.xpose.msra.mxu0 0.0
        %2488 = vmatprep.subr.mxu0 0.0
        %2489 = vmatpush1.xpose.msra.mxu0 0.0
        %2490 = vmatprep.subr.mxu0 0.0
        %2491 = vmatpush1.xpose.msra.mxu0 0.0
        %2492 = vmatprep.subr.mxu0 0.0
        %2493 = vmatpush1.xpose.msra.mxu0 0.0
        %2494 = vmatprep.subr.mxu0 0.0
        %2495 = vmatpush1.xpose.msra.mxu0 0.0
        %2496 = vmatprep.subr.mxu0 0.0
        %2497 = vmatpush1.xpose.msra.mxu0 0.0
        %2498 = vmatprep.subr.mxu0 0.0
        %2499 = vmatpush1.xpose.msra.mxu0 0.0
        %2500 = vmatprep.subr.mxu0 0.0
        %2501 = vmatpush1.xpose.msra.mxu0 0.0
        %2502 = vmatprep.subr.mxu0 0.0
        %2503 = vmatpush1.xpose.msra.mxu0 0.0
        %2504 = vmatprep.subr.mxu0 0.0
        %2505 = vmatpush1.xpose.msra.mxu0 0.0
        %2506 = vmatprep.subr.mxu0 0.0
        %2507 = vmatpush1.xpose.msra.mxu0 0.0
        %2508 = vmatprep.subr.mxu0 0.0
        %2509 = vmatpush1.xpose.msra.mxu0 0.0
        %2510 = vmatprep.subr.mxu0 0.0
        %2511 = vmatpush1.xpose.msra.mxu0 0.0
        %2512 = vmatprep.subr.mxu0 0.0
        %2513 = vmatpush1.xpose.msra.mxu0 0.0
        %2514 = vmatprep.subr.mxu0 0.0
        %2515 = vmatpush1.xpose.msra.mxu0 0.0
        %2516 = vmatprep.subr.mxu0 0.0
        %2517 = vmatpush1.xpose.msra.mxu0 0.0
        %2518 = vmatprep.subr.mxu0 0.0
        %2519 = vmatpush1.xpose.msra.mxu0 0.0
        %2520 = vmatprep.mubr.f32.mxu0 0.0
        %2521 = vmatmul.mubr.f32.gmra.mrb[0].mxu0 %v2451
        %v2522 = vpop.f32.mrb[0].mxu0
        %v2523 = vadd.f32 0.0, %v2522
        %v2524 = vpop.f32.mrb[0].mxu0
        %2525 = vdwg.mxu0
        %v2527 = vsel %vm2373, %v718, 0
        %v2530 = vsel %vm2373, %v1369, 0
        %2532 = vmatprep.subr.mxu0 0.0
        %2533 = vmatpush1.xpose.msra.mxu0 %v2530
        %2534 = vmatprep.subr.mxu0 0.0
        %2535 = vmatpush1.xpose.msra.mxu0 0.0
        %2536 = vmatprep.subr.mxu0 0.0
        %2537 = vmatpush1.xpose.msra.mxu0 0.0
        %2538 = vmatprep.subr.mxu0 0.0
        %2539 = vmatpush1.xpose.msra.mxu0 0.0
        %2540 = vmatprep.subr.mxu0 0.0
        %2541 = vmatpush1.xpose.msra.mxu0 0.0
        %2542 = vmatprep.subr.mxu0 0.0
        %2543 = vmatpush1.xpose.msra.mxu0 0.0
        %2544 = vmatprep.subr.mxu0 0.0
        %2545 = vmatpush1.xpose.msra.mxu0 0.0
        %2546 = vmatprep.subr.mxu0 0.0
        %2547 = vmatpush1.xpose.msra.mxu0 0.0
        %2548 = vmatprep.subr.mxu0 0.0
        %2549 = vmatpush1.xpose.msra.mxu0 0.0
        %2550 = vmatprep.subr.mxu0 0.0
        %2551 = vmatpush1.xpose.msra.mxu0 0.0
        %2552 = vmatprep.subr.mxu0 0.0
        %2553 = vmatpush1.xpose.msra.mxu0 0.0
        %2554 = vmatprep.subr.mxu0 0.0
        %2555 = vmatpush1.xpose.msra.mxu0 0.0
        %2556 = vmatprep.subr.mxu0 0.0
        %2557 = vmatpush1.xpose.msra.mxu0 0.0
        %2558 = vmatprep.subr.mxu0 0.0
        %2559 = vmatpush1.xpose.msra.mxu0 0.0
        %2560 = vmatprep.subr.mxu0 0.0
        %2561 = vmatpush1.xpose.msra.mxu0 0.0
        %2562 = vmatprep.subr.mxu0 0.0
        %2563 = vmatpush1.xpose.msra.mxu0 0.0
        %2564 = vmatprep.subr.mxu0 0.0
        %2565 = vmatpush1.xpose.msra.mxu0 0.0
        %2566 = vmatprep.subr.mxu0 0.0
        %2567 = vmatpush1.xpose.msra.mxu0 0.0
        %2568 = vmatprep.subr.mxu0 0.0
        %2569 = vmatpush1.xpose.msra.mxu0 0.0
        %2570 = vmatprep.subr.mxu0 0.0
        %2571 = vmatpush1.xpose.msra.mxu0 0.0
        %2572 = vmatprep.subr.mxu0 0.0
        %2573 = vmatpush1.xpose.msra.mxu0 0.0
        %2574 = vmatprep.subr.mxu0 0.0
        %2575 = vmatpush1.xpose.msra.mxu0 0.0
        %2576 = vmatprep.subr.mxu0 0.0
        %2577 = vmatpush1.xpose.msra.mxu0 0.0
        %2578 = vmatprep.subr.mxu0 0.0
        %2579 = vmatpush1.xpose.msra.mxu0 0.0
        %2580 = vmatprep.subr.mxu0 0.0
        %2581 = vmatpush1.xpose.msra.mxu0 0.0
        %2582 = vmatprep.subr.mxu0 0.0
        %2583 = vmatpush1.xpose.msra.mxu0 0.0
        %2584 = vmatprep.subr.mxu0 0.0
        %2585 = vmatpush1.xpose.msra.mxu0 0.0
        %2586 = vmatprep.subr.mxu0 0.0
        %2587 = vmatpush1.xpose.msra.mxu0 0.0
        %2588 = vmatprep.subr.mxu0 0.0
        %2589 = vmatpush1.xpose.msra.mxu0 0.0
        %2590 = vmatprep.subr.mxu0 0.0
        %2591 = vmatpush1.xpose.msra.mxu0 0.0
        %2592 = vmatprep.subr.mxu0 0.0
        %2593 = vmatpush1.xpose.msra.mxu0 0.0
        %2594 = vmatprep.subr.mxu0 0.0
        %2595 = vmatpush1.xpose.msra.mxu0 0.0
        %2596 = vmatprep.mubr.f32.mxu0 0.0
        %2597 = vmatmul.mubr.f32.gmra.mrb[0].mxu0 %v2527
        %v2598 = vpop.f32.mrb[0].mxu0
        %v2599 = vadd.f32 0.0, %v2598
        %v2600 = vpop.f32.mrb[0].mxu0
        %2601 = vdwg.mxu0
        %v2603 = vsel %vm2373, %v788, 0
        %v2606 = vsel %vm2373, %v1439, 0
        %2608 = vmatprep.subr.mxu0 0.0
        %2609 = vmatpush1.xpose.msra.mxu0 %v2606
        %2610 = vmatprep.subr.mxu0 0.0
        %2611 = vmatpush1.xpose.msra.mxu0 0.0
        %2612 = vmatprep.subr.mxu0 0.0
        %2613 = vmatpush1.xpose.msra.mxu0 0.0
        %2614 = vmatprep.subr.mxu0 0.0
        %2615 = vmatpush1.xpose.msra.mxu0 0.0
        %2616 = vmatprep.subr.mxu0 0.0
        %2617 = vmatpush1.xpose.msra.mxu0 0.0
        %2618 = vmatprep.subr.mxu0 0.0
        %2619 = vmatpush1.xpose.msra.mxu0 0.0
        %2620 = vmatprep.subr.mxu0 0.0
        %2621 = vmatpush1.xpose.msra.mxu0 0.0
        %2622 = vmatprep.subr.mxu0 0.0
        %2623 = vmatpush1.xpose.msra.mxu0 0.0
        %2624 = vmatprep.subr.mxu0 0.0
        %2625 = vmatpush1.xpose.msra.mxu0 0.0
        %2626 = vmatprep.subr.mxu0 0.0
        %2627 = vmatpush1.xpose.msra.mxu0 0.0
        %2628 = vmatprep.subr.mxu0 0.0
        %2629 = vmatpush1.xpose.msra.mxu0 0.0
        %2630 = vmatprep.subr.mxu0 0.0
        %2631 = vmatpush1.xpose.msra.mxu0 0.0
        %2632 = vmatprep.subr.mxu0 0.0
        %2633 = vmatpush1.xpose.msra.mxu0 0.0
        %2634 = vmatprep.subr.mxu0 0.0
        %2635 = vmatpush1.xpose.msra.mxu0 0.0
        %2636 = vmatprep.subr.mxu0 0.0
        %2637 = vmatpush1.xpose.msra.mxu0 0.0
        %2638 = vmatprep.subr.mxu0 0.0
        %2639 = vmatpush1.xpose.msra.mxu0 0.0
        %2640 = vmatprep.subr.mxu0 0.0
        %2641 = vmatpush1.xpose.msra.mxu0 0.0
        %2642 = vmatprep.subr.mxu0 0.0
        %2643 = vmatpush1.xpose.msra.mxu0 0.0
        %2644 = vmatprep.subr.mxu0 0.0
        %2645 = vmatpush1.xpose.msra.mxu0 0.0
        %2646 = vmatprep.subr.mxu0 0.0
        %2647 = vmatpush1.xpose.msra.mxu0 0.0
        %2648 = vmatprep.subr.mxu0 0.0
        %2649 = vmatpush1.xpose.msra.mxu0 0.0
        %2650 = vmatprep.subr.mxu0 0.0
        %2651 = vmatpush1.xpose.msra.mxu0 0.0
        %2652 = vmatprep.subr.mxu0 0.0
        %2653 = vmatpush1.xpose.msra.mxu0 0.0
        %2654 = vmatprep.subr.mxu0 0.0
        %2655 = vmatpush1.xpose.msra.mxu0 0.0
        %2656 = vmatprep.subr.mxu0 0.0
        %2657 = vmatpush1.xpose.msra.mxu0 0.0
        %2658 = vmatprep.subr.mxu0 0.0
        %2659 = vmatpush1.xpose.msra.mxu0 0.0
        %2660 = vmatprep.subr.mxu0 0.0
        %2661 = vmatpush1.xpose.msra.mxu0 0.0
        %2662 = vmatprep.subr.mxu0 0.0
        %2663 = vmatpush1.xpose.msra.mxu0 0.0
        %2664 = vmatprep.subr.mxu0 0.0
        %2665 = vmatpush1.xpose.msra.mxu0 0.0
        %2666 = vmatprep.subr.mxu0 0.0
        %2667 = vmatpush1.xpose.msra.mxu0 0.0
        %2668 = vmatprep.subr.mxu0 0.0
        %2669 = vmatpush1.xpose.msra.mxu0 0.0
        %2670 = vmatprep.subr.mxu0 0.0
        %2671 = vmatpush1.xpose.msra.mxu0 0.0
        %2672 = vmatprep.mubr.f32.mxu0 0.0
        %2673 = vmatmul.mubr.f32.gmra.mrb[0].mxu0 %v2603
        %v2674 = vpop.f32.mrb[0].mxu0
        %v2675 = vadd.f32 0.0, %v2674
        %v2676 = vpop.f32.mrb[0].mxu0
        %2677 = vdwg.mxu0
        %v2679 = vsel %vm2373, %v858, 0
        %v2682 = vsel %vm2373, %v1509, 0
        %2684 = vmatprep.subr.mxu0 0.0
        %2685 = vmatpush1.xpose.msra.mxu0 %v2682
        %2686 = vmatprep.subr.mxu0 0.0
        %2687 = vmatpush1.xpose.msra.mxu0 0.0
        %2688 = vmatprep.subr.mxu0 0.0
        %2689 = vmatpush1.xpose.msra.mxu0 0.0
        %2690 = vmatprep.subr.mxu0 0.0
        %2691 = vmatpush1.xpose.msra.mxu0 0.0
        %2692 = vmatprep.subr.mxu0 0.0
        %2693 = vmatpush1.xpose.msra.mxu0 0.0
        %2694 = vmatprep.subr.mxu0 0.0
        %2695 = vmatpush1.xpose.msra.mxu0 0.0
        %2696 = vmatprep.subr.mxu0 0.0
        %2697 = vmatpush1.xpose.msra.mxu0 0.0
        %2698 = vmatprep.subr.mxu0 0.0
        %2699 = vmatpush1.xpose.msra.mxu0 0.0
        %2700 = vmatprep.subr.mxu0 0.0
        %2701 = vmatpush1.xpose.msra.mxu0 0.0
        %2702 = vmatprep.subr.mxu0 0.0
        %2703 = vmatpush1.xpose.msra.mxu0 0.0
        %2704 = vmatprep.subr.mxu0 0.0
        %2705 = vmatpush1.xpose.msra.mxu0 0.0
        %2706 = vmatprep.subr.mxu0 0.0
        %2707 = vmatpush1.xpose.msra.mxu0 0.0
        %2708 = vmatprep.subr.mxu0 0.0
        %2709 = vmatpush1.xpose.msra.mxu0 0.0
        %2710 = vmatprep.subr.mxu0 0.0
        %2711 = vmatpush1.xpose.msra.mxu0 0.0
        %2712 = vmatprep.subr.mxu0 0.0
        %2713 = vmatpush1.xpose.msra.mxu0 0.0
        %2714 = vmatprep.subr.mxu0 0.0
        %2715 = vmatpush1.xpose.msra.mxu0 0.0
        %2716 = vmatprep.subr.mxu0 0.0
        %2717 = vmatpush1.xpose.msra.mxu0 0.0
        %2718 = vmatprep.subr.mxu0 0.0
        %2719 = vmatpush1.xpose.msra.mxu0 0.0
        %2720 = vmatprep.subr.mxu0 0.0
        %2721 = vmatpush1.xpose.msra.mxu0 0.0
        %2722 = vmatprep.subr.mxu0 0.0
        %2723 = vmatpush1.xpose.msra.mxu0 0.0
        %2724 = vmatprep.subr.mxu0 0.0
        %2725 = vmatpush1.xpose.msra.mxu0 0.0
        %2726 = vmatprep.subr.mxu0 0.0
        %2727 = vmatpush1.xpose.msra.mxu0 0.0
        %2728 = vmatprep.subr.mxu0 0.0
        %2729 = vmatpush1.xpose.msra.mxu0 0.0
        %2730 = vmatprep.subr.mxu0 0.0
        %2731 = vmatpush1.xpose.msra.mxu0 0.0
        %2732 = vmatprep.subr.mxu0 0.0
        %2733 = vmatpush1.xpose.msra.mxu0 0.0
        %2734 = vmatprep.subr.mxu0 0.0
        %2735 = vmatpush1.xpose.msra.mxu0 0.0
        %2736 = vmatprep.subr.mxu0 0.0
        %2737 = vmatpush1.xpose.msra.mxu0 0.0
        %2738 = vmatprep.subr.mxu0 0.0
        %2739 = vmatpush1.xpose.msra.mxu0 0.0
        %2740 = vmatprep.subr.mxu0 0.0
        %2741 = vmatpush1.xpose.msra.mxu0 0.0
        %2742 = vmatprep.subr.mxu0 0.0
        %2743 = vmatpush1.xpose.msra.mxu0 0.0
        %2744 = vmatprep.subr.mxu0 0.0
        %2745 = vmatpush1.xpose.msra.mxu0 0.0
        %2746 = vmatprep.subr.mxu0 0.0
        %2747 = vmatpush1.xpose.msra.mxu0 0.0
        %2748 = vmatprep.mubr.f32.mxu0 0.0
        %2749 = vmatmul.mubr.f32.gmra.mrb[0].mxu0 %v2679
        %v2750 = vpop.f32.mrb[0].mxu0
        %v2751 = vadd.f32 0.0, %v2750
        %v2752 = vpop.f32.mrb[0].mxu0
        %2753 = vdwg.mxu0
        %v2755 = vsel %vm2373, %v928, 0
        %v2758 = vsel %vm2373, %v1579, 0
        %2760 = vmatprep.subr.mxu0 0.0
        %2761 = vmatpush1.xpose.msra.mxu0 %v2758
        %2762 = vmatprep.subr.mxu0 0.0
        %2763 = vmatpush1.xpose.msra.mxu0 0.0
        %2764 = vmatprep.subr.mxu0 0.0
        %2765 = vmatpush1.xpose.msra.mxu0 0.0
        %2766 = vmatprep.subr.mxu0 0.0
        %2767 = vmatpush1.xpose.msra.mxu0 0.0
        %2768 = vmatprep.subr.mxu0 0.0
        %2769 = vmatpush1.xpose.msra.mxu0 0.0
        %2770 = vmatprep.subr.mxu0 0.0
        %2771 = vmatpush1.xpose.msra.mxu0 0.0
        %2772 = vmatprep.subr.mxu0 0.0
        %2773 = vmatpush1.xpose.msra.mxu0 0.0
        %2774 = vmatprep.subr.mxu0 0.0
        %2775 = vmatpush1.xpose.msra.mxu0 0.0
        %2776 = vmatprep.subr.mxu0 0.0
        %2777 = vmatpush1.xpose.msra.mxu0 0.0
        %2778 = vmatprep.subr.mxu0 0.0
        %2779 = vmatpush1.xpose.msra.mxu0 0.0
        %2780 = vmatprep.subr.mxu0 0.0
        %2781 = vmatpush1.xpose.msra.mxu0 0.0
        %2782 = vmatprep.subr.mxu0 0.0
        %2783 = vmatpush1.xpose.msra.mxu0 0.0
        %2784 = vmatprep.subr.mxu0 0.0
        %2785 = vmatpush1.xpose.msra.mxu0 0.0
        %2786 = vmatprep.subr.mxu0 0.0
        %2787 = vmatpush1.xpose.msra.mxu0 0.0
        %2788 = vmatprep.subr.mxu0 0.0
        %2789 = vmatpush1.xpose.msra.mxu0 0.0
        %2790 = vmatprep.subr.mxu0 0.0
        %2791 = vmatpush1.xpose.msra.mxu0 0.0
        %2792 = vmatprep.subr.mxu0 0.0
        %2793 = vmatpush1.xpose.msra.mxu0 0.0
        %2794 = vmatprep.subr.mxu0 0.0
        %2795 = vmatpush1.xpose.msra.mxu0 0.0
        %2796 = vmatprep.subr.mxu0 0.0
        %2797 = vmatpush1.xpose.msra.mxu0 0.0
        %2798 = vmatprep.subr.mxu0 0.0
        %2799 = vmatpush1.xpose.msra.mxu0 0.0
        %2800 = vmatprep.subr.mxu0 0.0
        %2801 = vmatpush1.xpose.msra.mxu0 0.0
        %2802 = vmatprep.subr.mxu0 0.0
        %2803 = vmatpush1.xpose.msra.mxu0 0.0
        %2804 = vmatprep.subr.mxu0 0.0
        %2805 = vmatpush1.xpose.msra.mxu0 0.0
        %2806 = vmatprep.subr.mxu0 0.0
        %2807 = vmatpush1.xpose.msra.mxu0 0.0
        %2808 = vmatprep.subr.mxu0 0.0
        %2809 = vmatpush1.xpose.msra.mxu0 0.0
        %2810 = vmatprep.subr.mxu0 0.0
        %2811 = vmatpush1.xpose.msra.mxu0 0.0
        %2812 = vmatprep.subr.mxu0 0.0
        %2813 = vmatpush1.xpose.msra.mxu0 0.0
        %2814 = vmatprep.subr.mxu0 0.0
        %2815 = vmatpush1.xpose.msra.mxu0 0.0
        %2816 = vmatprep.subr.mxu0 0.0
        %2817 = vmatpush1.xpose.msra.mxu0 0.0
        %2818 = vmatprep.subr.mxu0 0.0
        %2819 = vmatpush1.xpose.msra.mxu0 0.0
        %2820 = vmatprep.subr.mxu0 0.0
        %2821 = vmatpush1.xpose.msra.mxu0 0.0
        %2822 = vmatprep.subr.mxu0 0.0
        %2823 = vmatpush1.xpose.msra.mxu0 0.0
        %2824 = vmatprep.mubr.f32.mxu0 0.0
        %2825 = vmatmul.mubr.f32.gmra.mrb[0].mxu0 %v2755
        %v2826 = vpop.f32.mrb[0].mxu0
        %v2827 = vadd.f32 0.0, %v2826
        %v2828 = vpop.f32.mrb[0].mxu0
        %2829 = vdwg.mxu0
        %v2831 = vsel %vm2373, %v998, 0
        %v2834 = vsel %vm2373, %v1649, 0
        %2836 = vmatprep.subr.mxu0 0.0
        %2837 = vmatpush1.xpose.msra.mxu0 %v2834
        %2838 = vmatprep.subr.mxu0 0.0
        %2839 = vmatpush1.xpose.msra.mxu0 0.0
        %2840 = vmatprep.subr.mxu0 0.0
        %2841 = vmatpush1.xpose.msra.mxu0 0.0
        %2842 = vmatprep.subr.mxu0 0.0
        %2843 = vmatpush1.xpose.msra.mxu0 0.0
        %2844 = vmatprep.subr.mxu0 0.0
        %2845 = vmatpush1.xpose.msra.mxu0 0.0
        %2846 = vmatprep.subr.mxu0 0.0
        %2847 = vmatpush1.xpose.msra.mxu0 0.0
        %2848 = vmatprep.subr.mxu0 0.0
        %2849 = vmatpush1.xpose.msra.mxu0 0.0
        %2850 = vmatprep.subr.mxu0 0.0
        %2851 = vmatpush1.xpose.msra.mxu0 0.0
        %2852 = vmatprep.subr.mxu0 0.0
        %2853 = vmatpush1.xpose.msra.mxu0 0.0
        %2854 = vmatprep.subr.mxu0 0.0
        %2855 = vmatpush1.xpose.msra.mxu0 0.0
        %2856 = vmatprep.subr.mxu0 0.0
        %2857 = vmatpush1.xpose.msra.mxu0 0.0
        %2858 = vmatprep.subr.mxu0 0.0
        %2859 = vmatpush1.xpose.msra.mxu0 0.0
        %2860 = vmatprep.subr.mxu0 0.0
        %2861 = vmatpush1.xpose.msra.mxu0 0.0
        %2862 = vmatprep.subr.mxu0 0.0
        %2863 = vmatpush1.xpose.msra.mxu0 0.0
        %2864 = vmatprep.subr.mxu0 0.0
        %2865 = vmatpush1.xpose.msra.mxu0 0.0
        %2866 = vmatprep.subr.mxu0 0.0
        %2867 = vmatpush1.xpose.msra.mxu0 0.0
        %2868 = vmatprep.subr.mxu0 0.0
        %2869 = vmatpush1.xpose.msra.mxu0 0.0
        %2870 = vmatprep.subr.mxu0 0.0
        %2871 = vmatpush1.xpose.msra.mxu0 0.0
        %2872 = vmatprep.subr.mxu0 0.0
        %2873 = vmatpush1.xpose.msra.mxu0 0.0
        %2874 = vmatprep.subr.mxu0 0.0
        %2875 = vmatpush1.xpose.msra.mxu0 0.0
        %2876 = vmatprep.subr.mxu0 0.0
        %2877 = vmatpush1.xpose.msra.mxu0 0.0
        %2878 = vmatprep.subr.mxu0 0.0
        %2879 = vmatpush1.xpose.msra.mxu0 0.0
        %2880 = vmatprep.subr.mxu0 0.0
        %2881 = vmatpush1.xpose.msra.mxu0 0.0
        %2882 = vmatprep.subr.mxu0 0.0
        %2883 = vmatpush1.xpose.msra.mxu0 0.0
        %2884 = vmatprep.subr.mxu0 0.0
        %2885 = vmatpush1.xpose.msra.mxu0 0.0
        %2886 = vmatprep.subr.mxu0 0.0
        %2887 = vmatpush1.xpose.msra.mxu0 0.0
        %2888 = vmatprep.subr.mxu0 0.0
        %2889 = vmatpush1.xpose.msra.mxu0 0.0
        %2890 = vmatprep.subr.mxu0 0.0
        %2891 = vmatpush1.xpose.msra.mxu0 0.0
        %2892 = vmatprep.subr.mxu0 0.0
        %2893 = vmatpush1.xpose.msra.mxu0 0.0
        %2894 = vmatprep.subr.mxu0 0.0
        %2895 = vmatpush1.xpose.msra.mxu0 0.0
        %2896 = vmatprep.subr.mxu0 0.0
        %2897 = vmatpush1.xpose.msra.mxu0 0.0
        %2898 = vmatprep.subr.mxu0 0.0
        %2899 = vmatpush1.xpose.msra.mxu0 0.0
        %2900 = vmatprep.mubr.f32.mxu0 0.0
        %2901 = vmatmul.mubr.f32.gmra.mrb[0].mxu0 %v2831
        %v2902 = vpop.f32.mrb[0].mxu0
        %v2903 = vadd.f32 0.0, %v2902
        %v2904 = vpop.f32.mrb[0].mxu0
        %2905 = vdwg.mxu0
        %v2907 = vsel %vm2373, %v1068, 0
        %v2910 = vsel %vm2373, %v1719, 0
        %2912 = vmatprep.subr.mxu0 0.0
        %2913 = vmatpush1.xpose.msra.mxu0 %v2910
        %2914 = vmatprep.subr.mxu0 0.0
        %2915 = vmatpush1.xpose.msra.mxu0 0.0
        %2916 = vmatprep.subr.mxu0 0.0
        %2917 = vmatpush1.xpose.msra.mxu0 0.0
        %2918 = vmatprep.subr.mxu0 0.0
        %2919 = vmatpush1.xpose.msra.mxu0 0.0
        %2920 = vmatprep.subr.mxu0 0.0
        %2921 = vmatpush1.xpose.msra.mxu0 0.0
        %2922 = vmatprep.subr.mxu0 0.0
        %2923 = vmatpush1.xpose.msra.mxu0 0.0
        %2924 = vmatprep.subr.mxu0 0.0
        %2925 = vmatpush1.xpose.msra.mxu0 0.0
        %2926 = vmatprep.subr.mxu0 0.0
        %2927 = vmatpush1.xpose.msra.mxu0 0.0
        %2928 = vmatprep.subr.mxu0 0.0
        %2929 = vmatpush1.xpose.msra.mxu0 0.0
        %2930 = vmatprep.subr.mxu0 0.0
        %2931 = vmatpush1.xpose.msra.mxu0 0.0
        %2932 = vmatprep.subr.mxu0 0.0
        %2933 = vmatpush1.xpose.msra.mxu0 0.0
        %2934 = vmatprep.subr.mxu0 0.0
        %2935 = vmatpush1.xpose.msra.mxu0 0.0
        %2936 = vmatprep.subr.mxu0 0.0
        %2937 = vmatpush1.xpose.msra.mxu0 0.0
        %2938 = vmatprep.subr.mxu0 0.0
        %2939 = vmatpush1.xpose.msra.mxu0 0.0
        %2940 = vmatprep.subr.mxu0 0.0
        %2941 = vmatpush1.xpose.msra.mxu0 0.0
        %2942 = vmatprep.subr.mxu0 0.0
        %2943 = vmatpush1.xpose.msra.mxu0 0.0
        %2944 = vmatprep.subr.mxu0 0.0
        %2945 = vmatpush1.xpose.msra.mxu0 0.0
        %2946 = vmatprep.subr.mxu0 0.0
        %2947 = vmatpush1.xpose.msra.mxu0 0.0
        %2948 = vmatprep.subr.mxu0 0.0
        %2949 = vmatpush1.xpose.msra.mxu0 0.0
        %2950 = vmatprep.subr.mxu0 0.0
        %2951 = vmatpush1.xpose.msra.mxu0 0.0
        %2952 = vmatprep.subr.mxu0 0.0
        %2953 = vmatpush1.xpose.msra.mxu0 0.0
        %2954 = vmatprep.subr.mxu0 0.0
        %2955 = vmatpush1.xpose.msra.mxu0 0.0
        %2956 = vmatprep.subr.mxu0 0.0
        %2957 = vmatpush1.xpose.msra.mxu0 0.0
        %2958 = vmatprep.subr.mxu0 0.0
        %2959 = vmatpush1.xpose.msra.mxu0 0.0
        %2960 = vmatprep.subr.mxu0 0.0
        %2961 = vmatpush1.xpose.msra.mxu0 0.0
        %2962 = vmatprep.subr.mxu0 0.0
        %2963 = vmatpush1.xpose.msra.mxu0 0.0
        %2964 = vmatprep.subr.mxu0 0.0
        %2965 = vmatpush1.xpose.msra.mxu0 0.0
        %2966 = vmatprep.subr.mxu0 0.0
        %2967 = vmatpush1.xpose.msra.mxu0 0.0
        %2968 = vmatprep.subr.mxu0 0.0
        %2969 = vmatpush1.xpose.msra.mxu0 0.0
        %2970 = vmatprep.subr.mxu0 0.0
        %2971 = vmatpush1.xpose.msra.mxu0 0.0
        %2972 = vmatprep.subr.mxu0 0.0
        %2973 = vmatpush1.xpose.msra.mxu0 0.0
        %2974 = vmatprep.subr.mxu0 0.0
        %2975 = vmatpush1.xpose.msra.mxu0 0.0
        %2976 = vmatprep.mubr.f32.mxu0 0.0
        %2977 = vmatmul.mubr.f32.gmra.mrb[0].mxu0 %v2907
        %v2978 = vpop.f32.mrb[0].mxu0
        %v2979 = vadd.f32 0.0, %v2978
        %v2980 = vpop.f32.mrb[0].mxu0
        %2981 = vdwg.mxu0
        %v2982 = vmul.f32 %v2447, 0.5
        %v2983 = vmul.f32 %v2523, 0.5
        %v2984 = vmul.f32 %v2599, 0.5
        %v2985 = vmul.f32 %v2675, 0.5
        %v2986 = vmul.f32 %v2751, 0.5
        %v2987 = vmul.f32 %v2827, 0.5
        %v2988 = vmul.f32 %v2903, 0.5
        %v2989 = vmul.f32 %v2979, 0.5
        %vm2990 = vcmask 64512
        %v2991 = vsel %vm2990, %v2982, -inf
        %2992 = vmax.xlane.f32.xlu0 %v2991
        %v2993 = vpop.xlane.xlu0 %2992
        %v2994 = vsel %vm2990, %v2983, -inf
        %2995 = vmax.xlane.f32.xlu0 %v2994
        %v2996 = vpop.xlane.xlu0 %2995
        %v2997 = vsel %vm2990, %v2984, -inf
        %2998 = vmax.xlane.f32.xlu0 %v2997
        %v2999 = vpop.xlane.xlu0 %2998
        %v3000 = vsel %vm2990, %v2985, -inf
        %3001 = vmax.xlane.f32.xlu0 %v3000
        %v3002 = vpop.xlane.xlu0 %3001
        %v3003 = vsel %vm2990, %v2986, -inf
        %3004 = vmax.xlane.f32.xlu0 %v3003
        %v3005 = vpop.xlane.xlu0 %3004
        %v3006 = vsel %vm2990, %v2987, -inf
        %3007 = vmax.xlane.f32.xlu0 %v3006
        %v3008 = vpop.xlane.xlu0 %3007
        %v3009 = vsel %vm2990, %v2988, -inf
        %3010 = vmax.xlane.f32.xlu0 %v3009
        %v3011 = vpop.xlane.xlu0 %3010
        %v3012 = vsel %vm2990, %v2989, -inf
        %3013 = vmax.xlane.f32.xlu0 %v3012
        %v3014 = vpop.xlane.xlu0 %3013
        %v3015 = vsub.f32 %v2982, %v2993
        %v3016 = vsub.f32 %v2983, %v2996
        %v3017 = vsub.f32 %v2984, %v2999
        %v3018 = vsub.f32 %v2985, %v3002
        %v3019 = vsub.f32 %v2986, %v3005
        %v3020 = vsub.f32 %v2987, %v3008
        %v3021 = vsub.f32 %v2988, %v3011
        %v3022 = vsub.f32 %v2989, %v3014
        %v3023 = vmul.f32 %v3015, 1.442695
        %v3024 = vpow.pop %v3023
        %v3025 = vmul.f32 %v3016, 1.442695
        %v3026 = vpow.pop %v3025
        %v3027 = vmul.f32 %v3017, 1.442695
        %v3028 = vpow.pop %v3027
        %v3029 = vmul.f32 %v3018, 1.442695
        %v3030 = vpow.pop %v3029
        %v3031 = vmul.f32 %v3019, 1.442695
        %v3032 = vpow.pop %v3031
        %v3033 = vmul.f32 %v3020, 1.442695
        %v3034 = vpow.pop %v3033
        %v3035 = vmul.f32 %v3021, 1.442695
        %v3036 = vpow.pop %v3035
        %v3037 = vmul.f32 %v3022, 1.442695
        %v3038 = vpow.pop %v3037
        %v3039 = vsel %vm2990, %v3024, 0.0
        %3040 = vadd.xlane.f32.xlu0 %v3039
        %v3041 = vpop.xlane.xlu0 %3040
        %v3042 = vsel %vm2990, %v3026, 0.0
        %3043 = vadd.xlane.f32.xlu0 %v3042
        %v3044 = vpop.xlane.xlu0 %3043
        %v3045 = vsel %vm2990, %v3028, 0.0
        %3046 = vadd.xlane.f32.xlu0 %v3045
        %v3047 = vpop.xlane.xlu0 %3046
        %v3048 = vsel %vm2990, %v3030, 0.0
        %3049 = vadd.xlane.f32.xlu0 %v3048
        %v3050 = vpop.xlane.xlu0 %3049
        %v3051 = vsel %vm2990, %v3032, 0.0
        %3052 = vadd.xlane.f32.xlu0 %v3051
        %v3053 = vpop.xlane.xlu0 %3052
        %v3054 = vsel %vm2990, %v3034, 0.0
        %3055 = vadd.xlane.f32.xlu0 %v3054
        %v3056 = vpop.xlane.xlu0 %3055
        %v3057 = vsel %vm2990, %v3036, 0.0
        %3058 = vadd.xlane.f32.xlu0 %v3057
        %v3059 = vpop.xlane.xlu0 %3058
        %v3060 = vsel %vm2990, %v3038, 0.0
        %3061 = vadd.xlane.f32.xlu0 %v3060
        %v3062 = vpop.xlane.xlu0 %3061
        %v3063 = vrcp.pop %v3041
        %v3064 = vrcp.pop %v3044
        %v3065 = vrcp.pop %v3047
        %v3066 = vrcp.pop %v3050
        %v3067 = vrcp.pop %v3053
        %v3068 = vrcp.pop %v3056
        %v3069 = vrcp.pop %v3059
        %v3070 = vrcp.pop %v3062
        %v3071 = vmul.f32 %v3024, %v3063
        %v3072 = vmul.f32 %v3026, %v3064
        %v3073 = vmul.f32 %v3028, %v3065
        %v3074 = vmul.f32 %v3030, %v3066
        %v3075 = vmul.f32 %v3032, %v3067
        %v3076 = vmul.f32 %v3034, %v3068
        %v3077 = vmul.f32 %v3036, %v3069
        %v3078 = vmul.f32 %v3038, %v3070
        %v3080 = vsel %vm2990, %v3071, 0
        %3082 = vmatprep.subr.mxu0 0.0
        %3083 = vmatpush1.msra.mxu0 %v1880
        %3084 = vmatprep.subr.mxu0 0.0
        %3085 = vmatpush1.msra.mxu0 0.0
        %3086 = vmatprep.subr.mxu0 0.0
        %3087 = vmatpush1.msra.mxu0 0.0
        %3088 = vmatprep.subr.mxu0 0.0
        %3089 = vmatpush1.msra.mxu0 0.0
        %3090 = vmatprep.subr.mxu0 0.0
        %3091 = vmatpush1.msra.mxu0 0.0
        %3092 = vmatprep.subr.mxu0 0.0
        %3093 = vmatpush1.msra.mxu0 0.0
        %3094 = vmatprep.subr.mxu0 0.0
        %3095 = vmatpush1.msra.mxu0 0.0
        %3096 = vmatprep.subr.mxu0 0.0
        %3097 = vmatpush1.msra.mxu0 0.0
        %3098 = vmatprep.subr.mxu0 0.0
        %3099 = vmatpush1.msra.mxu0 0.0
        %3100 = vmatprep.subr.mxu0 0.0
        %3101 = vmatpush1.msra.mxu0 0.0
        %3102 = vmatprep.subr.mxu0 0.0
        %3103 = vmatpush1.msra.mxu0 0.0
        %3104 = vmatprep.subr.mxu0 0.0
        %3105 = vmatpush1.msra.mxu0 0.0
        %3106 = vmatprep.subr.mxu0 0.0
        %3107 = vmatpush1.msra.mxu0 0.0
        %3108 = vmatprep.subr.mxu0 0.0
        %3109 = vmatpush1.msra.mxu0 0.0
        %3110 = vmatprep.subr.mxu0 0.0
        %3111 = vmatpush1.msra.mxu0 0.0
        %3112 = vmatprep.subr.mxu0 0.0
        %3113 = vmatpush1.msra.mxu0 0.0
        %3114 = vmatprep.subr.mxu0 0.0
        %3115 = vmatpush1.msra.mxu0 0.0
        %3116 = vmatprep.subr.mxu0 0.0
        %3117 = vmatpush1.msra.mxu0 0.0
        %3118 = vmatprep.subr.mxu0 0.0
        %3119 = vmatpush1.msra.mxu0 0.0
        %3120 = vmatprep.subr.mxu0 0.0
        %3121 = vmatpush1.msra.mxu0 0.0
        %3122 = vmatprep.subr.mxu0 0.0
        %3123 = vmatpush1.msra.mxu0 0.0
        %3124 = vmatprep.subr.mxu0 0.0
        %3125 = vmatpush1.msra.mxu0 0.0
        %3126 = vmatprep.subr.mxu0 0.0
        %3127 = vmatpush1.msra.mxu0 0.0
        %3128 = vmatprep.subr.mxu0 0.0
        %3129 = vmatpush1.msra.mxu0 0.0
        %3130 = vmatprep.subr.mxu0 0.0
        %3131 = vmatpush1.msra.mxu0 0.0
        %3132 = vmatprep.subr.mxu0 0.0
        %3133 = vmatpush1.msra.mxu0 0.0
        %3134 = vmatprep.subr.mxu0 0.0
        %3135 = vmatpush1.msra.mxu0 0.0
        %3136 = vmatprep.subr.mxu0 0.0
        %3137 = vmatpush1.msra.mxu0 0.0
        %3138 = vmatprep.subr.mxu0 0.0
        %3139 = vmatpush1.msra.mxu0 0.0
        %3140 = vmatprep.subr.mxu0 0.0
        %3141 = vmatpush1.msra.mxu0 0.0
        %3142 = vmatprep.subr.mxu0 0.0
        %3143 = vmatpush1.msra.mxu0 0.0
        %3144 = vmatprep.subr.mxu0 0.0
        %3145 = vmatpush1.msra.mxu0 0.0
        %3146 = vmatprep.mubr.f32.mxu0 0.0
        %3147 = vmatmul.mubr.f32.gmra.mrb[0].mxu0 %v3080
        %v3148 = vpop.f32.mrb[0].mxu0
        %v3149 = vadd.f32 0.0, %v3148
        %v3150 = vpop.f32.mrb[0].mxu0
        %3151 = vdwg.mxu0
        %v3153 = vsel %vm2990, %v3072, 0
        %3155 = vmatprep.subr.mxu0 0.0
        %3156 = vmatpush1.msra.mxu0 %v1950
        %3157 = vmatprep.subr.mxu0 0.0
        %3158 = vmatpush1.msra.mxu0 0.0
        %3159 = vmatprep.subr.mxu0 0.0
        %3160 = vmatpush1.msra.mxu0 0.0
        %3161 = vmatprep.subr.mxu0 0.0
        %3162 = vmatpush1.msra.mxu0 0.0
        %3163 = vmatprep.subr.mxu0 0.0
        %3164 = vmatpush1.msra.mxu0 0.0
        %3165 = vmatprep.subr.mxu0 0.0
        %3166 = vmatpush1.msra.mxu0 0.0
        %3167 = vmatprep.subr.mxu0 0.0
        %3168 = vmatpush1.msra.mxu0 0.0
        %3169 = vmatprep.subr.mxu0 0.0
        %3170 = vmatpush1.msra.mxu0 0.0
        %3171 = vmatprep.subr.mxu0 0.0
        %3172 = vmatpush1.msra.mxu0 0.0
        %3173 = vmatprep.subr.mxu0 0.0
        %3174 = vmatpush1.msra.mxu0 0.0
        %3175 = vmatprep.subr.mxu0 0.0
        %3176 = vmatpush1.msra.mxu0 0.0
        %3177 = vmatprep.subr.mxu0 0.0
        %3178 = vmatpush1.msra.mxu0 0.0
        %3179 = vmatprep.subr.mxu0 0.0
        %3180 = vmatpush1.msra.mxu0 0.0
        %3181 = vmatprep.subr.mxu0 0.0
        %3182 = vmatpush1.msra.mxu0 0.0
        %3183 = vmatprep.subr.mxu0 0.0
        %3184 = vmatpush1.msra.mxu0 0.0
        %3185 = vmatprep.subr.mxu0 0.0
        %3186 = vmatpush1.msra.mxu0 0.0
        %3187 = vmatprep.subr.mxu0 0.0
        %3188 = vmatpush1.msra.mxu0 0.0
        %3189 = vmatprep.subr.mxu0 0.0
        %3190 = vmatpush1.msra.mxu0 0.0
        %3191 = vmatprep.subr.mxu0 0.0
        %3192 = vmatpush1.msra.mxu0 0.0
        %3193 = vmatprep.subr.mxu0 0.0
        %3194 = vmatpush1.msra.mxu0 0.0
        %3195 = vmatprep.subr.mxu0 0.0
        %3196 = vmatpush1.msra.mxu0 0.0
        %3197 = vmatprep.subr.mxu0 0.0
        %3198 = vmatpush1.msra.mxu0 0.0
        %3199 = vmatprep.subr.mxu0 0.0
        %3200 = vmatpush1.msra.mxu0 0.0
        %3201 = vmatprep.subr.mxu0 0.0
        %3202 = vmatpush1.msra.mxu0 0.0
        %3203 = vmatprep.subr.mxu0 0.0
        %3204 = vmatpush1.msra.mxu0 0.0
        %3205 = vmatprep.subr.mxu0 0.0
        %3206 = vmatpush1.msra.mxu0 0.0
        %3207 = vmatprep.subr.mxu0 0.0
        %3208 = vmatpush1.msra.mxu0 0.0
        %3209 = vmatprep.subr.mxu0 0.0
        %3210 = vmatpush1.msra.mxu0 0.0
        %3211 = vmatprep.subr.mxu0 0.0
        %3212 = vmatpush1.msra.mxu0 0.0
        %3213 = vmatprep.subr.mxu0 0.0
        %3214 = vmatpush1.msra.mxu0 0.0
        %3215 = vmatprep.subr.mxu0 0.0
        %3216 = vmatpush1.msra.mxu0 0.0
        %3217 = vmatprep.subr.mxu0 0.0
        %3218 = vmatpush1.msra.mxu0 0.0
        %3219 = vmatprep.mubr.f32.mxu0 0.0
        %3220 = vmatmul.mubr.f32.gmra.mrb[0].mxu0 %v3153
        %v3221 = vpop.f32.mrb[0].mxu0
        %v3222 = vadd.f32 0.0, %v3221
        %v3223 = vpop.f32.mrb[0].mxu0
        %3224 = vdwg.mxu0
        %v3226 = vsel %vm2990, %v3073, 0
        %3228 = vmatprep.subr.mxu0 0.0
        %3229 = vmatpush1.msra.mxu0 %v2020
        %3230 = vmatprep.subr.mxu0 0.0
        %3231 = vmatpush1.msra.mxu0 0.0
        %3232 = vmatprep.subr.mxu0 0.0
        %3233 = vmatpush1.msra.mxu0 0.0
        %3234 = vmatprep.subr.mxu0 0.0
        %3235 = vmatpush1.msra.mxu0 0.0
        %3236 = vmatprep.subr.mxu0 0.0
        %3237 = vmatpush1.msra.mxu0 0.0
        %3238 = vmatprep.subr.mxu0 0.0
        %3239 = vmatpush1.msra.mxu0 0.0
        %3240 = vmatprep.subr.mxu0 0.0
        %3241 = vmatpush1.msra.mxu0 0.0
        %3242 = vmatprep.subr.mxu0 0.0
        %3243 = vmatpush1.msra.mxu0 0.0
        %3244 = vmatprep.subr.mxu0 0.0
        %3245 = vmatpush1.msra.mxu0 0.0
        %3246 = vmatprep.subr.mxu0 0.0
        %3247 = vmatpush1.msra.mxu0 0.0
        %3248 = vmatprep.subr.mxu0 0.0
        %3249 = vmatpush1.msra.mxu0 0.0
        %3250 = vmatprep.subr.mxu0 0.0
        %3251 = vmatpush1.msra.mxu0 0.0
        %3252 = vmatprep.subr.mxu0 0.0
        %3253 = vmatpush1.msra.mxu0 0.0
        %3254 = vmatprep.subr.mxu0 0.0
        %3255 = vmatpush1.msra.mxu0 0.0
        %3256 = vmatprep.subr.mxu0 0.0
        %3257 = vmatpush1.msra.mxu0 0.0
        %3258 = vmatprep.subr.mxu0 0.0
        %3259 = vmatpush1.msra.mxu0 0.0
        %3260 = vmatprep.subr.mxu0 0.0
        %3261 = vmatpush1.msra.mxu0 0.0
        %3262 = vmatprep.subr.mxu0 0.0
        %3263 = vmatpush1.msra.mxu0 0.0
        %3264 = vmatprep.subr.mxu0 0.0
        %3265 = vmatpush1.msra.mxu0 0.0
        %3266 = vmatprep.subr.mxu0 0.0
        %3267 = vmatpush1.msra.mxu0 0.0
        %3268 = vmatprep.subr.mxu0 0.0
        %3269 = vmatpush1.msra.mxu0 0.0
        %3270 = vmatprep.subr.mxu0 0.0
        %3271 = vmatpush1.msra.mxu0 0.0
        %3272 = vmatprep.subr.mxu0 0.0
        %3273 = vmatpush1.msra.mxu0 0.0
        %3274 = vmatprep.subr.mxu0 0.0
        %3275 = vmatpush1.msra.mxu0 0.0
        %3276 = vmatprep.subr.mxu0 0.0
        %3277 = vmatpush1.msra.mxu0 0.0
        %3278 = vmatprep.subr.mxu0 0.0
        %3279 = vmatpush1.msra.mxu0 0.0
        %3280 = vmatprep.subr.mxu0 0.0
        %3281 = vmatpush1.msra.mxu0 0.0
        %3282 = vmatprep.subr.mxu0 0.0
        %3283 = vmatpush1.msra.mxu0 0.0
        %3284 = vmatprep.subr.mxu0 0.0
        %3285 = vmatpush1.msra.mxu0 0.0
        %3286 = vmatprep.subr.mxu0 0.0
        %3287 = vmatpush1.msra.mxu0 0.0
        %3288 = vmatprep.subr.mxu0 0.0
        %3289 = vmatpush1.msra.mxu0 0.0
        %3290 = vmatprep.subr.mxu0 0.0
        %3291 = vmatpush1.msra.mxu0 0.0
        %3292 = vmatprep.mubr.f32.mxu0 0.0
        %3293 = vmatmul.mubr.f32.gmra.mrb[0].mxu0 %v3226
        %v3294 = vpop.f32.mrb[0].mxu0
        %v3295 = vadd.f32 0.0, %v3294
        %v3296 = vpop.f32.mrb[0].mxu0
        %3297 = vdwg.mxu0
        %v3299 = vsel %vm2990, %v3074, 0
        %3301 = vmatprep.subr.mxu0 0.0
        %3302 = vmatpush1.msra.mxu0 %v2090
        %3303 = vmatprep.subr.mxu0 0.0
        %3304 = vmatpush1.msra.mxu0 0.0
        %3305 = vmatprep.subr.mxu0 0.0
        %3306 = vmatpush1.msra.mxu0 0.0
        %3307 = vmatprep.subr.mxu0 0.0
        %3308 = vmatpush1.msra.mxu0 0.0
        %3309 = vmatprep.subr.mxu0 0.0
        %3310 = vmatpush1.msra.mxu0 0.0
        %3311 = vmatprep.subr.mxu0 0.0
        %3312 = vmatpush1.msra.mxu0 0.0
        %3313 = vmatprep.subr.mxu0 0.0
        %3314 = vmatpush1.msra.mxu0 0.0
        %3315 = vmatprep.subr.mxu0 0.0
        %3316 = vmatpush1.msra.mxu0 0.0
        %3317 = vmatprep.subr.mxu0 0.0
        %3318 = vmatpush1.msra.mxu0 0.0
        %3319 = vmatprep.subr.mxu0 0.0
        %3320 = vmatpush1.msra.mxu0 0.0
        %3321 = vmatprep.subr.mxu0 0.0
        %3322 = vmatpush1.msra.mxu0 0.0
        %3323 = vmatprep.subr.mxu0 0.0
        %3324 = vmatpush1.msra.mxu0 0.0
        %3325 = vmatprep.subr.mxu0 0.0
        %3326 = vmatpush1.msra.mxu0 0.0
        %3327 = vmatprep.subr.mxu0 0.0
        %3328 = vmatpush1.msra.mxu0 0.0
        %3329 = vmatprep.subr.mxu0 0.0
        %3330 = vmatpush1.msra.mxu0 0.0
        %3331 = vmatprep.subr.mxu0 0.0
        %3332 = vmatpush1.msra.mxu0 0.0
        %3333 = vmatprep.subr.mxu0 0.0
        %3334 = vmatpush1.msra.mxu0 0.0
        %3335 = vmatprep.subr.mxu0 0.0
        %3336 = vmatpush1.msra.mxu0 0.0
        %3337 = vmatprep.subr.mxu0 0.0
        %3338 = vmatpush1.msra.mxu0 0.0
        %3339 = vmatprep.subr.mxu0 0.0
        %3340 = vmatpush1.msra.mxu0 0.0
        %3341 = vmatprep.subr.mxu0 0.0
        %3342 = vmatpush1.msra.mxu0 0.0
        %3343 = vmatprep.subr.mxu0 0.0
        %3344 = vmatpush1.msra.mxu0 0.0
        %3345 = vmatprep.subr.mxu0 0.0
        %3346 = vmatpush1.msra.mxu0 0.0
        %3347 = vmatprep.subr.mxu0 0.0
        %3348 = vmatpush1.msra.mxu0 0.0
        %3349 = vmatprep.subr.mxu0 0.0
        %3350 = vmatpush1.msra.mxu0 0.0
        %3351 = vmatprep.subr.mxu0 0.0
        %3352 = vmatpush1.msra.mxu0 0.0
        %3353 = vmatprep.subr.mxu0 0.0
        %3354 = vmatpush1.msra.mxu0 0.0
        %3355 = vmatprep.subr.mxu0 0.0
        %3356 = vmatpush1.msra.mxu0 0.0
        %3357 = vmatprep.subr.mxu0 0.0
        %3358 = vmatpush1.msra.mxu0 0.0
        %3359 = vmatprep.subr.mxu0 0.0
        %3360 = vmatpush1.msra.mxu0 0.0
        %3361 = vmatprep.subr.mxu0 0.0
        %3362 = vmatpush1.msra.mxu0 0.0
        %3363 = vmatprep.subr.mxu0 0.0
        %3364 = vmatpush1.msra.mxu0 0.0
        %3365 = vmatprep.mubr.f32.mxu0 0.0
        %3366 = vmatmul.mubr.f32.gmra.mrb[0].mxu0 %v3299
        %v3367 = vpop.f32.mrb[0].mxu0
        %v3368 = vadd.f32 0.0, %v3367
        %v3369 = vpop.f32.mrb[0].mxu0
        %3370 = vdwg.mxu0
        %v3372 = vsel %vm2990, %v3075, 0
        %3374 = vmatprep.subr.mxu0 0.0
        %3375 = vmatpush1.msra.mxu0 %v2160
        %3376 = vmatprep.subr.mxu0 0.0
        %3377 = vmatpush1.msra.mxu0 0.0
        %3378 = vmatprep.subr.mxu0 0.0
        %3379 = vmatpush1.msra.mxu0 0.0
        %3380 = vmatprep.subr.mxu0 0.0
        %3381 = vmatpush1.msra.mxu0 0.0
        %3382 = vmatprep.subr.mxu0 0.0
        %3383 = vmatpush1.msra.mxu0 0.0
        %3384 = vmatprep.subr.mxu0 0.0
        %3385 = vmatpush1.msra.mxu0 0.0
        %3386 = vmatprep.subr.mxu0 0.0
        %3387 = vmatpush1.msra.mxu0 0.0
        %3388 = vmatprep.subr.mxu0 0.0
        %3389 = vmatpush1.msra.mxu0 0.0
        %3390 = vmatprep.subr.mxu0 0.0
        %3391 = vmatpush1.msra.mxu0 0.0
        %3392 = vmatprep.subr.mxu0 0.0
        %3393 = vmatpush1.msra.mxu0 0.0
        %3394 = vmatprep.subr.mxu0 0.0
        %3395 = vmatpush1.msra.mxu0 0.0
        %3396 = vmatprep.subr.mxu0 0.0
        %3397 = vmatpush1.msra.mxu0 0.0
        %3398 = vmatprep.subr.mxu0 0.0
        %3399 = vmatpush1.msra.mxu0 0.0
        %3400 = vmatprep.subr.mxu0 0.0
        %3401 = vmatpush1.msra.mxu0 0.0
        %3402 = vmatprep.subr.mxu0 0.0
        %3403 = vmatpush1.msra.mxu0 0.0
        %3404 = vmatprep.subr.mxu0 0.0
        %3405 = vmatpush1.msra.mxu0 0.0
        %3406 = vmatprep.subr.mxu0 0.0
        %3407 = vmatpush1.msra.mxu0 0.0
        %3408 = vmatprep.subr.mxu0 0.0
        %3409 = vmatpush1.msra.mxu0 0.0
        %3410 = vmatprep.subr.mxu0 0.0
        %3411 = vmatpush1.msra.mxu0 0.0
        %3412 = vmatprep.subr.mxu0 0.0
        %3413 = vmatpush1.msra.mxu0 0.0
        %3414 = vmatprep.subr.mxu0 0.0
        %3415 = vmatpush1.msra.mxu0 0.0
        %3416 = vmatprep.subr.mxu0 0.0
        %3417 = vmatpush1.msra.mxu0 0.0
        %3418 = vmatprep.subr.mxu0 0.0
        %3419 = vmatpush1.msra.mxu0 0.0
        %3420 = vmatprep.subr.mxu0 0.0
        %3421 = vmatpush1.msra.mxu0 0.0
        %3422 = vmatprep.subr.mxu0 0.0
        %3423 = vmatpush1.msra.mxu0 0.0
        %3424 = vmatprep.subr.mxu0 0.0
        %3425 = vmatpush1.msra.mxu0 0.0
        %3426 = vmatprep.subr.mxu0 0.0
        %3427 = vmatpush1.msra.mxu0 0.0
        %3428 = vmatprep.subr.mxu0 0.0
        %3429 = vmatpush1.msra.mxu0 0.0
        %3430 = vmatprep.subr.mxu0 0.0
        %3431 = vmatpush1.msra.mxu0 0.0
        %3432 = vmatprep.subr.mxu0 0.0
        %3433 = vmatpush1.msra.mxu0 0.0
        %3434 = vmatprep.subr.mxu0 0.0
        %3435 = vmatpush1.msra.mxu0 0.0
        %3436 = vmatprep.subr.mxu0 0.0
        %3437 = vmatpush1.msra.mxu0 0.0
        %3438 = vmatprep.mubr.f32.mxu0 0.0
        %3439 = vmatmul.mubr.f32.gmra.mrb[0].mxu0 %v3372
        %v3440 = vpop.f32.mrb[0].mxu0
        %v3441 = vadd.f32 0.0, %v3440
        %v3442 = vpop.f32.mrb[0].mxu0
        %3443 = vdwg.mxu0
        %v3445 = vsel %vm2990, %v3076, 0
        %3447 = vmatprep.subr.mxu0 0.0
        %3448 = vmatpush1.msra.mxu0 %v2230
        %3449 = vmatprep.subr.mxu0 0.0
        %3450 = vmatpush1.msra.mxu0 0.0
        %3451 = vmatprep.subr.mxu0 0.0
        %3452 = vmatpush1.msra.mxu0 0.0
        %3453 = vmatprep.subr.mxu0 0.0
        %3454 = vmatpush1.msra.mxu0 0.0
        %3455 = vmatprep.subr.mxu0 0.0
        %3456 = vmatpush1.msra.mxu0 0.0
        %3457 = vmatprep.subr.mxu0 0.0
        %3458 = vmatpush1.msra.mxu0 0.0
        %3459 = vmatprep.subr.mxu0 0.0
        %3460 = vmatpush1.msra.mxu0 0.0
        %3461 = vmatprep.subr.mxu0 0.0
        %3462 = vmatpush1.msra.mxu0 0.0
        %3463 = vmatprep.subr.mxu0 0.0
        %3464 = vmatpush1.msra.mxu0 0.0
        %3465 = vmatprep.subr.mxu0 0.0
        %3466 = vmatpush1.msra.mxu0 0.0
        %3467 = vmatprep.subr.mxu0 0.0
        %3468 = vmatpush1.msra.mxu0 0.0
        %3469 = vmatprep.subr.mxu0 0.0
        %3470 = vmatpush1.msra.mxu0 0.0
        %3471 = vmatprep.subr.mxu0 0.0
        %3472 = vmatpush1.msra.mxu0 0.0
        %3473 = vmatprep.subr.mxu0 0.0
        %3474 = vmatpush1.msra.mxu0 0.0
        %3475 = vmatprep.subr.mxu0 0.0
        %3476 = vmatpush1.msra.mxu0 0.0
        %3477 = vmatprep.subr.mxu0 0.0
        %3478 = vmatpush1.msra.mxu0 0.0
        %3479 = vmatprep.subr.mxu0 0.0
        %3480 = vmatpush1.msra.mxu0 0.0
        %3481 = vmatprep.subr.mxu0 0.0
        %3482 = vmatpush1.msra.mxu0 0.0
        %3483 = vmatprep.subr.mxu0 0.0
        %3484 = vmatpush1.msra.mxu0 0.0
        %3485 = vmatprep.subr.mxu0 0.0
        %3486 = vmatpush1.msra.mxu0 0.0
        %3487 = vmatprep.subr.mxu0 0.0
        %3488 = vmatpush1.msra.mxu0 0.0
        %3489 = vmatprep.subr.mxu0 0.0
        %3490 = vmatpush1.msra.mxu0 0.0
        %3491 = vmatprep.subr.mxu0 0.0
        %3492 = vmatpush1.msra.mxu0 0.0
        %3493 = vmatprep.subr.mxu0 0.0
        %3494 = vmatpush1.msra.mxu0 0.0
        %3495 = vmatprep.subr.mxu0 0.0
        %3496 = vmatpush1.msra.mxu0 0.0
        %3497 = vmatprep.subr.mxu0 0.0
        %3498 = vmatpush1.msra.mxu0 0.0
        %3499 = vmatprep.subr.mxu0 0.0
        %3500 = vmatpush1.msra.mxu0 0.0
        %3501 = vmatprep.subr.mxu0 0.0
        %3502 = vmatpush1.msra.mxu0 0.0
        %3503 = vmatprep.subr.mxu0 0.0
        %3504 = vmatpush1.msra.mxu0 0.0
        %3505 = vmatprep.subr.mxu0 0.0
        %3506 = vmatpush1.msra.mxu0 0.0
        %3507 = vmatprep.subr.mxu0 0.0
        %3508 = vmatpush1.msra.mxu0 0.0
        %3509 = vmatprep.subr.mxu0 0.0
        %3510 = vmatpush1.msra.mxu0 0.0
        %3511 = vmatprep.mubr.f32.mxu0 0.0
        %3512 = vmatmul.mubr.f32.gmra.mrb[0].mxu0 %v3445
        %v3513 = vpop.f32.mrb[0].mxu0
        %v3514 = vadd.f32 0.0, %v3513
        %v3515 = vpop.f32.mrb[0].mxu0
        %3516 = vdwg.mxu0
        %v3518 = vsel %vm2990, %v3077, 0
        %3520 = vmatprep.subr.mxu0 0.0
        %3521 = vmatpush1.msra.mxu0 %v2300
        %3522 = vmatprep.subr.mxu0 0.0
        %3523 = vmatpush1.msra.mxu0 0.0
        %3524 = vmatprep.subr.mxu0 0.0
        %3525 = vmatpush1.msra.mxu0 0.0
        %3526 = vmatprep.subr.mxu0 0.0
        %3527 = vmatpush1.msra.mxu0 0.0
        %3528 = vmatprep.subr.mxu0 0.0
        %3529 = vmatpush1.msra.mxu0 0.0
        %3530 = vmatprep.subr.mxu0 0.0
        %3531 = vmatpush1.msra.mxu0 0.0
        %3532 = vmatprep.subr.mxu0 0.0
        %3533 = vmatpush1.msra.mxu0 0.0
        %3534 = vmatprep.subr.mxu0 0.0
        %3535 = vmatpush1.msra.mxu0 0.0
        %3536 = vmatprep.subr.mxu0 0.0
        %3537 = vmatpush1.msra.mxu0 0.0
        %3538 = vmatprep.subr.mxu0 0.0
        %3539 = vmatpush1.msra.mxu0 0.0
        %3540 = vmatprep.subr.mxu0 0.0
        %3541 = vmatpush1.msra.mxu0 0.0
        %3542 = vmatprep.subr.mxu0 0.0
        %3543 = vmatpush1.msra.mxu0 0.0
        %3544 = vmatprep.subr.mxu0 0.0
        %3545 = vmatpush1.msra.mxu0 0.0
        %3546 = vmatprep.subr.mxu0 0.0
        %3547 = vmatpush1.msra.mxu0 0.0
        %3548 = vmatprep.subr.mxu0 0.0
        %3549 = vmatpush1.msra.mxu0 0.0
        %3550 = vmatprep.subr.mxu0 0.0
        %3551 = vmatpush1.msra.mxu0 0.0
        %3552 = vmatprep.subr.mxu0 0.0
        %3553 = vmatpush1.msra.mxu0 0.0
        %3554 = vmatprep.subr.mxu0 0.0
        %3555 = vmatpush1.msra.mxu0 0.0
        %3556 = vmatprep.subr.mxu0 0.0
        %3557 = vmatpush1.msra.mxu0 0.0
        %3558 = vmatprep.subr.mxu0 0.0
        %3559 = vmatpush1.msra.mxu0 0.0
        %3560 = vmatprep.subr.mxu0 0.0
        %3561 = vmatpush1.msra.mxu0 0.0
        %3562 = vmatprep.subr.mxu0 0.0
        %3563 = vmatpush1.msra.mxu0 0.0
        %3564 = vmatprep.subr.mxu0 0.0
        %3565 = vmatpush1.msra.mxu0 0.0
        %3566 = vmatprep.subr.mxu0 0.0
        %3567 = vmatpush1.msra.mxu0 0.0
        %3568 = vmatprep.subr.mxu0 0.0
        %3569 = vmatpush1.msra.mxu0 0.0
        %3570 = vmatprep.subr.mxu0 0.0
        %3571 = vmatpush1.msra.mxu0 0.0
        %3572 = vmatprep.subr.mxu0 0.0
        %3573 = vmatpush1.msra.mxu0 0.0
        %3574 = vmatprep.subr.mxu0 0.0
        %3575 = vmatpush1.msra.mxu0 0.0
        %3576 = vmatprep.subr.mxu0 0.0
        %3577 = vmatpush1.msra.mxu0 0.0
        %3578 = vmatprep.subr.mxu0 0.0
        %3579 = vmatpush1.msra.mxu0 0.0
        %3580 = vmatprep.subr.mxu0 0.0
        %3581 = vmatpush1.msra.mxu0 0.0
        %3582 = vmatprep.subr.mxu0 0.0
        %3583 = vmatpush1.msra.mxu0 0.0
        %3584 = vmatprep.mubr.f32.mxu0 0.0
        %3585 = vmatmul.mubr.f32.gmra.mrb[0].mxu0 %v3518
        %v3586 = vpop.f32.mrb[0].mxu0
        %v3587 = vadd.f32 0.0, %v3586
        %v3588 = vpop.f32.mrb[0].mxu0
        %3589 = vdwg.mxu0
        %v3591 = vsel %vm2990, %v3078, 0
        %3593 = vmatprep.subr.mxu0 0.0
        %3594 = vmatpush1.msra.mxu0 %v2370
        %3595 = vmatprep.subr.mxu0 0.0
        %3596 = vmatpush1.msra.mxu0 0.0
        %3597 = vmatprep.subr.mxu0 0.0
        %3598 = vmatpush1.msra.mxu0 0.0
        %3599 = vmatprep.subr.mxu0 0.0
        %3600 = vmatpush1.msra.mxu0 0.0
        %3601 = vmatprep.subr.mxu0 0.0
        %3602 = vmatpush1.msra.mxu0 0.0
        %3603 = vmatprep.subr.mxu0 0.0
        %3604 = vmatpush1.msra.mxu0 0.0
        %3605 = vmatprep.subr.mxu0 0.0
        %3606 = vmatpush1.msra.mxu0 0.0
        %3607 = vmatprep.subr.mxu0 0.0
        %3608 = vmatpush1.msra.mxu0 0.0
        %3609 = vmatprep.subr.mxu0 0.0
        %3610 = vmatpush1.msra.mxu0 0.0
        %3611 = vmatprep.subr.mxu0 0.0
        %3612 = vmatpush1.msra.mxu0 0.0
        %3613 = vmatprep.subr.mxu0 0.0
        %3614 = vmatpush1.msra.mxu0 0.0
        %3615 = vmatprep.subr.mxu0 0.0
        %3616 = vmatpush1.msra.mxu0 0.0
        %3617 = vmatprep.subr.mxu0 0.0
        %3618 = vmatpush1.msra.mxu0 0.0
        %3619 = vmatprep.subr.mxu0 0.0
        %3620 = vmatpush1.msra.mxu0 0.0
        %3621 = vmatprep.subr.mxu0 0.0
        %3622 = vmatpush1.msra.mxu0 0.0
        %3623 = vmatprep.subr.mxu0 0.0
        %3624 = vmatpush1.msra.mxu0 0.0
        %3625 = vmatprep.subr.mxu0 0.0
        %3626 = vmatpush1.msra.mxu0 0.0
        %3627 = vmatprep.subr.mxu0 0.0
        %3628 = vmatpush1.msra.mxu0 0.0
        %3629 = vmatprep.subr.mxu0 0.0
        %3630 = vmatpush1.msra.mxu0 0.0
        %3631 = vmatprep.subr.mxu0 0.0
        %3632 = vmatpush1.msra.mxu0 0.0
        %3633 = vmatprep.subr.mxu0 0.0
        %3634 = vmatpush1.msra.mxu0 0.0
        %3635 = vmatprep.subr.mxu0 0.0
        %3636 = vmatpush1.msra.mxu0 0.0
        %3637 = vmatprep.subr.mxu0 0.0
        %3638 = vmatpush1.msra.mxu0 0.0
        %3639 = vmatprep.subr.mxu0 0.0
        %3640 = vmatpush1.msra.mxu0 0.0
        %3641 = vmatprep.subr.mxu0 0.0
        %3642 = vmatpush1.msra.mxu0 0.0
        %3643 = vmatprep.subr.mxu0 0.0
        %3644 = vmatpush1.msra.mxu0 0.0
        %3645 = vmatprep.subr.mxu0 0.0
        %3646 = vmatpush1.msra.mxu0 0.0
        %3647 = vmatprep.subr.mxu0 0.0
        %3648 = vmatpush1.msra.mxu0 0.0
        %3649 = vmatprep.subr.mxu0 0.0
        %3650 = vmatpush1.msra.mxu0 0.0
        %3651 = vmatprep.subr.mxu0 0.0
        %3652 = vmatpush1.msra.mxu0 0.0
        %3653 = vmatprep.subr.mxu0 0.0
        %3654 = vmatpush1.msra.mxu0 0.0
        %3655 = vmatprep.subr.mxu0 0.0
        %3656 = vmatpush1.msra.mxu0 0.0
        %3657 = vmatprep.mubr.f32.mxu0 0.0
        %3658 = vmatmul.mubr.f32.gmra.mrb[0].mxu0 %v3591
        %v3659 = vpop.f32.mrb[0].mxu0
        %v3660 = vadd.f32 0.0, %v3659
        %v3661 = vpop.f32.mrb[0].mxu0
        %3662 = vdwg.mxu0
        %v3663 = vld [vmem:[%s9] sm:$0xf]
        %v3664 = vld [vmem:[%s9 + $0x4] sm:$0xf]
        %v3665 = vld [vmem:[%s9 + $0x8] sm:$0xf]
        %v3666 = vld [vmem:[%s9 + $0xc] sm:$0xf]
        %v3667 = vld [vmem:[%s9 + $0x10] sm:$0xf]
        %v3668 = vld [vmem:[%s9 + $0x14] sm:$0xf]
        %v3669 = vld [vmem:[%s9 + $0x18] sm:$0xf]
        %v3670 = vld [vmem:[%s9 + $0x1c] sm:$0xf]
        %v3672 = vsel %vm2373, %v3149, 0
        %vm3674 = vcmask 1043456
        %v3676 = vsel %vm3674, %v3663, 0
        %3678 = vmatprep.subr.mxu0 0.0
        %3679 = vmatpush1.msra.mxu0 %v3676
        %3680 = vmatprep.subr.mxu0 0.0
        %3681 = vmatpush1.msra.mxu0 0.0
        %3682 = vmatprep.subr.mxu0 0.0
        %3683 = vmatpush1.msra.mxu0 0.0
        %3684 = vmatprep.subr.mxu0 0.0
        %3685 = vmatpush1.msra.mxu0 0.0
        %3686 = vmatprep.subr.mxu0 0.0
        %3687 = vmatpush1.msra.mxu0 0.0
        %3688 = vmatprep.subr.mxu0 0.0
        %3689 = vmatpush1.msra.mxu0 0.0
        %3690 = vmatprep.subr.mxu0 0.0
        %3691 = vmatpush1.msra.mxu0 0.0
        %3692 = vmatprep.subr.mxu0 0.0
        %3693 = vmatpush1.msra.mxu0 0.0
        %3694 = vmatprep.subr.mxu0 0.0
        %3695 = vmatpush1.msra.mxu0 0.0
        %3696 = vmatprep.subr.mxu0 0.0
        %3697 = vmatpush1.msra.mxu0 0.0
        %3698 = vmatprep.subr.mxu0 0.0
        %3699 = vmatpush1.msra.mxu0 0.0
        %3700 = vmatprep.subr.mxu0 0.0
        %3701 = vmatpush1.msra.mxu0 0.0
        %3702 = vmatprep.subr.mxu0 0.0
        %3703 = vmatpush1.msra.mxu0 0.0
        %3704 = vmatprep.subr.mxu0 0.0
        %3705 = vmatpush1.msra.mxu0 0.0
        %3706 = vmatprep.subr.mxu0 0.0
        %3707 = vmatpush1.msra.mxu0 0.0
        %3708 = vmatprep.subr.mxu0 0.0
        %3709 = vmatpush1.msra.mxu0 0.0
        %3710 = vmatprep.subr.mxu0 0.0
        %3711 = vmatpush1.msra.mxu0 0.0
        %3712 = vmatprep.subr.mxu0 0.0
        %3713 = vmatpush1.msra.mxu0 0.0
        %3714 = vmatprep.subr.mxu0 0.0
        %3715 = vmatpush1.msra.mxu0 0.0
        %3716 = vmatprep.subr.mxu0 0.0
        %3717 = vmatpush1.msra.mxu0 0.0
        %3718 = vmatprep.subr.mxu0 0.0
        %3719 = vmatpush1.msra.mxu0 0.0
        %3720 = vmatprep.subr.mxu0 0.0
        %3721 = vmatpush1.msra.mxu0 0.0
        %3722 = vmatprep.subr.mxu0 0.0
        %3723 = vmatpush1.msra.mxu0 0.0
        %3724 = vmatprep.subr.mxu0 0.0
        %3725 = vmatpush1.msra.mxu0 0.0
        %3726 = vmatprep.subr.mxu0 0.0
        %3727 = vmatpush1.msra.mxu0 0.0
        %3728 = vmatprep.subr.mxu0 0.0
        %3729 = vmatpush1.msra.mxu0 0.0
        %3730 = vmatprep.subr.mxu0 0.0
        %3731 = vmatpush1.msra.mxu0 0.0
        %3732 = vmatprep.subr.mxu0 0.0
        %3733 = vmatpush1.msra.mxu0 0.0
        %3734 = vmatprep.subr.mxu0 0.0
        %3735 = vmatpush1.msra.mxu0 0.0
        %3736 = vmatprep.subr.mxu0 0.0
        %3737 = vmatpush1.msra.mxu0 0.0
        %3738 = vmatprep.subr.mxu0 0.0
        %3739 = vmatpush1.msra.mxu0 0.0
        %3740 = vmatprep.subr.mxu0 0.0
        %3741 = vmatpush1.msra.mxu0 0.0
        %3742 = vmatprep.mubr.f32.mxu0 0.0
        %3743 = vmatmul.mubr.f32.gmra.mrb[0].mxu0 %v3672
        %v3744 = vpop.f32.mrb[0].mxu0
        %v3745 = vadd.f32 0.0, %v3744
        %v3746 = vpop.f32.mrb[0].mxu0
        %3747 = vdwg.mxu0
        %v3749 = vsel %vm2373, %v3222, 0
        %v3752 = vsel %vm3674, %v3664, 0
        %3754 = vmatprep.subr.mxu0 0.0
        %3755 = vmatpush1.msra.mxu0 %v3752
        %3756 = vmatprep.subr.mxu0 0.0
        %3757 = vmatpush1.msra.mxu0 0.0
        %3758 = vmatprep.subr.mxu0 0.0
        %3759 = vmatpush1.msra.mxu0 0.0
        %3760 = vmatprep.subr.mxu0 0.0
        %3761 = vmatpush1.msra.mxu0 0.0
        %3762 = vmatprep.subr.mxu0 0.0
        %3763 = vmatpush1.msra.mxu0 0.0
        %3764 = vmatprep.subr.mxu0 0.0
        %3765 = vmatpush1.msra.mxu0 0.0
        %3766 = vmatprep.subr.mxu0 0.0
        %3767 = vmatpush1.msra.mxu0 0.0
        %3768 = vmatprep.subr.mxu0 0.0
        %3769 = vmatpush1.msra.mxu0 0.0
        %3770 = vmatprep.subr.mxu0 0.0
        %3771 = vmatpush1.msra.mxu0 0.0
        %3772 = vmatprep.subr.mxu0 0.0
        %3773 = vmatpush1.msra.mxu0 0.0
        %3774 = vmatprep.subr.mxu0 0.0
        %3775 = vmatpush1.msra.mxu0 0.0
        %3776 = vmatprep.subr.mxu0 0.0
        %3777 = vmatpush1.msra.mxu0 0.0
        %3778 = vmatprep.subr.mxu0 0.0
        %3779 = vmatpush1.msra.mxu0 0.0
        %3780 = vmatprep.subr.mxu0 0.0
        %3781 = vmatpush1.msra.mxu0 0.0
        %3782 = vmatprep.subr.mxu0 0.0
        %3783 = vmatpush1.msra.mxu0 0.0
        %3784 = vmatprep.subr.mxu0 0.0
        %3785 = vmatpush1.msra.mxu0 0.0
        %3786 = vmatprep.subr.mxu0 0.0
        %3787 = vmatpush1.msra.mxu0 0.0
        %3788 = vmatprep.subr.mxu0 0.0
        %3789 = vmatpush1.msra.mxu0 0.0
        %3790 = vmatprep.subr.mxu0 0.0
        %3791 = vmatpush1.msra.mxu0 0.0
        %3792 = vmatprep.subr.mxu0 0.0
        %3793 = vmatpush1.msra.mxu0 0.0
        %3794 = vmatprep.subr.mxu0 0.0
        %3795 = vmatpush1.msra.mxu0 0.0
        %3796 = vmatprep.subr.mxu0 0.0
        %3797 = vmatpush1.msra.mxu0 0.0
        %3798 = vmatprep.subr.mxu0 0.0
        %3799 = vmatpush1.msra.mxu0 0.0
        %3800 = vmatprep.subr.mxu0 0.0
        %3801 = vmatpush1.msra.mxu0 0.0
        %3802 = vmatprep.subr.mxu0 0.0
        %3803 = vmatpush1.msra.mxu0 0.0
        %3804 = vmatprep.subr.mxu0 0.0
        %3805 = vmatpush1.msra.mxu0 0.0
        %3806 = vmatprep.subr.mxu0 0.0
        %3807 = vmatpush1.msra.mxu0 0.0
        %3808 = vmatprep.subr.mxu0 0.0
        %3809 = vmatpush1.msra.mxu0 0.0
        %3810 = vmatprep.subr.mxu0 0.0
        %3811 = vmatpush1.msra.mxu0 0.0
        %3812 = vmatprep.subr.mxu0 0.0
        %3813 = vmatpush1.msra.mxu0 0.0
        %3814 = vmatprep.subr.mxu0 0.0
        %3815 = vmatpush1.msra.mxu0 0.0
        %3816 = vmatprep.subr.mxu0 0.0
        %3817 = vmatpush1.msra.mxu0 0.0
        %3818 = vmatprep.mubr.f32.mxu0 0.0
        %3819 = vmatmul.mubr.f32.gmra.mrb[0].mxu0 %v3749
        %v3820 = vpop.f32.mrb[0].mxu0
        %v3821 = vadd.f32 0.0, %v3820
        %v3822 = vpop.f32.mrb[0].mxu0
        %3823 = vdwg.mxu0
        %v3825 = vsel %vm2373, %v3295, 0
        %v3828 = vsel %vm3674, %v3665, 0
        %3830 = vmatprep.subr.mxu0 0.0
        %3831 = vmatpush1.msra.mxu0 %v3828
        %3832 = vmatprep.subr.mxu0 0.0
        %3833 = vmatpush1.msra.mxu0 0.0
        %3834 = vmatprep.subr.mxu0 0.0
        %3835 = vmatpush1.msra.mxu0 0.0
        %3836 = vmatprep.subr.mxu0 0.0
        %3837 = vmatpush1.msra.mxu0 0.0
        %3838 = vmatprep.subr.mxu0 0.0
        %3839 = vmatpush1.msra.mxu0 0.0
        %3840 = vmatprep.subr.mxu0 0.0
        %3841 = vmatpush1.msra.mxu0 0.0
        %3842 = vmatprep.subr.mxu0 0.0
        %3843 = vmatpush1.msra.mxu0 0.0
        %3844 = vmatprep.subr.mxu0 0.0
        %3845 = vmatpush1.msra.mxu0 0.0
        %3846 = vmatprep.subr.mxu0 0.0
        %3847 = vmatpush1.msra.mxu0 0.0
        %3848 = vmatprep.subr.mxu0 0.0
        %3849 = vmatpush1.msra.mxu0 0.0
        %3850 = vmatprep.subr.mxu0 0.0
        %3851 = vmatpush1.msra.mxu0 0.0
        %3852 = vmatprep.subr.mxu0 0.0
        %3853 = vmatpush1.msra.mxu0 0.0
        %3854 = vmatprep.subr.mxu0 0.0
        %3855 = vmatpush1.msra.mxu0 0.0
        %3856 = vmatprep.subr.mxu0 0.0
        %3857 = vmatpush1.msra.mxu0 0.0
        %3858 = vmatprep.subr.mxu0 0.0
        %3859 = vmatpush1.msra.mxu0 0.0
        %3860 = vmatprep.subr.mxu0 0.0
        %3861 = vmatpush1.msra.mxu0 0.0
        %3862 = vmatprep.subr.mxu0 0.0
        %3863 = vmatpush1.msra.mxu0 0.0
        %3864 = vmatprep.subr.mxu0 0.0
        %3865 = vmatpush1.msra.mxu0 0.0
        %3866 = vmatprep.subr.mxu0 0.0
        %3867 = vmatpush1.msra.mxu0 0.0
        %3868 = vmatprep.subr.mxu0 0.0
        %3869 = vmatpush1.msra.mxu0 0.0
        %3870 = vmatprep.subr.mxu0 0.0
        %3871 = vmatpush1.msra.mxu0 0.0
        %3872 = vmatprep.subr.mxu0 0.0
        %3873 = vmatpush1.msra.mxu0 0.0
        %3874 = vmatprep.subr.mxu0 0.0
        %3875 = vmatpush1.msra.mxu0 0.0
        %3876 = vmatprep.subr.mxu0 0.0
        %3877 = vmatpush1.msra.mxu0 0.0
        %3878 = vmatprep.subr.mxu0 0.0
        %3879 = vmatpush1.msra.mxu0 0.0
        %3880 = vmatprep.subr.mxu0 0.0
        %3881 = vmatpush1.msra.mxu0 0.0
        %3882 = vmatprep.subr.mxu0 0.0
        %3883 = vmatpush1.msra.mxu0 0.0
        %3884 = vmatprep.subr.mxu0 0.0
        %3885 = vmatpush1.msra.mxu0 0.0
        %3886 = vmatprep.subr.mxu0 0.0
        %3887 = vmatpush1.msra.mxu0 0.0
        %3888 = vmatprep.subr.mxu0 0.0
        %3889 = vmatpush1.msra.mxu0 0.0
        %3890 = vmatprep.subr.mxu0 0.0
        %3891 = vmatpush1.msra.mxu0 0.0
        %3892 = vmatprep.subr.mxu0 0.0
        %3893 = vmatpush1.msra.mxu0 0.0
        %3894 = vmatprep.mubr.f32.mxu0 0.0
        %3895 = vmatmul.mubr.f32.gmra.mrb[0].mxu0 %v3825
        %v3896 = vpop.f32.mrb[0].mxu0
        %v3897 = vadd.f32 0.0, %v3896
        %v3898 = vpop.f32.mrb[0].mxu0
        %3899 = vdwg.mxu0
        %v3901 = vsel %vm2373, %v3368, 0
        %v3904 = vsel %vm3674, %v3666, 0
        %3906 = vmatprep.subr.mxu0 0.0
        %3907 = vmatpush1.msra.mxu0 %v3904
        %3908 = vmatprep.subr.mxu0 0.0
        %3909 = vmatpush1.msra.mxu0 0.0
        %3910 = vmatprep.subr.mxu0 0.0
        %3911 = vmatpush1.msra.mxu0 0.0
        %3912 = vmatprep.subr.mxu0 0.0
        %3913 = vmatpush1.msra.mxu0 0.0
        %3914 = vmatprep.subr.mxu0 0.0
        %3915 = vmatpush1.msra.mxu0 0.0
        %3916 = vmatprep.subr.mxu0 0.0
        %3917 = vmatpush1.msra.mxu0 0.0
        %3918 = vmatprep.subr.mxu0 0.0
        %3919 = vmatpush1.msra.mxu0 0.0
        %3920 = vmatprep.subr.mxu0 0.0
        %3921 = vmatpush1.msra.mxu0 0.0
        %3922 = vmatprep.subr.mxu0 0.0
        %3923 = vmatpush1.msra.mxu0 0.0
        %3924 = vmatprep.subr.mxu0 0.0
        %3925 = vmatpush1.msra.mxu0 0.0
        %3926 = vmatprep.subr.mxu0 0.0
        %3927 = vmatpush1.msra.mxu0 0.0
        %3928 = vmatprep.subr.mxu0 0.0
        %3929 = vmatpush1.msra.mxu0 0.0
        %3930 = vmatprep.subr.mxu0 0.0
        %3931 = vmatpush1.msra.mxu0 0.0
        %3932 = vmatprep.subr.mxu0 0.0
        %3933 = vmatpush1.msra.mxu0 0.0
        %3934 = vmatprep.subr.mxu0 0.0
        %3935 = vmatpush1.msra.mxu0 0.0
        %3936 = vmatprep.subr.mxu0 0.0
        %3937 = vmatpush1.msra.mxu0 0.0
        %3938 = vmatprep.subr.mxu0 0.0
        %3939 = vmatpush1.msra.mxu0 0.0
        %3940 = vmatprep.subr.mxu0 0.0
        %3941 = vmatpush1.msra.mxu0 0.0
        %3942 = vmatprep.subr.mxu0 0.0
        %3943 = vmatpush1.msra.mxu0 0.0
        %3944 = vmatprep.subr.mxu0 0.0
        %3945 = vmatpush1.msra.mxu0 0.0
        %3946 = vmatprep.subr.mxu0 0.0
        %3947 = vmatpush1.msra.mxu0 0.0
        %3948 = vmatprep.subr.mxu0 0.0
        %3949 = vmatpush1.msra.mxu0 0.0
        %3950 = vmatprep.subr.mxu0 0.0
        %3951 = vmatpush1.msra.mxu0 0.0
        %3952 = vmatprep.subr.mxu0 0.0
        %3953 = vmatpush1.msra.mxu0 0.0
        %3954 = vmatprep.subr.mxu0 0.0
        %3955 = vmatpush1.msra.mxu0 0.0
        %3956 = vmatprep.subr.mxu0 0.0
        %3957 = vmatpush1.msra.mxu0 0.0
        %3958 = vmatprep.subr.mxu0 0.0
        %3959 = vmatpush1.msra.mxu0 0.0
        %3960 = vmatprep.subr.mxu0 0.0
        %3961 = vmatpush1.msra.mxu0 0.0
        %3962 = vmatprep.subr.mxu0 0.0
        %3963 = vmatpush1.msra.mxu0 0.0
        %3964 = vmatprep.subr.mxu0 0.0
        %3965 = vmatpush1.msra.mxu0 0.0
        %3966 = vmatprep.subr.mxu0 0.0
        %3967 = vmatpush1.msra.mxu0 0.0
        %3968 = vmatprep.subr.mxu0 0.0
        %3969 = vmatpush1.msra.mxu0 0.0
        %3970 = vmatprep.mubr.f32.mxu0 0.0
        %3971 = vmatmul.mubr.f32.gmra.mrb[0].mxu0 %v3901
        %v3972 = vpop.f32.mrb[0].mxu0
        %v3973 = vadd.f32 0.0, %v3972
        %v3974 = vpop.f32.mrb[0].mxu0
        %3975 = vdwg.mxu0
        %v3977 = vsel %vm2373, %v3441, 0
        %v3980 = vsel %vm3674, %v3667, 0
        %3982 = vmatprep.subr.mxu0 0.0
        %3983 = vmatpush1.msra.mxu0 %v3980
        %3984 = vmatprep.subr.mxu0 0.0
        %3985 = vmatpush1.msra.mxu0 0.0
        %3986 = vmatprep.subr.mxu0 0.0
        %3987 = vmatpush1.msra.mxu0 0.0
        %3988 = vmatprep.subr.mxu0 0.0
        %3989 = vmatpush1.msra.mxu0 0.0
        %3990 = vmatprep.subr.mxu0 0.0
        %3991 = vmatpush1.msra.mxu0 0.0
        %3992 = vmatprep.subr.mxu0 0.0
        %3993 = vmatpush1.msra.mxu0 0.0
        %3994 = vmatprep.subr.mxu0 0.0
        %3995 = vmatpush1.msra.mxu0 0.0
        %3996 = vmatprep.subr.mxu0 0.0
        %3997 = vmatpush1.msra.mxu0 0.0
        %3998 = vmatprep.subr.mxu0 0.0
        %3999 = vmatpush1.msra.mxu0 0.0
        %4000 = vmatprep.subr.mxu0 0.0
        %4001 = vmatpush1.msra.mxu0 0.0
        %4002 = vmatprep.subr.mxu0 0.0
        %4003 = vmatpush1.msra.mxu0 0.0
        %4004 = vmatprep.subr.mxu0 0.0
        %4005 = vmatpush1.msra.mxu0 0.0
        %4006 = vmatprep.subr.mxu0 0.0
        %4007 = vmatpush1.msra.mxu0 0.0
        %4008 = vmatprep.subr.mxu0 0.0
        %4009 = vmatpush1.msra.mxu0 0.0
        %4010 = vmatprep.subr.mxu0 0.0
        %4011 = vmatpush1.msra.mxu0 0.0
        %4012 = vmatprep.subr.mxu0 0.0
        %4013 = vmatpush1.msra.mxu0 0.0
        %4014 = vmatprep.subr.mxu0 0.0
        %4015 = vmatpush1.msra.mxu0 0.0
        %4016 = vmatprep.subr.mxu0 0.0
        %4017 = vmatpush1.msra.mxu0 0.0
        %4018 = vmatprep.subr.mxu0 0.0
        %4019 = vmatpush1.msra.mxu0 0.0
        %4020 = vmatprep.subr.mxu0 0.0
        %4021 = vmatpush1.msra.mxu0 0.0
        %4022 = vmatprep.subr.mxu0 0.0
        %4023 = vmatpush1.msra.mxu0 0.0
        %4024 = vmatprep.subr.mxu0 0.0
        %4025 = vmatpush1.msra.mxu0 0.0
        %4026 = vmatprep.subr.mxu0 0.0
        %4027 = vmatpush1.msra.mxu0 0.0
        %4028 = vmatprep.subr.mxu0 0.0
        %4029 = vmatpush1.msra.mxu0 0.0
        %4030 = vmatprep.subr.mxu0 0.0
        %4031 = vmatpush1.msra.mxu0 0.0
        %4032 = vmatprep.subr.mxu0 0.0
        %4033 = vmatpush1.msra.mxu0 0.0
        %4034 = vmatprep.subr.mxu0 0.0
        %4035 = vmatpush1.msra.mxu0 0.0
        %4036 = vmatprep.subr.mxu0 0.0
        %4037 = vmatpush1.msra.mxu0 0.0
        %4038 = vmatprep.subr.mxu0 0.0
        %4039 = vmatpush1.msra.mxu0 0.0
        %4040 = vmatprep.subr.mxu0 0.0
        %4041 = vmatpush1.msra.mxu0 0.0
        %4042 = vmatprep.subr.mxu0 0.0
        %4043 = vmatpush1.msra.mxu0 0.0
        %4044 = vmatprep.subr.mxu0 0.0
        %4045 = vmatpush1.msra.mxu0 0.0
        %4046 = vmatprep.mubr.f32.mxu0 0.0
        %4047 = vmatmul.mubr.f32.gmra.mrb[0].mxu0 %v3977
        %v4048 = vpop.f32.mrb[0].mxu0
        %v4049 = vadd.f32 0.0, %v4048
        %v4050 = vpop.f32.mrb[0].mxu0
        %4051 = vdwg.mxu0
        %v4053 = vsel %vm2373, %v3514, 0
        %v4056 = vsel %vm3674, %v3668, 0
        %4058 = vmatprep.subr.mxu0 0.0
        %4059 = vmatpush1.msra.mxu0 %v4056
        %4060 = vmatprep.subr.mxu0 0.0
        %4061 = vmatpush1.msra.mxu0 0.0
        %4062 = vmatprep.subr.mxu0 0.0
        %4063 = vmatpush1.msra.mxu0 0.0
        %4064 = vmatprep.subr.mxu0 0.0
        %4065 = vmatpush1.msra.mxu0 0.0
        %4066 = vmatprep.subr.mxu0 0.0
        %4067 = vmatpush1.msra.mxu0 0.0
        %4068 = vmatprep.subr.mxu0 0.0
        %4069 = vmatpush1.msra.mxu0 0.0
        %4070 = vmatprep.subr.mxu0 0.0
        %4071 = vmatpush1.msra.mxu0 0.0
        %4072 = vmatprep.subr.mxu0 0.0
        %4073 = vmatpush1.msra.mxu0 0.0
        %4074 = vmatprep.subr.mxu0 0.0
        %4075 = vmatpush1.msra.mxu0 0.0
        %4076 = vmatprep.subr.mxu0 0.0
        %4077 = vmatpush1.msra.mxu0 0.0
        %4078 = vmatprep.subr.mxu0 0.0
        %4079 = vmatpush1.msra.mxu0 0.0
        %4080 = vmatprep.subr.mxu0 0.0
        %4081 = vmatpush1.msra.mxu0 0.0
        %4082 = vmatprep.subr.mxu0 0.0
        %4083 = vmatpush1.msra.mxu0 0.0
        %4084 = vmatprep.subr.mxu0 0.0
        %4085 = vmatpush1.msra.mxu0 0.0
        %4086 = vmatprep.subr.mxu0 0.0
        %4087 = vmatpush1.msra.mxu0 0.0
        %4088 = vmatprep.subr.mxu0 0.0
        %4089 = vmatpush1.msra.mxu0 0.0
        %4090 = vmatprep.subr.mxu0 0.0
        %4091 = vmatpush1.msra.mxu0 0.0
        %4092 = vmatprep.subr.mxu0 0.0
        %4093 = vmatpush1.msra.mxu0 0.0
        %4094 = vmatprep.subr.mxu0 0.0
        %4095 = vmatpush1.msra.mxu0 0.0
        %4096 = vmatprep.subr.mxu0 0.0
        %4097 = vmatpush1.msra.mxu0 0.0
        %4098 = vmatprep.subr.mxu0 0.0
        %4099 = vmatpush1.msra.mxu0 0.0
        %4100 = vmatprep.subr.mxu0 0.0
        %4101 = vmatpush1.msra.mxu0 0.0
        %4102 = vmatprep.subr.mxu0 0.0
        %4103 = vmatpush1.msra.mxu0 0.0
        %4104 = vmatprep.subr.mxu0 0.0
        %4105 = vmatpush1.msra.mxu0 0.0
        %4106 = vmatprep.subr.mxu0 0.0
        %4107 = vmatpush1.msra.mxu0 0.0
        %4108 = vmatprep.subr.mxu0 0.0
        %4109 = vmatpush1.msra.mxu0 0.0
        %4110 = vmatprep.subr.mxu0 0.0
        %4111 = vmatpush1.msra.mxu0 0.0
        %4112 = vmatprep.subr.mxu0 0.0
        %4113 = vmatpush1.msra.mxu0 0.0
        %4114 = vmatprep.subr.mxu0 0.0
        %4115 = vmatpush1.msra.mxu0 0.0
        %4116 = vmatprep.subr.mxu0 0.0
        %4117 = vmatpush1.msra.mxu0 0.0
        %4118 = vmatprep.subr.mxu0 0.0
        %4119 = vmatpush1.msra.mxu0 0.0
        %4120 = vmatprep.subr.mxu0 0.0
        %4121 = vmatpush1.msra.mxu0 0.0
        %4122 = vmatprep.mubr.f32.mxu0 0.0
        %4123 = vmatmul.mubr.f32.gmra.mrb[0].mxu0 %v4053
        %v4124 = vpop.f32.mrb[0].mxu0
        %v4125 = vadd.f32 0.0, %v4124
        %v4126 = vpop.f32.mrb[0].mxu0
        %4127 = vdwg.mxu0
        %v4129 = vsel %vm2373, %v3587, 0
        %v4132 = vsel %vm3674, %v3669, 0
        %4134 = vmatprep.subr.mxu0 0.0
        %4135 = vmatpush1.msra.mxu0 %v4132
        %4136 = vmatprep.subr.mxu0 0.0
        %4137 = vmatpush1.msra.mxu0 0.0
        %4138 = vmatprep.subr.mxu0 0.0
        %4139 = vmatpush1.msra.mxu0 0.0
        %4140 = vmatprep.subr.mxu0 0.0
        %4141 = vmatpush1.msra.mxu0 0.0
        %4142 = vmatprep.subr.mxu0 0.0
        %4143 = vmatpush1.msra.mxu0 0.0
        %4144 = vmatprep.subr.mxu0 0.0
        %4145 = vmatpush1.msra.mxu0 0.0
        %4146 = vmatprep.subr.mxu0 0.0
        %4147 = vmatpush1.msra.mxu0 0.0
        %4148 = vmatprep.subr.mxu0 0.0
        %4149 = vmatpush1.msra.mxu0 0.0
        %4150 = vmatprep.subr.mxu0 0.0
        %4151 = vmatpush1.msra.mxu0 0.0
        %4152 = vmatprep.subr.mxu0 0.0
        %4153 = vmatpush1.msra.mxu0 0.0
        %4154 = vmatprep.subr.mxu0 0.0
        %4155 = vmatpush1.msra.mxu0 0.0
        %4156 = vmatprep.subr.mxu0 0.0
        %4157 = vmatpush1.msra.mxu0 0.0
        %4158 = vmatprep.subr.mxu0 0.0
        %4159 = vmatpush1.msra.mxu0 0.0
        %4160 = vmatprep.subr.mxu0 0.0
        %4161 = vmatpush1.msra.mxu0 0.0
        %4162 = vmatprep.subr.mxu0 0.0
        %4163 = vmatpush1.msra.mxu0 0.0
        %4164 = vmatprep.subr.mxu0 0.0
        %4165 = vmatpush1.msra.mxu0 0.0
        %4166 = vmatprep.subr.mxu0 0.0
        %4167 = vmatpush1.msra.mxu0 0.0
        %4168 = vmatprep.subr.mxu0 0.0
        %4169 = vmatpush1.msra.mxu0 0.0
        %4170 = vmatprep.subr.mxu0 0.0
        %4171 = vmatpush1.msra.mxu0 0.0
        %4172 = vmatprep.subr.mxu0 0.0
        %4173 = vmatpush1.msra.mxu0 0.0
        %4174 = vmatprep.subr.mxu0 0.0
        %4175 = vmatpush1.msra.mxu0 0.0
        %4176 = vmatprep.subr.mxu0 0.0
        %4177 = vmatpush1.msra.mxu0 0.0
        %4178 = vmatprep.subr.mxu0 0.0
        %4179 = vmatpush1.msra.mxu0 0.0
        %4180 = vmatprep.subr.mxu0 0.0
        %4181 = vmatpush1.msra.mxu0 0.0
        %4182 = vmatprep.subr.mxu0 0.0
        %4183 = vmatpush1.msra.mxu0 0.0
        %4184 = vmatprep.subr.mxu0 0.0
        %4185 = vmatpush1.msra.mxu0 0.0
        %4186 = vmatprep.subr.mxu0 0.0
        %4187 = vmatpush1.msra.mxu0 0.0
        %4188 = vmatprep.subr.mxu0 0.0
        %4189 = vmatpush1.msra.mxu0 0.0
        %4190 = vmatprep.subr.mxu0 0.0
        %4191 = vmatpush1.msra.mxu0 0.0
        %4192 = vmatprep.subr.mxu0 0.0
        %4193 = vmatpush1.msra.mxu0 0.0
        %4194 = vmatprep.subr.mxu0 0.0
        %4195 = vmatpush1.msra.mxu0 0.0
        %4196 = vmatprep.subr.mxu0 0.0
        %4197 = vmatpush1.msra.mxu0 0.0
        %4198 = vmatprep.mubr.f32.mxu0 0.0
        %4199 = vmatmul.mubr.f32.gmra.mrb[0].mxu0 %v4129
        %v4200 = vpop.f32.mrb[0].mxu0
        %v4201 = vadd.f32 0.0, %v4200
        %v4202 = vpop.f32.mrb[0].mxu0
        %4203 = vdwg.mxu0
        %v4205 = vsel %vm2373, %v3660, 0
        %v4208 = vsel %vm3674, %v3670, 0
        %4210 = vmatprep.subr.mxu0 0.0
        %4211 = vmatpush1.msra.mxu0 %v4208
        %4212 = vmatprep.subr.mxu0 0.0
        %4213 = vmatpush1.msra.mxu0 0.0
        %4214 = vmatprep.subr.mxu0 0.0
        %4215 = vmatpush1.msra.mxu0 0.0
        %4216 = vmatprep.subr.mxu0 0.0
        %4217 = vmatpush1.msra.mxu0 0.0
        %4218 = vmatprep.subr.mxu0 0.0
        %4219 = vmatpush1.msra.mxu0 0.0
        %4220 = vmatprep.subr.mxu0 0.0
        %4221 = vmatpush1.msra.mxu0 0.0
        %4222 = vmatprep.subr.mxu0 0.0
        %4223 = vmatpush1.msra.mxu0 0.0
        %4224 = vmatprep.subr.mxu0 0.0
        %4225 = vmatpush1.msra.mxu0 0.0
        %4226 = vmatprep.subr.mxu0 0.0
        %4227 = vmatpush1.msra.mxu0 0.0
        %4228 = vmatprep.subr.mxu0 0.0
        %4229 = vmatpush1.msra.mxu0 0.0
        %4230 = vmatprep.subr.mxu0 0.0
        %4231 = vmatpush1.msra.mxu0 0.0
        %4232 = vmatprep.subr.mxu0 0.0
        %4233 = vmatpush1.msra.mxu0 0.0
        %4234 = vmatprep.subr.mxu0 0.0
        %4235 = vmatpush1.msra.mxu0 0.0
        %4236 = vmatprep.subr.mxu0 0.0
        %4237 = vmatpush1.msra.mxu0 0.0
        %4238 = vmatprep.subr.mxu0 0.0
        %4239 = vmatpush1.msra.mxu0 0.0
        %4240 = vmatprep.subr.mxu0 0.0
        %4241 = vmatpush1.msra.mxu0 0.0
        %4242 = vmatprep.subr.mxu0 0.0
        %4243 = vmatpush1.msra.mxu0 0.0
        %4244 = vmatprep.subr.mxu0 0.0
        %4245 = vmatpush1.msra.mxu0 0.0
        %4246 = vmatprep.subr.mxu0 0.0
        %4247 = vmatpush1.msra.mxu0 0.0
        %4248 = vmatprep.subr.mxu0 0.0
        %4249 = vmatpush1.msra.mxu0 0.0
        %4250 = vmatprep.subr.mxu0 0.0
        %4251 = vmatpush1.msra.mxu0 0.0
        %4252 = vmatprep.subr.mxu0 0.0
        %4253 = vmatpush1.msra.mxu0 0.0
        %4254 = vmatprep.subr.mxu0 0.0
        %4255 = vmatpush1.msra.mxu0 0.0
        %4256 = vmatprep.subr.mxu0 0.0
        %4257 = vmatpush1.msra.mxu0 0.0
        %4258 = vmatprep.subr.mxu0 0.0
        %4259 = vmatpush1.msra.mxu0 0.0
        %4260 = vmatprep.subr.mxu0 0.0
        %4261 = vmatpush1.msra.mxu0 0.0
        %4262 = vmatprep.subr.mxu0 0.0
        %4263 = vmatpush1.msra.mxu0 0.0
        %4264 = vmatprep.subr.mxu0 0.0
        %4265 = vmatpush1.msra.mxu0 0.0
        %4266 = vmatprep.subr.mxu0 0.0
        %4267 = vmatpush1.msra.mxu0 0.0
        %4268 = vmatprep.subr.mxu0 0.0
        %4269 = vmatpush1.msra.mxu0 0.0
        %4270 = vmatprep.subr.mxu0 0.0
        %4271 = vmatpush1.msra.mxu0 0.0
        %4272 = vmatprep.subr.mxu0 0.0
        %4273 = vmatpush1.msra.mxu0 0.0
        %4274 = vmatprep.mubr.f32.mxu0 0.0
        %4275 = vmatmul.mubr.f32.gmra.mrb[0].mxu0 %v4205
        %v4276 = vpop.f32.mrb[0].mxu0
        %v4277 = vadd.f32 0.0, %v4276
        %v4278 = vpop.f32.mrb[0].mxu0
        %4279 = vdwg.mxu0
        %v4280 = vsel %vm507, %v3745, 0.0
        %v4281 = vsel %vm507, %v3821, 0.0
        %v4282 = vadd.f32 %v4280, %v4281
        %v4283 = vsel %vm507, %v3897, 0.0
        %v4284 = vadd.f32 %v4282, %v4283
        %v4285 = vsel %vm507, %v3973, 0.0
        %v4286 = vadd.f32 %v4284, %v4285
        %v4287 = vsel %vm507, %v4049, 0.0
        %v4288 = vadd.f32 %v4286, %v4287
        %v4289 = vsel %vm507, %v4125, 0.0
        %v4290 = vadd.f32 %v4288, %v4289
        %v4291 = vsel %vm507, %v4201, 0.0
        %v4292 = vadd.f32 %v4290, %v4291
        %v4293 = vsel %vm507, %v4277, 0.0
        %v4294 = vadd.f32 %v4292, %v4293
        %v4295 = vld [vmem:[%s10] sm:$0x1]
        %v4297 = vlaneseq
        %v4298 = vshrl.u32 %v4297, 7
        %v4299 = vsub.s32 0, %v4298
        %v4300 = vrot.slane %v4295, %v4299
        %v4302 = vadd.f32 %v4294, %v4300
        %4303 = vst.msk [vmem:[%s403] sm:$0xff] %vm507, %v4302
        %s4304 = sand.u32 %s279, 1
        %s4305 = scalar_lea.sflag [#allocation3], %s4304
        %s4306 = sand.u32 %s279, 1
        %s4307 = smul.addr %s4306, 8
        %s4308 = scalar_lea.vmem [#allocation2], %s4307
        // Predicated region
        $region65: #{multi_head_attention.1} parent=63 // pred_check
          %p4309 = pneg %p289
        $region66: #{multi_head_attention.1} parent=63 // pred_check_branch
          %4311 = sbr.rel (%p4309) target = $region68
        $region67: #{multi_head_attention.1} parent=63 // pred_region
          %s4313 = ssub.s32 128, 128
          %4314 = vsyncadd %s4305, %s4313
          %s4315 = smul.addr %s25, 128
          %s4316 = scalar_lea.hbm %s11, %s4315
          %s4318 = sshll.u32 %s4308, 4
          %s4319 = int_to_ptr.vmem [resolvable:$true] %s4318
          %4321 = dma.vmem_to_hbm [thread:$0]  %s4319, 128, %s4316, %s4305
        $region68: #{multi_head_attention.1} parent=63 // pred_fallthru
          _
      $region64: #{multi_head_attention.1} parent=5 // pred_fallthru
        _
      %p4322 = scmp.le.s32.totalorder 2, %s20
      // Predicated region
      $region69: #{multi_head_attention.1} parent=5 // pred_check
        %p4323 = pneg %p4322
      $region70: #{multi_head_attention.1} parent=5 // pred_check_branch
        %4325 = sbr.rel (%p4323) target = $region72
      $region71: #{multi_head_attention.1} parent=5 // pred_region
        %s4326 = ssub.s32 %s20, 2
        // Predicated region
        $region73: #{multi_head_attention.1} parent=71 // pred_check
          %p4327 = pneg %p295
        $region74: #{multi_head_attention.1} parent=71 // pred_check_branch
          %4329 = sbr.rel (%p4327) target = $region76
        $region75: #{multi_head_attention.1} parent=71 // pred_region
          %s4330 = sand.u32 %s280, 1
          %s4331 = scalar_lea.sflag [#allocation3], %s4330
          %s4332 = sand.u32 %s280, 1
          %s4333 = smul.addr %s4332, 8
          %s4334 = scalar_lea.vmem [#allocation2], %s4333
          %4335 = dma.done %s4331, 128
        $region76: #{multi_head_attention.1} parent=71 // pred_fallthru
          _
      $region72: #{multi_head_attention.1} parent=5 // pred_fallthru
        _
    $region6: #{multi_head_attention.1} parent=1 // loop_footer
      %s24 = sadd.s32 1, %s20
    $region7: #{multi_head_attention.1} parent=1 // loop_footer_branch
      %19 = sbr.rel target = $region3
    $region8: #{multi_head_attention.1} parent=1 // loop_exit
      _
    %4336 = vsyncpa [#allocation3], 1
    %s4337 = scalar_lea.sflag [#allocation3], 1
    %4338 = vsyncpa %s4337, 1

</llo_original>
